<compile_context>
chip_gen: v6e
topology: v6e:2x2x1
jax: 0.10.0
libtpu: 0.0.40
codegen_flags: <defaults>
</compile_context>

<pallas_src>
import functools
import math

import jax
import jax.numpy as jnp
from jax import lax
from jax.experimental import pallas as pl
from jax.experimental.pallas import tpu as pltpu

LANES = 128
NEG = -1e30  # python float (NOT a jnp scalar, so nothing is closure-captured)

# ---- packed-parameter layout (python ints only; shared by packer & kernel) ----
_W_BLOCKS = ["pre1", "pre2", "pre3", "conv1", "conv2", "conv3",
             "lin1_gm", "lin1_ga", "lin2", "lin3", "lin4"]
W_OFF = {name: i * LANES for i, name in enumerate(_W_BLOCKS)}
W_ROWS = len(_W_BLOCKS) * LANES                       # 1408

_V_NAMES = ["pre1_b", "bn1_g", "bn1_b",
            "pre2_b", "bn2_g", "bn2_b",
            "pre3_b", "bn3_g", "bn3_b",
            "conv1_b", "pool1_p", "conv2_b", "pool2_p", "conv3_b", "pool3_p",
            "lin1_b", "lin2_b", "lin3_b", "lin4_b"]
V_OFF = {name: i * 8 for i, name in enumerate(_V_NAMES)}   # 8-row aligned
V_ROWS = len(_V_NAMES) * 8                                   # 152


def _make_kernel(n_nodes, k1, k2, k3):
    N = n_nodes
    f32 = jnp.float32
    bf16 = jnp.bfloat16

    def kernel(x_ref, a_ref, w_ref, v_ref, out_ref):
        def wblk(name):                       # [128, 128] bf16 weight block
            off = W_OFF[name]
            return w_ref[off:off + LANES, :]

        def vrow(name):                       # [1, 128] f32 bias/gamma/beta/pool row
            r = V_OFF[name]
            return v_ref[r:r + 1, :]

        lane = lax.broadcasted_iota(jnp.int32, (N, LANES), 1)
        pad64 = lane < 64                      # hoisted: shared by all 6 gconv calls
        row_i = lax.broadcasted_iota(jnp.int32, (N, N), 0)
        col_j = lax.broadcasted_iota(jnp.int32, (N, N), 1)
        eye = row_i == col_j

        # Exact lane-shift operator (replaces pltpu.roll):
        #   (xw @ shiftS)[:, j] = xw[:, j + 64]  for j < 64, else 0.
        r128 = lax.broadcasted_iota(jnp.int32, (LANES, LANES), 0)
        c128 = lax.broadcasted_iota(jnp.int32, (LANES, LANES), 1)
        shiftS = jnp.where(r128 == c128 + 64, 1.0, 0.0).astype(f32)

        def col2row(v):                       # exact [N,1] -> [1,N] "transpose"
            return jnp.sum(jnp.where(eye, v, 0.0), axis=0, keepdims=True)

        relu = lambda t: jnp.maximum(t, 0.0)

        def gconv(h, A, name):
            # Fused GraphConv: xw = h @ [W_rel | W_root]  (root at lane offset 64)
            #                  out = A @ (h@W_rel) + h@W_root + b
            xw = jnp.dot(h.astype(bf16), wblk(name),
                         preferred_element_type=f32)                    # [N,128]
            agg = jnp.dot(A, xw, preferred_element_type=f32)            # lanes<64: A@(h@W_rel)
            root = jnp.dot(xw, shiftS, preferred_element_type=f32)      # lanes<64: h@W_root
            out = agg + root + vrow(name + "_b")
            return jnp.where(pad64, out, 0.0)                           # clear pad lanes

        def bn(h, n):
            # training-mode BatchNorm over nodes (biased var, eps=1e-5)
            # TODO(synk): eval-mode running statistics not modeled.
            mu = jnp.mean(h, axis=0, keepdims=True)
            var = jnp.mean((h - mu) * (h - mu), axis=0, keepdims=True)
            return (h - mu) * lax.rsqrt(var + 1e-5) * vrow(f"bn{n}_g") + vrow(f"bn{n}_b")

        def topk_pool(h, mc, mr, n, k, need_row):
            # score = (h . w)/||w|| (w pre-normalized host-side); keep top-k live
            # nodes; gate kept features by tanh(score).
            # mc: [N,1] live mask (column form), mr: [1,N] live mask (row form).
            s_col = jnp.sum(h * vrow(f"pool{n}_p"), axis=1, keepdims=True)   # [N,1]
            gate = jnp.tanh(s_col)
            s_row = col2row(s_col)            # identical values, row layout
            # node j "beats" node i if it is live and ranks higher (index tie-break)
            beats = mr * jnp.where((s_row > s_col) |
                                   ((s_row == s_col) & (col_j < row_i)), 1.0, 0.0)
            rank = jnp.sum(beats, axis=1, keepdims=True)                      # [N,1]
            new_mc = mc * jnp.where(rank < float(k), 1.0, 0.0)
            new_mr = col2row(new_mc) if need_row else None
            # zero dropped nodes so the next plain A@x equals the pooled aggregation
            return h * gate * new_mc, new_mc, new_mr

        def readout(h, mc, k):
            gmp = jnp.max(jnp.where(mc > 0.0, h, NEG), axis=0, keepdims=True)
            gap = jnp.sum(h * mc, axis=0, keepdims=True) * (1.0 / float(k))
            return gmp, gap

        x = x_ref[...]                        # [N,128], features in lanes [0,F)
        Aw = a_ref[0]                         # weighted adjacency (edge_attr)
        A1 = a_ref[1]                         # unweighted adjacency (edge counts)

        h = bn(relu(gconv(x, Aw, "pre1")), 1)
        h = bn(relu(gconv(h, Aw, "pre2")), 2)
        h = bn(relu(gconv(h, Aw, "pre3")), 3)

        mc0 = jnp.ones((N, 1), f32)
        mr0 = jnp.ones((1, N), f32)

        h = relu(gconv(h, Aw, "conv1"))
        h, mc1, mr1 = topk_pool(h, mc0, mr0, 1, k1, True)
        gmp1, gap1 = readout(h, mc1, k1)

        h = relu(gconv(h, A1, "conv2"))       # dead nodes are zero -> pooled aggregation
        h, mc2, mr2 = topk_pool(h, mc1, mr1, 2, k2, True)
        gmp2, gap2 = readout(h, mc2, k2)

        h = relu(gconv(h, A1, "conv3"))
        h, mc3, _ = topk_pool(h, mc2, mr2, 3, k3, False)
        gmp3, gap3 = readout(h, mc3, k3)

        gm = gmp1 + gmp2 + gmp3               # [1,128], real in lanes [0,64)
        ga = gap1 + gap2 + gap3

        # lin1 on concat([gmp, gap], dim=1) == gm @ W1[:64] + ga @ W1[64:] + b
        # (two lane-dense [1,128]x[128,128] MXU pushes -> no in-kernel lane concat)
        z = relu(jnp.dot(gm.astype(bf16), wblk("lin1_gm"), preferred_element_type=f32)
                 + jnp.dot(ga.astype(bf16), wblk("lin1_ga"), preferred_element_type=f32)
                 + vrow("lin1_b"))
        # TODO(synk): nn.Dropout() (training-mode torch RNG stream) has no
        # deterministic equivalent; treated as identity (eval mode).
        z = relu(jnp.dot(z.astype(bf16), wblk("lin2"),
                         preferred_element_type=f32) + vrow("lin2_b"))
        z = relu(jnp.dot(z.astype(bf16), wblk("lin3"),
                         preferred_element_type=f32) + vrow("lin3_b"))
        z = jnp.dot(z.astype(bf16), wblk("lin4"),
                    preferred_element_type=f32) + vrow("lin4_b")
        # lin4 bias pad lanes hold -1e30 -> padded logits vanish from log_softmax
        m = jnp.max(z, axis=-1, keepdims=True)
        zc = z - m
        out_ref[...] = zc - jnp.log(jnp.sum(jnp.exp(zc), axis=-1, keepdims=True))

    return kernel


def pack_params(P, num_classes):
    """Pack every parameter into one bf16 weight slab and one f32 vector slab.

    Call ONCE when parameters change (outside the per-forward jitted path)."""
    W = jnp.zeros((W_ROWS, LANES), jnp.float32)

    def put(Wc, name, mat, c=0):
        r0 = W_OFF[name]
        return Wc.at[r0:r0 + mat.shape[0], c:c + mat.shape[1]].set(mat)

    # fused GraphConv blocks: W_rel at lanes [0,C_out), W_root at lanes [64,64+C_out)
    for name in ["pre1", "pre2", "pre3", "conv1", "conv2", "conv3"]:
        W = put(W, name, P[name + "_rel"], c=0)
        W = put(W, name, P[name + "_root"], c=64)
    W = put(W, "lin1_gm", P["lin1_w"][:64])
    W = put(W, "lin1_ga", P["lin1_w"][64:])
    W = put(W, "lin2", P["lin2_w"])
    W = put(W, "lin3", P["lin3_w"])
    W = put(W, "lin4", P["lin4_w"])

    V = jnp.zeros((V_ROWS, LANES), jnp.float32)

    def putv(Vc, name, vec):
        r = V_OFF[name]
        return Vc.at[r:r + 1, :vec.shape[1]].set(vec)

    for name in ["pre1_b", "pre2_b", "pre3_b",
                 "conv1_b", "conv2_b", "conv3_b",
                 "lin1_b", "lin2_b", "lin3_b"]:
        V = putv(V, name, P[name])
    for n in range(1, 4):
        V = putv(V, f"bn{n}_g", P[f"bn{n}_g"])
        V = putv(V, f"bn{n}_b", P[f"bn{n}_b"])
        p = P[f"pool{n}_p"]
        V = putv(V, f"pool{n}_p", p / jnp.sqrt(jnp.sum(p * p)))   # pre-normalized
    b4 = jnp.full((1, LANES), NEG, jnp.float32).at[:, :num_classes].set(P["lin4_b"])
    V = V.at[V_OFF["lin4_b"]:V_OFF["lin4_b"] + 1, :].set(b4)
    # TODO(synk): on v7x the weight slab could be fp8 for another 2x DMA cut.
    return W.astype(jnp.bfloat16), V


@functools.partial(jax.jit, static_argnames=("num_classes", "ratio"))
def net_forward(x, edge_src, edge_dst, edge_w, wslab, vslab, num_classes, ratio=0.8):
    N, F = x.shape
    assert F <= 64 and num_classes <= LANES
    # one stacked scatter builds both adjacencies: A[0]=weighted, A[1]=counts
    vals = jnp.stack([edge_w, jnp.ones_like(edge_w)], axis=0)          # [2,E]
    A = jnp.zeros((2, N, N), jnp.float32).at[:, edge_dst, edge_src].add(vals)

    k1 = math.ceil(ratio * N)
    k2 = math.ceil(ratio * k1)
    k3 = math.ceil(ratio * k2)

    xp = jnp.zeros((N, LANES), jnp.float32).at[:, :F].set(x)           # lane-pad x

    kernel = _make_kernel(N, k1, k2, k3)
    vmem = pl.BlockSpec(memory_space=pltpu.MemorySpace.VMEM)
    out = pl.pallas_call(
        kernel,
        out_shape=jax.ShapeDtypeStruct((1, LANES), jnp.float32),
        in_specs=[vmem, vmem, vmem, vmem],
        out_specs=vmem,
    )(xp, A, wslab, vslab)
    return out[:, :num_classes]


def init_params(key, num_features, num_classes):
    keys = iter(jax.random.split(key, 40))

    def w(i, o):
        return (jax.random.normal(next(keys), (i, o)) / math.sqrt(i)).astype(jnp.float32)

    def b(o):
        return (jax.random.normal(next(keys), (1, o)) * 0.05).astype(jnp.float32)

    P = {}
    for n, (i, o) in enumerate([(num_features, 16), (16, 32), (32, 64)], 1):
        P[f"pre{n}_rel"] = w(i, o)
        P[f"pre{n}_root"] = w(i, o)
        P[f"pre{n}_b"] = b(o)
        P[f"bn{n}_g"] = jnp.ones((1, o), jnp.float32)
        P[f"bn{n}_b"] = jnp.zeros((1, o), jnp.float32)
    for n in range(1, 4):
        P[f"conv{n}_rel"] = w(64, 64)
        P[f"conv{n}_root"] = w(64, 64)
        P[f"conv{n}_b"] = b(64)
        P[f"pool{n}_p"] = (jax.random.normal(next(keys), (1, 64)) / 8.0).astype(jnp.float32)
    P["lin1_w"] = w(128, 64)
    P["lin1_b"] = b(64)
    P["lin2_w"] = w(64, 32)
    P["lin2_b"] = b(32)
    P["lin3_w"] = w(32, 16)
    P["lin3_b"] = b(16)
    P["lin4_w"] = w(16, num_classes)
    P["lin4_b"] = b(num_classes)
    return P


if __name__ == "__main__":
    N, F, C = 16, 8, 4          # nodes, num_features, num_classes
    key = jax.random.PRNGKey(0)
    k_x, k_e, k_w, k_p = jax.random.split(key, 4)

    x = jax.random.normal(k_x, (N, F), jnp.float32)

    # single graph (batch == zeros): bidirectional ring + 16 random directed edges
    ring_src = jnp.arange(N, dtype=jnp.int32)
    ring_dst = (ring_src + 1) % N
    rnd_src = jax.random.randint(k_e, (16,), 0, N, jnp.int32)
    rnd_dst = jax.random.randint(jax.random.fold_in(k_e, 1), (16,), 0, N, jnp.int32)
    edge_src = jnp.concatenate([ring_src, ring_dst, rnd_src])
    edge_dst = jnp.concatenate([ring_dst, ring_src, rnd_dst])
    edge_w = jax.random.uniform(k_w, (edge_src.shape[0],), jnp.float32, 0.5, 1.5)

    params = init_params(k_p, F, C)
    # Parameter packing happens once, outside the per-forward jitted path.
    wslab, vslab = pack_params(params, C)

    out = net_forward(x, edge_src, edge_dst, edge_w, wslab, vslab, num_classes=C)
    out = jax.block_until_ready(out)
    assert out.shape == (1, C)
    assert bool(jnp.all(jnp.isfinite(out)))
    print("KERNEL_OK")
</pallas_src>

<mosaic_0001>
module attributes {stable_mosaic.version = 11 : i64} {
  func.func @kernel(%arg0: memref<16x128xf32, #tpu.memory_space<vmem>>, %arg1: memref<2x16x16xf32, #tpu.memory_space<vmem>>, %arg2: memref<1408x128xbf16, #tpu.memory_space<vmem>>, %arg3: memref<152x128xf32, #tpu.memory_space<vmem>>, %arg4: memref<1x128xf32, #tpu.memory_space<vmem>>) attributes {dimension_semantics = [], scalar_prefetch = 0 : i64, scratch_operands = 0 : i64, tpu.core_type = #tpu.core_type<tc>} {
    %0 = tpu.iota {dimensions = array<i32: 1>} : vector<16x128xi32>
    %c64_i32 = arith.constant 64 : i32
    %1 = vector.broadcast %c64_i32 : i32 to vector<16x128xi32>
    %2 = arith.cmpi slt, %0, %1 : vector<16x128xi32>
    %3 = tpu.iota {dimensions = array<i32: 0>} : vector<16x16xi32>
    %4 = tpu.iota {dimensions = array<i32: 1>} : vector<16x16xi32>
    %5 = arith.cmpi eq, %3, %4 : vector<16x16xi32>
    %6 = tpu.iota {dimensions = array<i32: 0>} : vector<128x128xi32>
    %7 = tpu.iota {dimensions = array<i32: 1>} : vector<128x128xi32>
    %c64_i32_0 = arith.constant 64 : i32
    %8 = vector.broadcast %c64_i32_0 : i32 to vector<128x128xi32>
    %9 = arith.addi %7, %8 : vector<128x128xi32>
    %10 = arith.cmpi eq, %6, %9 : vector<128x128xi32>
    %cst = arith.constant 1.000000e+00 : f32
    %cst_1 = arith.constant 0.000000e+00 : f32
    %11 = vector.broadcast %cst : f32 to vector<128x128xf32>
    %12 = vector.broadcast %cst_1 : f32 to vector<128x128xf32>
    %13 = arith.select %10, %11, %12 : vector<128x128xi1>, vector<128x128xf32>
    %c0 = arith.constant 0 : index
    %c0_2 = arith.constant 0 : index
    %14 = vector.load %arg0[%c0, %c0_2] : memref<16x128xf32, #tpu.memory_space<vmem>>, vector<16x128xf32>
    %c0_3 = arith.constant 0 : index
    %c0_4 = arith.constant 0 : index
    %c0_5 = arith.constant 0 : index
    %15 = vector.load %arg1[%c0_3, %c0_4, %c0_5] : memref<2x16x16xf32, #tpu.memory_space<vmem>>, vector<1x16x16xf32>
    %16 = vector.shape_cast %15 : vector<1x16x16xf32> to vector<16x16xf32>
    %c1 = arith.constant 1 : index
    %c0_6 = arith.constant 0 : index
    %c0_7 = arith.constant 0 : index
    %17 = vector.load %arg1[%c1, %c0_6, %c0_7] : memref<2x16x16xf32, #tpu.memory_space<vmem>>, vector<1x16x16xf32>
    %18 = vector.shape_cast %17 : vector<1x16x16xf32> to vector<16x16xf32>
    %19 = arith.truncf %14 : vector<16x128xf32> to vector<16x128xbf16>
    %c0_8 = arith.constant 0 : index
    %c0_9 = arith.constant 0 : index
    %20 = vector.load %arg2[%c0_8, %c0_9] : memref<1408x128xbf16, #tpu.memory_space<vmem>>, vector<128x128xbf16>
    %cst_10 = arith.constant dense<0.000000e+00> : vector<16x128xf32>
    %21 = tpu.matmul %19, %20, %cst_10 {dimension_numbers = #tpu.dot_dimension_numbers<[1], [0], [0], [1], [0, 0, 1, 1], [], []>} : vector<16x128xbf16>, vector<128x128xbf16>, vector<16x128xf32> -> vector<16x128xf32>
    %cst_11 = arith.constant dense<0.000000e+00> : vector<16x128xf32>
    %22 = tpu.matmul %16, %21, %cst_11 {dimension_numbers = #tpu.dot_dimension_numbers<[1], [0], [0], [1], [0, 0, 1, 1], [], []>} : vector<16x16xf32>, vector<16x128xf32>, vector<16x128xf32> -> vector<16x128xf32>
    %cst_12 = arith.constant dense<0.000000e+00> : vector<16x128xf32>
    %23 = tpu.matmul %21, %13, %cst_12 {dimension_numbers = #tpu.dot_dimension_numbers<[1], [0], [0], [1], [0, 0, 1, 1], [], []>} : vector<16x128xf32>, vector<128x128xf32>, vector<16x128xf32> -> vector<16x128xf32>
    %24 = arith.addf %22, %23 : vector<16x128xf32>
    %c0_13 = arith.constant 0 : index
    %c0_14 = arith.constant 0 : index
    %25 = vector.load %arg3[%c0_13, %c0_14] : memref<152x128xf32, #tpu.memory_space<vmem>>, vector<1x128xf32>
    %26 = vector.broadcast %25 : vector<1x128xf32> to vector<16x128xf32>
    %27 = arith.addf %24, %26 : vector<16x128xf32>
    %cst_15 = arith.constant 0.000000e+00 : f32
    %28 = vector.broadcast %cst_15 : f32 to vector<16x128xf32>
    %29 = arith.select %2, %27, %28 : vector<16x128xi1>, vector<16x128xf32>
    %cst_16 = arith.constant 0.000000e+00 : f32
    %30 = vector.broadcast %cst_16 : f32 to vector<16x128xf32>
    %31 = arith.maximumf %29, %30 : vector<16x128xf32>
    %cst_17 = arith.constant dense<0.000000e+00> : vector<128xf32>
    %32 = vector.multi_reduction <add>, %31, %cst_17 [0] : vector<16x128xf32> to vector<128xf32>
    %33 = vector.shape_cast %32 : vector<128xf32> to vector<1x128xf32>
    %cst_18 = arith.constant 1.600000e+01 : f32
    %34 = vector.broadcast %cst_18 : f32 to vector<1x128xf32>
    %35 = arith.divf %33, %34 : vector<1x128xf32>
    %36 = vector.broadcast %35 : vector<1x128xf32> to vector<16x128xf32>
    %37 = arith.subf %31, %36 : vector<16x128xf32>
    %38 = vector.broadcast %35 : vector<1x128xf32> to vector<16x128xf32>
    %39 = arith.subf %31, %38 : vector<16x128xf32>
    %40 = arith.mulf %37, %39 : vector<16x128xf32>
    %cst_19 = arith.constant dense<0.000000e+00> : vector<128xf32>
    %41 = vector.multi_reduction <add>, %40, %cst_19 [0] : vector<16x128xf32> to vector<128xf32>
    %42 = vector.shape_cast %41 : vector<128xf32> to vector<1x128xf32>
    %cst_20 = arith.constant 1.600000e+01 : f32
    %43 = vector.broadcast %cst_20 : f32 to vector<1x128xf32>
    %44 = arith.divf %42, %43 : vector<1x128xf32>
    %45 = vector.broadcast %35 : vector<1x128xf32> to vector<16x128xf32>
    %46 = arith.subf %31, %45 : vector<16x128xf32>
    %cst_21 = arith.constant 9.99999974E-6 : f32
    %47 = vector.broadcast %cst_21 : f32 to vector<1x128xf32>
    %48 = arith.addf %44, %47 : vector<1x128xf32>
    %49 = math.rsqrt %48 : vector<1x128xf32>
    %50 = vector.broadcast %49 : vector<1x128xf32> to vector<16x128xf32>
    %51 = arith.mulf %46, %50 : vector<16x128xf32>
    %c8 = arith.constant 8 : index
    %c0_22 = arith.constant 0 : index
    %52 = vector.load %arg3[%c8, %c0_22] : memref<152x128xf32, #tpu.memory_space<vmem>>, vector<1x128xf32>
    %53 = vector.broadcast %52 : vector<1x128xf32> to vector<16x128xf32>
    %54 = arith.mulf %51, %53 : vector<16x128xf32>
    %c16 = arith.constant 16 : index
    %c0_23 = arith.constant 0 : index
    %55 = vector.load %arg3[%c16, %c0_23] : memref<152x128xf32, #tpu.memory_space<vmem>>, vector<1x128xf32>
    %56 = vector.broadcast %55 : vector<1x128xf32> to vector<16x128xf32>
    %57 = arith.addf %54, %56 : vector<16x128xf32>
    %58 = arith.truncf %57 : vector<16x128xf32> to vector<16x128xbf16>
    %c128 = arith.constant 128 : index
    %c0_24 = arith.constant 0 : index
    %59 = vector.load %arg2[%c128, %c0_24] : memref<1408x128xbf16, #tpu.memory_space<vmem>>, vector<128x128xbf16>
    %cst_25 = arith.constant dense<0.000000e+00> : vector<16x128xf32>
    %60 = tpu.matmul %58, %59, %cst_25 {dimension_numbers = #tpu.dot_dimension_numbers<[1], [0], [0], [1], [0, 0, 1, 1], [], []>} : vector<16x128xbf16>, vector<128x128xbf16>, vector<16x128xf32> -> vector<16x128xf32>
    %cst_26 = arith.constant dense<0.000000e+00> : vector<16x128xf32>
    %61 = tpu.matmul %16, %60, %cst_26 {dimension_numbers = #tpu.dot_dimension_numbers<[1], [0], [0], [1], [0, 0, 1, 1], [], []>} : vector<16x16xf32>, vector<16x128xf32>, vector<16x128xf32> -> vector<16x128xf32>
    %cst_27 = arith.constant dense<0.000000e+00> : vector<16x128xf32>
    %62 = tpu.matmul %60, %13, %cst_27 {dimension_numbers = #tpu.dot_dimension_numbers<[1], [0], [0], [1], [0, 0, 1, 1], [], []>} : vector<16x128xf32>, vector<128x128xf32>, vector<16x128xf32> -> vector<16x128xf32>
    %63 = arith.addf %61, %62 : vector<16x128xf32>
    %c24 = arith.constant 24 : index
    %c0_28 = arith.constant 0 : index
    %64 = vector.load %arg3[%c24, %c0_28] : memref<152x128xf32, #tpu.memory_space<vmem>>, vector<1x128xf32>
    %65 = vector.broadcast %64 : vector<1x128xf32> to vector<16x128xf32>
    %66 = arith.addf %63, %65 : vector<16x128xf32>
    %cst_29 = arith.constant 0.000000e+00 : f32
    %67 = vector.broadcast %cst_29 : f32 to vector<16x128xf32>
    %68 = arith.select %2, %66, %67 : vector<16x128xi1>, vector<16x128xf32>
    %cst_30 = arith.constant 0.000000e+00 : f32
    %69 = vector.broadcast %cst_30 : f32 to vector<16x128xf32>
    %70 = arith.maximumf %68, %69 : vector<16x128xf32>
    %cst_31 = arith.constant dense<0.000000e+00> : vector<128xf32>
    %71 = vector.multi_reduction <add>, %70, %cst_31 [0] : vector<16x128xf32> to vector<128xf32>
    %72 = vector.shape_cast %71 : vector<128xf32> to vector<1x128xf32>
    %cst_32 = arith.constant 1.600000e+01 : f32
    %73 = vector.broadcast %cst_32 : f32 to vector<1x128xf32>
    %74 = arith.divf %72, %73 : vector<1x128xf32>
    %75 = vector.broadcast %74 : vector<1x128xf32> to vector<16x128xf32>
    %76 = arith.subf %70, %75 : vector<16x128xf32>
    %77 = vector.broadcast %74 : vector<1x128xf32> to vector<16x128xf32>
    %78 = arith.subf %70, %77 : vector<16x128xf32>
    %79 = arith.mulf %76, %78 : vector<16x128xf32>
    %cst_33 = arith.constant dense<0.000000e+00> : vector<128xf32>
    %80 = vector.multi_reduction <add>, %79, %cst_33 [0] : vector<16x128xf32> to vector<128xf32>
    %81 = vector.shape_cast %80 : vector<128xf32> to vector<1x128xf32>
    %cst_34 = arith.constant 1.600000e+01 : f32
    %82 = vector.broadcast %cst_34 : f32 to vector<1x128xf32>
    %83 = arith.divf %81, %82 : vector<1x128xf32>
    %84 = vector.broadcast %74 : vector<1x128xf32> to vector<16x128xf32>
    %85 = arith.subf %70, %84 : vector<16x128xf32>
    %cst_35 = arith.constant 9.99999974E-6 : f32
    %86 = vector.broadcast %cst_35 : f32 to vector<1x128xf32>
    %87 = arith.addf %83, %86 : vector<1x128xf32>
    %88 = math.rsqrt %87 : vector<1x128xf32>
    %89 = vector.broadcast %88 : vector<1x128xf32> to vector<16x128xf32>
    %90 = arith.mulf %85, %89 : vector<16x128xf32>
    %c32 = arith.constant 32 : index
    %c0_36 = arith.constant 0 : index
    %91 = vector.load %arg3[%c32, %c0_36] : memref<152x128xf32, #tpu.memory_space<vmem>>, vector<1x128xf32>
    %92 = vector.broadcast %91 : vector<1x128xf32> to vector<16x128xf32>
    %93 = arith.mulf %90, %92 : vector<16x128xf32>
    %c40 = arith.constant 40 : index
    %c0_37 = arith.constant 0 : index
    %94 = vector.load %arg3[%c40, %c0_37] : memref<152x128xf32, #tpu.memory_space<vmem>>, vector<1x128xf32>
    %95 = vector.broadcast %94 : vector<1x128xf32> to vector<16x128xf32>
    %96 = arith.addf %93, %95 : vector<16x128xf32>
    %97 = arith.truncf %96 : vector<16x128xf32> to vector<16x128xbf16>
    %c256 = arith.constant 256 : index
    %c0_38 = arith.constant 0 : index
    %98 = vector.load %arg2[%c256, %c0_38] : memref<1408x128xbf16, #tpu.memory_space<vmem>>, vector<128x128xbf16>
    %cst_39 = arith.constant dense<0.000000e+00> : vector<16x128xf32>
    %99 = tpu.matmul %97, %98, %cst_39 {dimension_numbers = #tpu.dot_dimension_numbers<[1], [0], [0], [1], [0, 0, 1, 1], [], []>} : vector<16x128xbf16>, vector<128x128xbf16>, vector<16x128xf32> -> vector<16x128xf32>
    %cst_40 = arith.constant dense<0.000000e+00> : vector<16x128xf32>
    %100 = tpu.matmul %16, %99, %cst_40 {dimension_numbers = #tpu.dot_dimension_numbers<[1], [0], [0], [1], [0, 0, 1, 1], [], []>} : vector<16x16xf32>, vector<16x128xf32>, vector<16x128xf32> -> vector<16x128xf32>
    %cst_41 = arith.constant dense<0.000000e+00> : vector<16x128xf32>
    %101 = tpu.matmul %99, %13, %cst_41 {dimension_numbers = #tpu.dot_dimension_numbers<[1], [0], [0], [1], [0, 0, 1, 1], [], []>} : vector<16x128xf32>, vector<128x128xf32>, vector<16x128xf32> -> vector<16x128xf32>
    %102 = arith.addf %100, %101 : vector<16x128xf32>
    %c48 = arith.constant 48 : index
    %c0_42 = arith.constant 0 : index
    %103 = vector.load %arg3[%c48, %c0_42] : memref<152x128xf32, #tpu.memory_space<vmem>>, vector<1x128xf32>
    %104 = vector.broadcast %103 : vector<1x128xf32> to vector<16x128xf32>
    %105 = arith.addf %102, %104 : vector<16x128xf32>
    %cst_43 = arith.constant 0.000000e+00 : f32
    %106 = vector.broadcast %cst_43 : f32 to vector<16x128xf32>
    %107 = arith.select %2, %105, %106 : vector<16x128xi1>, vector<16x128xf32>
    %cst_44 = arith.constant 0.000000e+00 : f32
    %108 = vector.broadcast %cst_44 : f32 to vector<16x128xf32>
    %109 = arith.maximumf %107, %108 : vector<16x128xf32>
    %cst_45 = arith.constant dense<0.000000e+00> : vector<128xf32>
    %110 = vector.multi_reduction <add>, %109, %cst_45 [0] : vector<16x128xf32> to vector<128xf32>
    %111 = vector.shape_cast %110 : vector<128xf32> to vector<1x128xf32>
    %cst_46 = arith.constant 1.600000e+01 : f32
    %112 = vector.broadcast %cst_46 : f32 to vector<1x128xf32>
    %113 = arith.divf %111, %112 : vector<1x128xf32>
    %114 = vector.broadcast %113 : vector<1x128xf32> to vector<16x128xf32>
    %115 = arith.subf %109, %114 : vector<16x128xf32>
    %116 = vector.broadcast %113 : vector<1x128xf32> to vector<16x128xf32>
    %117 = arith.subf %109, %116 : vector<16x128xf32>
    %118 = arith.mulf %115, %117 : vector<16x128xf32>
    %cst_47 = arith.constant dense<0.000000e+00> : vector<128xf32>
    %119 = vector.multi_reduction <add>, %118, %cst_47 [0] : vector<16x128xf32> to vector<128xf32>
    %120 = vector.shape_cast %119 : vector<128xf32> to vector<1x128xf32>
    %cst_48 = arith.constant 1.600000e+01 : f32
    %121 = vector.broadcast %cst_48 : f32 to vector<1x128xf32>
    %122 = arith.divf %120, %121 : vector<1x128xf32>
    %123 = vector.broadcast %113 : vector<1x128xf32> to vector<16x128xf32>
    %124 = arith.subf %109, %123 : vector<16x128xf32>
    %cst_49 = arith.constant 9.99999974E-6 : f32
    %125 = vector.broadcast %cst_49 : f32 to vector<1x128xf32>
    %126 = arith.addf %122, %125 : vector<1x128xf32>
    %127 = math.rsqrt %126 : vector<1x128xf32>
    %128 = vector.broadcast %127 : vector<1x128xf32> to vector<16x128xf32>
    %129 = arith.mulf %124, %128 : vector<16x128xf32>
    %c56 = arith.constant 56 : index
    %c0_50 = arith.constant 0 : index
    %130 = vector.load %arg3[%c56, %c0_50] : memref<152x128xf32, #tpu.memory_space<vmem>>, vector<1x128xf32>
    %131 = vector.broadcast %130 : vector<1x128xf32> to vector<16x128xf32>
    %132 = arith.mulf %129, %131 : vector<16x128xf32>
    %c64 = arith.constant 64 : index
    %c0_51 = arith.constant 0 : index
    %133 = vector.load %arg3[%c64, %c0_51] : memref<152x128xf32, #tpu.memory_space<vmem>>, vector<1x128xf32>
    %134 = vector.broadcast %133 : vector<1x128xf32> to vector<16x128xf32>
    %135 = arith.addf %132, %134 : vector<16x128xf32>
    %cst_52 = arith.constant 1.000000e+00 : f32
    %136 = vector.broadcast %cst_52 : f32 to vector<16x1xf32>
    %cst_53 = arith.constant 1.000000e+00 : f32
    %137 = vector.broadcast %cst_53 : f32 to vector<1x16xf32>
    %138 = arith.truncf %135 : vector<16x128xf32> to vector<16x128xbf16>
    %c384 = arith.constant 384 : index
    %c0_54 = arith.constant 0 : index
    %139 = vector.load %arg2[%c384, %c0_54] : memref<1408x128xbf16, #tpu.memory_space<vmem>>, vector<128x128xbf16>
    %cst_55 = arith.constant dense<0.000000e+00> : vector<16x128xf32>
    %140 = tpu.matmul %138, %139, %cst_55 {dimension_numbers = #tpu.dot_dimension_numbers<[1], [0], [0], [1], [0, 0, 1, 1], [], []>} : vector<16x128xbf16>, vector<128x128xbf16>, vector<16x128xf32> -> vector<16x128xf32>
    %cst_56 = arith.constant dense<0.000000e+00> : vector<16x128xf32>
    %141 = tpu.matmul %16, %140, %cst_56 {dimension_numbers = #tpu.dot_dimension_numbers<[1], [0], [0], [1], [0, 0, 1, 1], [], []>} : vector<16x16xf32>, vector<16x128xf32>, vector<16x128xf32> -> vector<16x128xf32>
    %cst_57 = arith.constant dense<0.000000e+00> : vector<16x128xf32>
    %142 = tpu.matmul %140, %13, %cst_57 {dimension_numbers = #tpu.dot_dimension_numbers<[1], [0], [0], [1], [0, 0, 1, 1], [], []>} : vector<16x128xf32>, vector<128x128xf32>, vector<16x128xf32> -> vector<16x128xf32>
    %143 = arith.addf %141, %142 : vector<16x128xf32>
    %c72 = arith.constant 72 : index
    %c0_58 = arith.constant 0 : index
    %144 = vector.load %arg3[%c72, %c0_58] : memref<152x128xf32, #tpu.memory_space<vmem>>, vector<1x128xf32>
    %145 = vector.broadcast %144 : vector<1x128xf32> to vector<16x128xf32>
    %146 = arith.addf %143, %145 : vector<16x128xf32>
    %cst_59 = arith.constant 0.000000e+00 : f32
    %147 = vector.broadcast %cst_59 : f32 to vector<16x128xf32>
    %148 = arith.select %2, %146, %147 : vector<16x128xi1>, vector<16x128xf32>
    %cst_60 = arith.constant 0.000000e+00 : f32
    %149 = vector.broadcast %cst_60 : f32 to vector<16x128xf32>
    %150 = arith.maximumf %148, %149 : vector<16x128xf32>
    %c80 = arith.constant 80 : index
    %c0_61 = arith.constant 0 : index
    %151 = vector.load %arg3[%c80, %c0_61] : memref<152x128xf32, #tpu.memory_space<vmem>>, vector<1x128xf32>
    %152 = vector.broadcast %151 : vector<1x128xf32> to vector<16x128xf32>
    %153 = arith.mulf %150, %152 : vector<16x128xf32>
    %cst_62 = arith.constant dense<0.000000e+00> : vector<16xf32>
    %154 = vector.multi_reduction <add>, %153, %cst_62 [1] : vector<16x128xf32> to vector<16xf32>
    %155 = vector.shape_cast %154 : vector<16xf32> to vector<16x1xf32>
    %156 = math.tanh %155 : vector<16x1xf32>
    %cst_63 = arith.constant 0.000000e+00 : f32
    %157 = vector.shape_cast %155 : vector<16x1xf32> to vector<16x1xf32>
    %158 = vector.broadcast %157 : vector<16x1xf32> to vector<16x16xf32>
    %159 = vector.broadcast %cst_63 : f32 to vector<16x16xf32>
    %160 = arith.select %5, %158, %159 : vector<16x16xi1>, vector<16x16xf32>
    %cst_64 = arith.constant dense<0.000000e+00> : vector<16xf32>
    %161 = vector.multi_reduction <add>, %160, %cst_64 [0] : vector<16x16xf32> to vector<16xf32>
    %162 = vector.shape_cast %161 : vector<16xf32> to vector<1x16xf32>
    %163 = vector.broadcast %162 : vector<1x16xf32> to vector<16x16xf32>
    %164 = vector.broadcast %155 : vector<16x1xf32> to vector<16x16xf32>
    %165 = arith.cmpf ogt, %163, %164 : vector<16x16xf32>
    %166 = vector.broadcast %162 : vector<1x16xf32> to vector<16x16xf32>
    %167 = vector.broadcast %155 : vector<16x1xf32> to vector<16x16xf32>
    %168 = arith.cmpf oeq, %166, %167 : vector<16x16xf32>
    %169 = arith.cmpi slt, %4, %3 : vector<16x16xi32>
    %170 = arith.andi %168, %169 : vector<16x16xi1>
    %171 = arith.ori %165, %170 : vector<16x16xi1>
    %cst_65 = arith.constant 1.000000e+00 : f32
    %cst_66 = arith.constant 0.000000e+00 : f32
    %172 = vector.broadcast %cst_65 : f32 to vector<16x16xf32>
    %173 = vector.broadcast %cst_66 : f32 to vector<16x16xf32>
    %174 = arith.select %171, %172, %173 : vector<16x16xi1>, vector<16x16xf32>
    %175 = vector.broadcast %137 : vector<1x16xf32> to vector<16x16xf32>
    %176 = arith.mulf %175, %174 : vector<16x16xf32>
    %cst_67 = arith.constant dense<0.000000e+00> : vector<16xf32>
    %177 = vector.multi_reduction <add>, %176, %cst_67 [1] : vector<16x16xf32> to vector<16xf32>
    %178 = vector.shape_cast %177 : vector<16xf32> to vector<16x1xf32>
    %cst_68 = arith.constant 1.300000e+01 : f32
    %179 = vector.broadcast %cst_68 : f32 to vector<16x1xf32>
    %180 = arith.cmpf olt, %178, %179 : vector<16x1xf32>
    %cst_69 = arith.constant 1.000000e+00 : f32
    %cst_70 = arith.constant 0.000000e+00 : f32
    %181 = vector.broadcast %cst_69 : f32 to vector<16x1xf32>
    %182 = vector.broadcast %cst_70 : f32 to vector<16x1xf32>
    %183 = arith.select %180, %181, %182 : vector<16x1xi1>, vector<16x1xf32>
    %184 = arith.mulf %136, %183 : vector<16x1xf32>
    %cst_71 = arith.constant 0.000000e+00 : f32
    %185 = vector.shape_cast %184 : vector<16x1xf32> to vector<16x1xf32>
    %186 = vector.broadcast %185 : vector<16x1xf32> to vector<16x16xf32>
    %187 = vector.broadcast %cst_71 : f32 to vector<16x16xf32>
    %188 = arith.select %5, %186, %187 : vector<16x16xi1>, vector<16x16xf32>
    %cst_72 = arith.constant dense<0.000000e+00> : vector<16xf32>
    %189 = vector.multi_reduction <add>, %188, %cst_72 [0] : vector<16x16xf32> to vector<16xf32>
    %190 = vector.shape_cast %189 : vector<16xf32> to vector<1x16xf32>
    %191 = vector.broadcast %156 : vector<16x1xf32> to vector<16x128xf32>
    %192 = arith.mulf %150, %191 : vector<16x128xf32>
    %193 = vector.broadcast %184 : vector<16x1xf32> to vector<16x128xf32>
    %194 = arith.mulf %192, %193 : vector<16x128xf32>
    %cst_73 = arith.constant 0.000000e+00 : f32
    %195 = vector.broadcast %cst_73 : f32 to vector<16x1xf32>
    %196 = arith.cmpf ogt, %184, %195 : vector<16x1xf32>
    %cst_74 = arith.constant -1.000000e+30 : f32
    %197 = vector.shape_cast %196 : vector<16x1xi1> to vector<16x1xi1>
    %198 = vector.broadcast %197 : vector<16x1xi1> to vector<16x128xi1>
    %199 = vector.broadcast %cst_74 : f32 to vector<16x128xf32>
    %200 = arith.select %198, %194, %199 : vector<16x128xi1>, vector<16x128xf32>
    %cst_75 = arith.constant dense<0xFF800000> : vector<128xf32>
    %201 = vector.multi_reduction <maximumf>, %200, %cst_75 [0] : vector<16x128xf32> to vector<128xf32>
    %202 = vector.shape_cast %201 : vector<128xf32> to vector<1x128xf32>
    %203 = vector.broadcast %184 : vector<16x1xf32> to vector<16x128xf32>
    %204 = arith.mulf %194, %203 : vector<16x128xf32>
    %cst_76 = arith.constant dense<0.000000e+00> : vector<128xf32>
    %205 = vector.multi_reduction <add>, %204, %cst_76 [0] : vector<16x128xf32> to vector<128xf32>
    %206 = vector.shape_cast %205 : vector<128xf32> to vector<1x128xf32>
    %cst_77 = arith.constant 0.0769230798 : f32
    %207 = vector.broadcast %cst_77 : f32 to vector<1x128xf32>
    %208 = arith.mulf %206, %207 : vector<1x128xf32>
    %209 = arith.truncf %194 : vector<16x128xf32> to vector<16x128xbf16>
    %c512 = arith.constant 512 : index
    %c0_78 = arith.constant 0 : index
    %210 = vector.load %arg2[%c512, %c0_78] : memref<1408x128xbf16, #tpu.memory_space<vmem>>, vector<128x128xbf16>
    %cst_79 = arith.constant dense<0.000000e+00> : vector<16x128xf32>
    %211 = tpu.matmul %209, %210, %cst_79 {dimension_numbers = #tpu.dot_dimension_numbers<[1], [0], [0], [1], [0, 0, 1, 1], [], []>} : vector<16x128xbf16>, vector<128x128xbf16>, vector<16x128xf32> -> vector<16x128xf32>
    %cst_80 = arith.constant dense<0.000000e+00> : vector<16x128xf32>
    %212 = tpu.matmul %18, %211, %cst_80 {dimension_numbers = #tpu.dot_dimension_numbers<[1], [0], [0], [1], [0, 0, 1, 1], [], []>} : vector<16x16xf32>, vector<16x128xf32>, vector<16x128xf32> -> vector<16x128xf32>
    %cst_81 = arith.constant dense<0.000000e+00> : vector<16x128xf32>
    %213 = tpu.matmul %211, %13, %cst_81 {dimension_numbers = #tpu.dot_dimension_numbers<[1], [0], [0], [1], [0, 0, 1, 1], [], []>} : vector<16x128xf32>, vector<128x128xf32>, vector<16x128xf32> -> vector<16x128xf32>
    %214 = arith.addf %212, %213 : vector<16x128xf32>
    %c88 = arith.constant 88 : index
    %c0_82 = arith.constant 0 : index
    %215 = vector.load %arg3[%c88, %c0_82] : memref<152x128xf32, #tpu.memory_space<vmem>>, vector<1x128xf32>
    %216 = vector.broadcast %215 : vector<1x128xf32> to vector<16x128xf32>
    %217 = arith.addf %214, %216 : vector<16x128xf32>
    %cst_83 = arith.constant 0.000000e+00 : f32
    %218 = vector.broadcast %cst_83 : f32 to vector<16x128xf32>
    %219 = arith.select %2, %217, %218 : vector<16x128xi1>, vector<16x128xf32>
    %cst_84 = arith.constant 0.000000e+00 : f32
    %220 = vector.broadcast %cst_84 : f32 to vector<16x128xf32>
    %221 = arith.maximumf %219, %220 : vector<16x128xf32>
    %c96 = arith.constant 96 : index
    %c0_85 = arith.constant 0 : index
    %222 = vector.load %arg3[%c96, %c0_85] : memref<152x128xf32, #tpu.memory_space<vmem>>, vector<1x128xf32>
    %223 = vector.broadcast %222 : vector<1x128xf32> to vector<16x128xf32>
    %224 = arith.mulf %221, %223 : vector<16x128xf32>
    %cst_86 = arith.constant dense<0.000000e+00> : vector<16xf32>
    %225 = vector.multi_reduction <add>, %224, %cst_86 [1] : vector<16x128xf32> to vector<16xf32>
    %226 = vector.shape_cast %225 : vector<16xf32> to vector<16x1xf32>
    %227 = math.tanh %226 : vector<16x1xf32>
    %cst_87 = arith.constant 0.000000e+00 : f32
    %228 = vector.shape_cast %226 : vector<16x1xf32> to vector<16x1xf32>
    %229 = vector.broadcast %228 : vector<16x1xf32> to vector<16x16xf32>
    %230 = vector.broadcast %cst_87 : f32 to vector<16x16xf32>
    %231 = arith.select %5, %229, %230 : vector<16x16xi1>, vector<16x16xf32>
    %cst_88 = arith.constant dense<0.000000e+00> : vector<16xf32>
    %232 = vector.multi_reduction <add>, %231, %cst_88 [0] : vector<16x16xf32> to vector<16xf32>
    %233 = vector.shape_cast %232 : vector<16xf32> to vector<1x16xf32>
    %234 = vector.broadcast %233 : vector<1x16xf32> to vector<16x16xf32>
    %235 = vector.broadcast %226 : vector<16x1xf32> to vector<16x16xf32>
    %236 = arith.cmpf ogt, %234, %235 : vector<16x16xf32>
    %237 = vector.broadcast %233 : vector<1x16xf32> to vector<16x16xf32>
    %238 = vector.broadcast %226 : vector<16x1xf32> to vector<16x16xf32>
    %239 = arith.cmpf oeq, %237, %238 : vector<16x16xf32>
    %240 = arith.cmpi slt, %4, %3 : vector<16x16xi32>
    %241 = arith.andi %239, %240 : vector<16x16xi1>
    %242 = arith.ori %236, %241 : vector<16x16xi1>
    %cst_89 = arith.constant 1.000000e+00 : f32
    %cst_90 = arith.constant 0.000000e+00 : f32
    %243 = vector.broadcast %cst_89 : f32 to vector<16x16xf32>
    %244 = vector.broadcast %cst_90 : f32 to vector<16x16xf32>
    %245 = arith.select %242, %243, %244 : vector<16x16xi1>, vector<16x16xf32>
    %246 = vector.broadcast %190 : vector<1x16xf32> to vector<16x16xf32>
    %247 = arith.mulf %246, %245 : vector<16x16xf32>
    %cst_91 = arith.constant dense<0.000000e+00> : vector<16xf32>
    %248 = vector.multi_reduction <add>, %247, %cst_91 [1] : vector<16x16xf32> to vector<16xf32>
    %249 = vector.shape_cast %248 : vector<16xf32> to vector<16x1xf32>
    %cst_92 = arith.constant 1.100000e+01 : f32
    %250 = vector.broadcast %cst_92 : f32 to vector<16x1xf32>
    %251 = arith.cmpf olt, %249, %250 : vector<16x1xf32>
    %cst_93 = arith.constant 1.000000e+00 : f32
    %cst_94 = arith.constant 0.000000e+00 : f32
    %252 = vector.broadcast %cst_93 : f32 to vector<16x1xf32>
    %253 = vector.broadcast %cst_94 : f32 to vector<16x1xf32>
    %254 = arith.select %251, %252, %253 : vector<16x1xi1>, vector<16x1xf32>
    %255 = arith.mulf %184, %254 : vector<16x1xf32>
    %cst_95 = arith.constant 0.000000e+00 : f32
    %256 = vector.shape_cast %255 : vector<16x1xf32> to vector<16x1xf32>
    %257 = vector.broadcast %256 : vector<16x1xf32> to vector<16x16xf32>
    %258 = vector.broadcast %cst_95 : f32 to vector<16x16xf32>
    %259 = arith.select %5, %257, %258 : vector<16x16xi1>, vector<16x16xf32>
    %cst_96 = arith.constant dense<0.000000e+00> : vector<16xf32>
    %260 = vector.multi_reduction <add>, %259, %cst_96 [0] : vector<16x16xf32> to vector<16xf32>
    %261 = vector.shape_cast %260 : vector<16xf32> to vector<1x16xf32>
    %262 = vector.broadcast %227 : vector<16x1xf32> to vector<16x128xf32>
    %263 = arith.mulf %221, %262 : vector<16x128xf32>
    %264 = vector.broadcast %255 : vector<16x1xf32> to vector<16x128xf32>
    %265 = arith.mulf %263, %264 : vector<16x128xf32>
    %cst_97 = arith.constant 0.000000e+00 : f32
    %266 = vector.broadcast %cst_97 : f32 to vector<16x1xf32>
    %267 = arith.cmpf ogt, %255, %266 : vector<16x1xf32>
    %cst_98 = arith.constant -1.000000e+30 : f32
    %268 = vector.shape_cast %267 : vector<16x1xi1> to vector<16x1xi1>
    %269 = vector.broadcast %268 : vector<16x1xi1> to vector<16x128xi1>
    %270 = vector.broadcast %cst_98 : f32 to vector<16x128xf32>
    %271 = arith.select %269, %265, %270 : vector<16x128xi1>, vector<16x128xf32>
    %cst_99 = arith.constant dense<0xFF800000> : vector<128xf32>
    %272 = vector.multi_reduction <maximumf>, %271, %cst_99 [0] : vector<16x128xf32> to vector<128xf32>
    %273 = vector.shape_cast %272 : vector<128xf32> to vector<1x128xf32>
    %274 = vector.broadcast %255 : vector<16x1xf32> to vector<16x128xf32>
    %275 = arith.mulf %265, %274 : vector<16x128xf32>
    %cst_100 = arith.constant dense<0.000000e+00> : vector<128xf32>
    %276 = vector.multi_reduction <add>, %275, %cst_100 [0] : vector<16x128xf32> to vector<128xf32>
    %277 = vector.shape_cast %276 : vector<128xf32> to vector<1x128xf32>
    %cst_101 = arith.constant 0.0909090936 : f32
    %278 = vector.broadcast %cst_101 : f32 to vector<1x128xf32>
    %279 = arith.mulf %277, %278 : vector<1x128xf32>
    %280 = arith.truncf %265 : vector<16x128xf32> to vector<16x128xbf16>
    %c640 = arith.constant 640 : index
    %c0_102 = arith.constant 0 : index
    %281 = vector.load %arg2[%c640, %c0_102] : memref<1408x128xbf16, #tpu.memory_space<vmem>>, vector<128x128xbf16>
    %cst_103 = arith.constant dense<0.000000e+00> : vector<16x128xf32>
    %282 = tpu.matmul %280, %281, %cst_103 {dimension_numbers = #tpu.dot_dimension_numbers<[1], [0], [0], [1], [0, 0, 1, 1], [], []>} : vector<16x128xbf16>, vector<128x128xbf16>, vector<16x128xf32> -> vector<16x128xf32>
    %cst_104 = arith.constant dense<0.000000e+00> : vector<16x128xf32>
    %283 = tpu.matmul %18, %282, %cst_104 {dimension_numbers = #tpu.dot_dimension_numbers<[1], [0], [0], [1], [0, 0, 1, 1], [], []>} : vector<16x16xf32>, vector<16x128xf32>, vector<16x128xf32> -> vector<16x128xf32>
    %cst_105 = arith.constant dense<0.000000e+00> : vector<16x128xf32>
    %284 = tpu.matmul %282, %13, %cst_105 {dimension_numbers = #tpu.dot_dimension_numbers<[1], [0], [0], [1], [0, 0, 1, 1], [], []>} : vector<16x128xf32>, vector<128x128xf32>, vector<16x128xf32> -> vector<16x128xf32>
    %285 = arith.addf %283, %284 : vector<16x128xf32>
    %c104 = arith.constant 104 : index
    %c0_106 = arith.constant 0 : index
    %286 = vector.load %arg3[%c104, %c0_106] : memref<152x128xf32, #tpu.memory_space<vmem>>, vector<1x128xf32>
    %287 = vector.broadcast %286 : vector<1x128xf32> to vector<16x128xf32>
    %288 = arith.addf %285, %287 : vector<16x128xf32>
    %cst_107 = arith.constant 0.000000e+00 : f32
    %289 = vector.broadcast %cst_107 : f32 to vector<16x128xf32>
    %290 = arith.select %2, %288, %289 : vector<16x128xi1>, vector<16x128xf32>
    %cst_108 = arith.constant 0.000000e+00 : f32
    %291 = vector.broadcast %cst_108 : f32 to vector<16x128xf32>
    %292 = arith.maximumf %290, %291 : vector<16x128xf32>
    %c112 = arith.constant 112 : index
    %c0_109 = arith.constant 0 : index
    %293 = vector.load %arg3[%c112, %c0_109] : memref<152x128xf32, #tpu.memory_space<vmem>>, vector<1x128xf32>
    %294 = vector.broadcast %293 : vector<1x128xf32> to vector<16x128xf32>
    %295 = arith.mulf %292, %294 : vector<16x128xf32>
    %cst_110 = arith.constant dense<0.000000e+00> : vector<16xf32>
    %296 = vector.multi_reduction <add>, %295, %cst_110 [1] : vector<16x128xf32> to vector<16xf32>
    %297 = vector.shape_cast %296 : vector<16xf32> to vector<16x1xf32>
    %298 = math.tanh %297 : vector<16x1xf32>
    %cst_111 = arith.constant 0.000000e+00 : f32
    %299 = vector.shape_cast %297 : vector<16x1xf32> to vector<16x1xf32>
    %300 = vector.broadcast %299 : vector<16x1xf32> to vector<16x16xf32>
    %301 = vector.broadcast %cst_111 : f32 to vector<16x16xf32>
    %302 = arith.select %5, %300, %301 : vector<16x16xi1>, vector<16x16xf32>
    %cst_112 = arith.constant dense<0.000000e+00> : vector<16xf32>
    %303 = vector.multi_reduction <add>, %302, %cst_112 [0] : vector<16x16xf32> to vector<16xf32>
    %304 = vector.shape_cast %303 : vector<16xf32> to vector<1x16xf32>
    %305 = vector.broadcast %304 : vector<1x16xf32> to vector<16x16xf32>
    %306 = vector.broadcast %297 : vector<16x1xf32> to vector<16x16xf32>
    %307 = arith.cmpf ogt, %305, %306 : vector<16x16xf32>
    %308 = vector.broadcast %304 : vector<1x16xf32> to vector<16x16xf32>
    %309 = vector.broadcast %297 : vector<16x1xf32> to vector<16x16xf32>
    %310 = arith.cmpf oeq, %308, %309 : vector<16x16xf32>
    %311 = arith.cmpi slt, %4, %3 : vector<16x16xi32>
    %312 = arith.andi %310, %311 : vector<16x16xi1>
    %313 = arith.ori %307, %312 : vector<16x16xi1>
    %cst_113 = arith.constant 1.000000e+00 : f32
    %cst_114 = arith.constant 0.000000e+00 : f32
    %314 = vector.broadcast %cst_113 : f32 to vector<16x16xf32>
    %315 = vector.broadcast %cst_114 : f32 to vector<16x16xf32>
    %316 = arith.select %313, %314, %315 : vector<16x16xi1>, vector<16x16xf32>
    %317 = vector.broadcast %261 : vector<1x16xf32> to vector<16x16xf32>
    %318 = arith.mulf %317, %316 : vector<16x16xf32>
    %cst_115 = arith.constant dense<0.000000e+00> : vector<16xf32>
    %319 = vector.multi_reduction <add>, %318, %cst_115 [1] : vector<16x16xf32> to vector<16xf32>
    %320 = vector.shape_cast %319 : vector<16xf32> to vector<16x1xf32>
    %cst_116 = arith.constant 9.000000e+00 : f32
    %321 = vector.broadcast %cst_116 : f32 to vector<16x1xf32>
    %322 = arith.cmpf olt, %320, %321 : vector<16x1xf32>
    %cst_117 = arith.constant 1.000000e+00 : f32
    %cst_118 = arith.constant 0.000000e+00 : f32
    %323 = vector.broadcast %cst_117 : f32 to vector<16x1xf32>
    %324 = vector.broadcast %cst_118 : f32 to vector<16x1xf32>
    %325 = arith.select %322, %323, %324 : vector<16x1xi1>, vector<16x1xf32>
    %326 = arith.mulf %255, %325 : vector<16x1xf32>
    %327 = vector.broadcast %298 : vector<16x1xf32> to vector<16x128xf32>
    %328 = arith.mulf %292, %327 : vector<16x128xf32>
    %329 = vector.broadcast %326 : vector<16x1xf32> to vector<16x128xf32>
    %330 = arith.mulf %328, %329 : vector<16x128xf32>
    %cst_119 = arith.constant 0.000000e+00 : f32
    %331 = vector.broadcast %cst_119 : f32 to vector<16x1xf32>
    %332 = arith.cmpf ogt, %326, %331 : vector<16x1xf32>
    %cst_120 = arith.constant -1.000000e+30 : f32
    %333 = vector.shape_cast %332 : vector<16x1xi1> to vector<16x1xi1>
    %334 = vector.broadcast %333 : vector<16x1xi1> to vector<16x128xi1>
    %335 = vector.broadcast %cst_120 : f32 to vector<16x128xf32>
    %336 = arith.select %334, %330, %335 : vector<16x128xi1>, vector<16x128xf32>
    %cst_121 = arith.constant dense<0xFF800000> : vector<128xf32>
    %337 = vector.multi_reduction <maximumf>, %336, %cst_121 [0] : vector<16x128xf32> to vector<128xf32>
    %338 = vector.shape_cast %337 : vector<128xf32> to vector<1x128xf32>
    %339 = vector.broadcast %326 : vector<16x1xf32> to vector<16x128xf32>
    %340 = arith.mulf %330, %339 : vector<16x128xf32>
    %cst_122 = arith.constant dense<0.000000e+00> : vector<128xf32>
    %341 = vector.multi_reduction <add>, %340, %cst_122 [0] : vector<16x128xf32> to vector<128xf32>
    %342 = vector.shape_cast %341 : vector<128xf32> to vector<1x128xf32>
    %cst_123 = arith.constant 0.111111112 : f32
    %343 = vector.broadcast %cst_123 : f32 to vector<1x128xf32>
    %344 = arith.mulf %342, %343 : vector<1x128xf32>
    %345 = arith.addf %202, %273 : vector<1x128xf32>
    %346 = arith.addf %345, %338 : vector<1x128xf32>
    %347 = arith.addf %208, %279 : vector<1x128xf32>
    %348 = arith.addf %347, %344 : vector<1x128xf32>
    %349 = arith.truncf %346 : vector<1x128xf32> to vector<1x128xbf16>
    %c768 = arith.constant 768 : index
    %c0_124 = arith.constant 0 : index
    %350 = vector.load %arg2[%c768, %c0_124] : memref<1408x128xbf16, #tpu.memory_space<vmem>>, vector<128x128xbf16>
    %cst_125 = arith.constant dense<0.000000e+00> : vector<1x128xf32>
    %351 = tpu.matmul %349, %350, %cst_125 {dimension_numbers = #tpu.dot_dimension_numbers<[1], [0], [0], [1], [0, 0, 1, 1], [], []>} : vector<1x128xbf16>, vector<128x128xbf16>, vector<1x128xf32> -> vector<1x128xf32>
    %352 = arith.truncf %348 : vector<1x128xf32> to vector<1x128xbf16>
    %c896 = arith.constant 896 : index
    %c0_126 = arith.constant 0 : index
    %353 = vector.load %arg2[%c896, %c0_126] : memref<1408x128xbf16, #tpu.memory_space<vmem>>, vector<128x128xbf16>
    %cst_127 = arith.constant dense<0.000000e+00> : vector<1x128xf32>
    %354 = tpu.matmul %352, %353, %cst_127 {dimension_numbers = #tpu.dot_dimension_numbers<[1], [0], [0], [1], [0, 0, 1, 1], [], []>} : vector<1x128xbf16>, vector<128x128xbf16>, vector<1x128xf32> -> vector<1x128xf32>
    %355 = arith.addf %351, %354 : vector<1x128xf32>
    %c120 = arith.constant 120 : index
    %c0_128 = arith.constant 0 : index
    %356 = vector.load %arg3[%c120, %c0_128] : memref<152x128xf32, #tpu.memory_space<vmem>>, vector<1x128xf32>
    %357 = arith.addf %355, %356 : vector<1x128xf32>
    %cst_129 = arith.constant 0.000000e+00 : f32
    %358 = vector.broadcast %cst_129 : f32 to vector<1x128xf32>
    %359 = arith.maximumf %357, %358 : vector<1x128xf32>
    %360 = arith.truncf %359 : vector<1x128xf32> to vector<1x128xbf16>
    %c1024 = arith.constant 1024 : index
    %c0_130 = arith.constant 0 : index
    %361 = vector.load %arg2[%c1024, %c0_130] : memref<1408x128xbf16, #tpu.memory_space<vmem>>, vector<128x128xbf16>
    %cst_131 = arith.constant dense<0.000000e+00> : vector<1x128xf32>
    %362 = tpu.matmul %360, %361, %cst_131 {dimension_numbers = #tpu.dot_dimension_numbers<[1], [0], [0], [1], [0, 0, 1, 1], [], []>} : vector<1x128xbf16>, vector<128x128xbf16>, vector<1x128xf32> -> vector<1x128xf32>
    %c128_132 = arith.constant 128 : index
    %c0_133 = arith.constant 0 : index
    %363 = vector.load %arg3[%c128_132, %c0_133] : memref<152x128xf32, #tpu.memory_space<vmem>>, vector<1x128xf32>
    %364 = arith.addf %362, %363 : vector<1x128xf32>
    %cst_134 = arith.constant 0.000000e+00 : f32
    %365 = vector.broadcast %cst_134 : f32 to vector<1x128xf32>
    %366 = arith.maximumf %364, %365 : vector<1x128xf32>
    %367 = arith.truncf %366 : vector<1x128xf32> to vector<1x128xbf16>
    %c1152 = arith.constant 1152 : index
    %c0_135 = arith.constant 0 : index
    %368 = vector.load %arg2[%c1152, %c0_135] : memref<1408x128xbf16, #tpu.memory_space<vmem>>, vector<128x128xbf16>
    %cst_136 = arith.constant dense<0.000000e+00> : vector<1x128xf32>
    %369 = tpu.matmul %367, %368, %cst_136 {dimension_numbers = #tpu.dot_dimension_numbers<[1], [0], [0], [1], [0, 0, 1, 1], [], []>} : vector<1x128xbf16>, vector<128x128xbf16>, vector<1x128xf32> -> vector<1x128xf32>
    %c136 = arith.constant 136 : index
    %c0_137 = arith.constant 0 : index
    %370 = vector.load %arg3[%c136, %c0_137] : memref<152x128xf32, #tpu.memory_space<vmem>>, vector<1x128xf32>
    %371 = arith.addf %369, %370 : vector<1x128xf32>
    %cst_138 = arith.constant 0.000000e+00 : f32
    %372 = vector.broadcast %cst_138 : f32 to vector<1x128xf32>
    %373 = arith.maximumf %371, %372 : vector<1x128xf32>
    %374 = arith.truncf %373 : vector<1x128xf32> to vector<1x128xbf16>
    %c1280 = arith.constant 1280 : index
    %c0_139 = arith.constant 0 : index
    %375 = vector.load %arg2[%c1280, %c0_139] : memref<1408x128xbf16, #tpu.memory_space<vmem>>, vector<128x128xbf16>
    %cst_140 = arith.constant dense<0.000000e+00> : vector<1x128xf32>
    %376 = tpu.matmul %374, %375, %cst_140 {dimension_numbers = #tpu.dot_dimension_numbers<[1], [0], [0], [1], [0, 0, 1, 1], [], []>} : vector<1x128xbf16>, vector<128x128xbf16>, vector<1x128xf32> -> vector<1x128xf32>
    %c144 = arith.constant 144 : index
    %c0_141 = arith.constant 0 : index
    %377 = vector.load %arg3[%c144, %c0_141] : memref<152x128xf32, #tpu.memory_space<vmem>>, vector<1x128xf32>
    %378 = arith.addf %376, %377 : vector<1x128xf32>
    %cst_142 = arith.constant dense<0xFF800000> : vector<1xf32>
    %379 = vector.multi_reduction <maximumf>, %378, %cst_142 [1] : vector<1x128xf32> to vector<1xf32>
    %380 = vector.shape_cast %379 : vector<1xf32> to vector<1x1xf32>
    %381 = vector.broadcast %380 : vector<1x1xf32> to vector<1x128xf32>
    %382 = arith.subf %378, %381 : vector<1x128xf32>
    %383 = math.exp %382 : vector<1x128xf32>
    %cst_143 = arith.constant dense<0.000000e+00> : vector<1xf32>
    %384 = vector.multi_reduction <add>, %383, %cst_143 [1] : vector<1x128xf32> to vector<1xf32>
    %385 = vector.shape_cast %384 : vector<1xf32> to vector<1x1xf32>
    %386 = math.log %385 : vector<1x1xf32>
    %387 = vector.broadcast %386 : vector<1x1xf32> to vector<1x128xf32>
    %388 = arith.subf %382, %387 : vector<1x128xf32>
    %c0_144 = arith.constant 0 : index
    %c0_145 = arith.constant 0 : index
    %389 = vector.load %arg4[%c0_144, %c0_145] : memref<1x128xf32, #tpu.memory_space<vmem>>, vector<1x128xf32>
    tpu.vector_store %arg4[%c0_144, %c0_145], %388 {strides = array<i32>} : memref<1x128xf32, #tpu.memory_space<vmem>>, vector<1x128xf32>,
    return
  }
}

</mosaic_0001>

<llo_original>
// kernel: net_forward.1
$region0: #{net_forward.1}
  #allocation0 [shape = 'u32[]', space=smem, size = 0x4, offset = 0x4, fixed_abs, tag = 'smem constant byte address 0x4 - core index']
  #allocation1 [shape = 'u32[144,128]{1,0:T(1,128)}', space=vmem, size = 0x12000, scoped, tag = 'internal scratch']
  %s0 = inlined_call_operand.vmem [shape: f32[16,128], index: 0, kind: input, shape index: {}]
  %s1 = inlined_call_operand.vmem [shape: f32[2,16,16], index: 1, kind: input, shape index: {}]
  %s2 = inlined_call_operand.vmem [shape: bf16[1408,128], index: 2, kind: input, shape index: {}]
  %s3 = inlined_call_operand.hbm [shape: f32[152,128], index: 3, kind: input, shape index: {}]
  %s4 = inlined_call_operand.hbm [shape: f32[1,128], index: 4, kind: output, shape index: {}]
  %s5 = sld [smem:[#allocation0]]
  $region30: #{net_forward.1} parent=0
    _
  %s7 = ssub.s32 1, %s5
  %s8 = scalar_select 0, %s7, %s5
  $region1: #{net_forward.1} parent=0
    #allocation2 [shape = 'u8[77824]{0}', space=vmem, size = 0x13000, scoped, tag = 'input window, operand 3, single buffered']
    #allocation3 [shape = 's32[1]{0}', space=sflag, size = 0x4, scoped, tag = 'scoped memory for net_forward.1']
    #allocation4 [shape = 's32[1]{0}', space=sflag, size = 0x4, scoped, tag = 'scoped memory for net_forward.1']
    #allocation5 [shape = 'u8[512]{0}', space=vmem, size = 0x400, scoped, tag = 'output window, operand 0, single buffered']
    %9 = vsyncpa [#allocation3], 0
    %10 = vsyncpa [#allocation4], 0
    // Predicated region
    $region2: #{net_forward.1} parent=1 // pred_check
      _
    $region3: #{net_forward.1} parent=1 // pred_check_branch
      %12 = sbr.rel (0) target = $region5
    $region4: #{net_forward.1} parent=1 // pred_region
      _
    $region5: #{net_forward.1} parent=1 // pred_fallthru
      _
    // Predicated region
    $region6: #{net_forward.1} parent=1 // pred_check
      _
    $region7: #{net_forward.1} parent=1 // pred_check_branch
      %14 = sbr.rel (0) target = $region9
    $region8: #{net_forward.1} parent=1 // pred_region
      _
    $region9: #{net_forward.1} parent=1 // pred_fallthru
      _
    // Predicated region
    $region10: #{net_forward.1} parent=1 // pred_check
      _
    $region11: #{net_forward.1} parent=1 // pred_check_branch
      %16 = sbr.rel (0) target = $region13
    $region12: #{net_forward.1} parent=1 // pred_region
      _
    $region13: #{net_forward.1} parent=1 // pred_fallthru
      _
    // Predicated region
    $region14: #{net_forward.1} parent=1 // pred_check
      _
    $region15: #{net_forward.1} parent=1 // pred_check_branch
      %18 = sbr.rel (0) target = $region17
    $region16: #{net_forward.1} parent=1 // pred_region
      %s20 = ssub.s32 2432, 2432
      %21 = vsyncadd [#allocation3], %s20
      %s22 = sshll.u32 [#allocation2], 4
      %s23 = int_to_ptr.vmem [resolvable:$true] %s22
      %28 = dma.hbm_to_vmem [thread:$0]  %s3, 2432, %s23, [#allocation3], 128, 128, 8
    $region17: #{net_forward.1} parent=1 // pred_fallthru
      _
    // Predicated region
    $region18: #{net_forward.1} parent=1 // pred_check
      _
    $region19: #{net_forward.1} parent=1 // pred_check_branch
      %30 = sbr.rel (0) target = $region21
    $region20: #{net_forward.1} parent=1 // pred_region
      %31 = dma.done [#allocation3], 2432
    $region21: #{net_forward.1} parent=1 // pred_fallthru
      _
    %v33 = vlaneseq
    %v34 = vand.u32 %v33, 127
    %vm35 = vcmp.lt.s32.totalorder %v34, 64
    %v36 = vlaneseq
    %v37 = vshrl.u32 %v36, 7
    %v38 = vadd.s32 %v37, 8
    %vm39 = vcmp.eq.s32.totalorder %v37, %v34
    %vm40 = vcmp.eq.s32.totalorder %v38, %v34
    %v41 = vadd.s32 %v37, 16
    %v42 = vadd.s32 %v37, 24
    %v43 = vadd.s32 %v37, 32
    %v44 = vadd.s32 %v37, 40
    %v45 = vadd.s32 %v37, 48
    %v46 = vadd.s32 %v37, 56
    %v47 = vadd.s32 %v37, 64
    %v48 = vadd.s32 %v37, 72
    %v49 = vadd.s32 %v37, 80
    %v50 = vadd.s32 %v37, 88
    %v51 = vadd.s32 %v37, 96
    %v52 = vadd.s32 %v37, 104
    %v53 = vadd.s32 %v37, 112
    %v54 = vadd.s32 %v37, 120
    %v55 = vadd.s32 %v34, 64
    %vm56 = vcmp.eq.s32.totalorder %v37, %v55
    %vm57 = vcmp.eq.s32.totalorder %v38, %v55
    %vm58 = vcmp.eq.s32.totalorder %v41, %v55
    %vm59 = vcmp.eq.s32.totalorder %v42, %v55
    %vm60 = vcmp.eq.s32.totalorder %v43, %v55
    %vm61 = vcmp.eq.s32.totalorder %v44, %v55
    %vm62 = vcmp.eq.s32.totalorder %v45, %v55
    %vm63 = vcmp.eq.s32.totalorder %v46, %v55
    %vm64 = vcmp.eq.s32.totalorder %v47, %v55
    %vm65 = vcmp.eq.s32.totalorder %v48, %v55
    %vm66 = vcmp.eq.s32.totalorder %v49, %v55
    %vm67 = vcmp.eq.s32.totalorder %v50, %v55
    %vm68 = vcmp.eq.s32.totalorder %v51, %v55
    %vm69 = vcmp.eq.s32.totalorder %v52, %v55
    %vm70 = vcmp.eq.s32.totalorder %v53, %v55
    %vm71 = vcmp.eq.s32.totalorder %v54, %v55
    %v72 = vsel %vm56, 1.0, 0.0
    %v73 = vsel %vm57, 1.0, 0.0
    %v74 = vsel %vm58, 1.0, 0.0
    %v75 = vsel %vm59, 1.0, 0.0
    %v76 = vsel %vm60, 1.0, 0.0
    %v77 = vsel %vm61, 1.0, 0.0
    %v78 = vsel %vm62, 1.0, 0.0
    %v79 = vsel %vm63, 1.0, 0.0
    %v80 = vsel %vm64, 1.0, 0.0
    %v81 = vsel %vm65, 1.0, 0.0
    %v82 = vsel %vm66, 1.0, 0.0
    %v83 = vsel %vm67, 1.0, 0.0
    %v84 = vsel %vm68, 1.0, 0.0
    %v85 = vsel %vm69, 1.0, 0.0
    %v86 = vsel %vm70, 1.0, 0.0
    %v87 = vsel %vm71, 1.0, 0.0
    %v88 = vld [vmem:[%s0] sm:$0xff]
    %v89 = vld [vmem:[%s0 + $0x8] sm:$0xff]
    %v90 = vld [vmem:[%s1] sm:$0xff]
    %v91 = vld [vmem:[%s1 + $0x8] sm:$0xff]
    %s92 = scalar_lea.vmem %s1, 16
    %v93 = vld [vmem:[%s92] sm:$0xff]
    %v94 = vld [vmem:[%s92 + $0x8] sm:$0xff]
    %v95 = vpack.c.bf16 %v89, %v88
    %v96 = vld [vmem:[%s2] sm:$0xf]
    %v97 = vld [vmem:[%s2 + $0x4] sm:$0xf]
    %v98 = vld [vmem:[%s2 + $0x8] sm:$0xf]
    %v99 = vld [vmem:[%s2 + $0xc] sm:$0xf]
    %v100 = vld [vmem:[%s2 + $0x10] sm:$0xf]
    %v101 = vld [vmem:[%s2 + $0x14] sm:$0xf]
    %v102 = vld [vmem:[%s2 + $0x18] sm:$0xf]
    %v103 = vld [vmem:[%s2 + $0x1c] sm:$0xf]
    %v104 = vld [vmem:[%s2 + $0x20] sm:$0xf]
    %v105 = vld [vmem:[%s2 + $0x24] sm:$0xf]
    %v106 = vld [vmem:[%s2 + $0x28] sm:$0xf]
    %v107 = vld [vmem:[%s2 + $0x2c] sm:$0xf]
    %v108 = vld [vmem:[%s2 + $0x30] sm:$0xf]
    %v109 = vld [vmem:[%s2 + $0x34] sm:$0xf]
    %v110 = vld [vmem:[%s2 + $0x38] sm:$0xf]
    %v111 = vld [vmem:[%s2 + $0x3c] sm:$0xf]
    %v128 = vunpack.c.l.b16 %v96
    %v129 = vunpack.c.l.b16 %v97
    %v130 = vunpack.c.l.b16 %v98
    %v131 = vunpack.c.l.b16 %v99
    %v132 = vunpack.c.l.b16 %v100
    %v133 = vunpack.c.l.b16 %v101
    %v134 = vunpack.c.l.b16 %v102
    %v135 = vunpack.c.l.b16 %v103
    %v136 = vunpack.c.l.b16 %v104
    %v137 = vunpack.c.l.b16 %v105
    %v138 = vunpack.c.l.b16 %v106
    %v139 = vunpack.c.l.b16 %v107
    %v140 = vunpack.c.l.b16 %v108
    %v141 = vunpack.c.l.b16 %v109
    %v142 = vunpack.c.l.b16 %v110
    %v143 = vunpack.c.l.b16 %v111
    %v144 = vpack.c.b16 %v129, %v128
    %v145 = vpack.c.b16 %v131, %v130
    %v146 = vpack.c.b16 %v133, %v132
    %v147 = vpack.c.b16 %v135, %v134
    %v148 = vpack.c.b16 %v137, %v136
    %v149 = vpack.c.b16 %v139, %v138
    %v150 = vpack.c.b16 %v141, %v140
    %v151 = vpack.c.b16 %v143, %v142
    %160 = vmatprep.subr.bf16.mxu0 0
    %161 = vmatpush1.bf16.msra.mxu0 %v151
    %162 = vmatprep.subr.bf16.mxu0 0
    %163 = vmatpush1.bf16.msra.mxu0 %v150
    %164 = vmatprep.subr.bf16.mxu0 0
    %165 = vmatpush1.bf16.msra.mxu0 %v149
    %166 = vmatprep.subr.bf16.mxu0 0
    %167 = vmatpush1.bf16.msra.mxu0 %v148
    %168 = vmatprep.subr.bf16.mxu0 0
    %169 = vmatpush1.bf16.msra.mxu0 %v147
    %170 = vmatprep.subr.bf16.mxu0 0
    %171 = vmatpush1.bf16.msra.mxu0 %v146
    %172 = vmatprep.subr.bf16.mxu0 0
    %173 = vmatpush1.bf16.msra.mxu0 %v145
    %174 = vmatprep.subr.bf16.mxu0 0
    %175 = vmatpush1.bf16.msra.mxu0 %v144
    %176 = vmatprep.subr.bf16.mxu0 0
    %177 = vmatpush2.bf16.msra.mxu0 0
    %178 = vmatprep.subr.bf16.mxu0 0
    %179 = vmatpush2.bf16.msra.mxu0 0
    %180 = vmatprep.subr.bf16.mxu0 0
    %181 = vmatpush2.bf16.msra.mxu0 0
    %182 = vmatprep.subr.bf16.mxu0 0
    %183 = vmatpush2.bf16.msra.mxu0 0
    %184 = vmatprep.subr.bf16.mxu0 0
    %185 = vmatpush2.bf16.msra.mxu0 0
    %186 = vmatprep.subr.bf16.mxu0 0
    %187 = vmatpush2.bf16.msra.mxu0 0
    %188 = vmatprep.subr.bf16.mxu0 0
    %189 = vmatpush2.bf16.msra.mxu0 0
    %190 = vmatprep.subr.bf16.mxu0 0
    %191 = vmatpush2.bf16.msra.mxu0 0
    %192 = vmatprep.mubr.bf16.mxu0 0
    %193 = vmatmul.mubr.bf16.gmra.mxu0 %v95
    %v194 = vpop.f32.mrf.mxu0
    %v195 = vadd.f32 0.0, %v194
    %v196 = vpop.f32.mrf.mxu0
    %v197 = vpop.f32.mrf.mxu0
    %v198 = vadd.f32 0.0, %v197
    %v199 = vpop.f32.mrf.mxu0
    %200 = vdwg.mxu0
    %201 = vmatprep.subr.mxu0 0.0
    %202 = vmatpush1.msra.mxu0 %v87
    %203 = vmatprep.subr.mxu0 0.0
    %204 = vmatpush1.msra.mxu0 %v86
    %205 = vmatprep.subr.mxu0 0.0
    %206 = vmatpush1.msra.mxu0 %v85
    %207 = vmatprep.subr.mxu0 0.0
    %208 = vmatpush1.msra.mxu0 %v84
    %209 = vmatprep.subr.mxu0 0.0
    %210 = vmatpush1.msra.mxu0 %v83
    %211 = vmatprep.subr.mxu0 0.0
    %212 = vmatpush1.msra.mxu0 %v82
    %213 = vmatprep.subr.mxu0 0.0
    %214 = vmatpush1.msra.mxu0 %v81
    %215 = vmatprep.subr.mxu0 0.0
    %216 = vmatpush1.msra.mxu0 %v80
    %217 = vmatprep.subr.mxu0 0.0
    %218 = vmatpush1.msra.mxu0 %v79
    %219 = vmatprep.subr.mxu0 0.0
    %220 = vmatpush1.msra.mxu0 %v78
    %221 = vmatprep.subr.mxu0 0.0
    %222 = vmatpush1.msra.mxu0 %v77
    %223 = vmatprep.subr.mxu0 0.0
    %224 = vmatpush1.msra.mxu0 %v76
    %225 = vmatprep.subr.mxu0 0.0
    %226 = vmatpush1.msra.mxu0 %v75
    %227 = vmatprep.subr.mxu0 0.0
    %228 = vmatpush1.msra.mxu0 %v74
    %229 = vmatprep.subr.mxu0 0.0
    %230 = vmatpush1.msra.mxu0 %v73
    %231 = vmatprep.subr.mxu0 0.0
    %232 = vmatpush1.msra.mxu0 %v72
    %233 = vmatprep.subr.mxu0 0.0
    %234 = vmatpush2.msra.mxu0 0.0
    %235 = vmatprep.subr.mxu0 0.0
    %236 = vmatpush2.msra.mxu0 0.0
    %237 = vmatprep.subr.mxu0 0.0
    %238 = vmatpush2.msra.mxu0 0.0
    %239 = vmatprep.subr.mxu0 0.0
    %240 = vmatpush2.msra.mxu0 0.0
    %241 = vmatprep.subr.mxu0 0.0
    %242 = vmatpush2.msra.mxu0 0.0
    %243 = vmatprep.subr.mxu0 0.0
    %244 = vmatpush2.msra.mxu0 0.0
    %245 = vmatprep.subr.mxu0 0.0
    %246 = vmatpush2.msra.mxu0 0.0
    %247 = vmatprep.subr.mxu0 0.0
    %248 = vmatpush2.msra.mxu0 0.0
    %249 = vmatprep.subr.mxu0 0.0
    %250 = vmatpush2.msra.mxu0 0.0
    %251 = vmatprep.subr.mxu0 0.0
    %252 = vmatpush2.msra.mxu0 0.0
    %253 = vmatprep.subr.mxu0 0.0
    %254 = vmatpush2.msra.mxu0 0.0
    %255 = vmatprep.subr.mxu0 0.0
    %256 = vmatpush2.msra.mxu0 0.0
    %257 = vmatprep.subr.mxu0 0.0
    %258 = vmatpush2.msra.mxu0 0.0
    %259 = vmatprep.subr.mxu0 0.0
    %260 = vmatpush2.msra.mxu0 0.0
    %261 = vmatprep.subr.mxu0 0.0
    %262 = vmatpush2.msra.mxu0 0.0
    %263 = vmatprep.subr.mxu0 0.0
    %264 = vmatpush2.msra.mxu0 0.0
    %265 = vmatprep.mubr.f32.mxu0 0.0
    %266 = vmatmul.mubr.f32.gmra.mxu0 %v195
    %v267 = vpop.f32.mrf.mxu0
    %v268 = vadd.f32 0.0, %v267
    %v269 = vpop.f32.mrf.mxu0
    %270 = vmatprep.mubr.f32.mxu0 0.0
    %271 = vmatmul.mubr.f32.gmra.mxu0 %v198
    %v272 = vpop.f32.mrf.mxu0
    %v273 = vadd.f32 0.0, %v272
    %v274 = vpop.f32.mrf.mxu0
    %275 = vdwg.mxu0
    %vm276 = vcmask 130048
    %v278 = vsel %vm276, %v90, 0
    %v281 = vsel %vm276, %v91, 0
    %283 = vmatprep.subr.mxu0 0.0
    %284 = vmatpush1.msra.mxu0 0.0
    %285 = vmatprep.subr.mxu0 0.0
    %286 = vmatpush1.msra.mxu0 0.0
    %287 = vmatprep.subr.mxu0 0.0
    %288 = vmatpush1.msra.mxu0 0.0
    %289 = vmatprep.subr.mxu0 0.0
    %290 = vmatpush1.msra.mxu0 0.0
    %291 = vmatprep.subr.mxu0 0.0
    %292 = vmatpush1.msra.mxu0 0.0
    %293 = vmatprep.subr.mxu0 0.0
    %294 = vmatpush1.msra.mxu0 0.0
    %295 = vmatprep.subr.mxu0 0.0
    %296 = vmatpush1.msra.mxu0 0.0
    %297 = vmatprep.subr.mxu0 0.0
    %298 = vmatpush1.msra.mxu0 0.0
    %299 = vmatprep.subr.mxu0 0.0
    %300 = vmatpush1.msra.mxu0 0.0
    %301 = vmatprep.subr.mxu0 0.0
    %302 = vmatpush1.msra.mxu0 0.0
    %303 = vmatprep.subr.mxu0 0.0
    %304 = vmatpush1.msra.mxu0 0.0
    %305 = vmatprep.subr.mxu0 0.0
    %306 = vmatpush1.msra.mxu0 0.0
    %307 = vmatprep.subr.mxu0 0.0
    %308 = vmatpush1.msra.mxu0 0.0
    %309 = vmatprep.subr.mxu0 0.0
    %310 = vmatpush1.msra.mxu0 0.0
    %311 = vmatprep.subr.mxu0 0.0
    %312 = vmatpush1.msra.mxu0 %v198
    %313 = vmatprep.subr.mxu0 0.0
    %314 = vmatpush1.msra.mxu0 %v195
    %315 = vmatprep.subr.mxu0 0.0
    %316 = vmatpush2.msra.mxu0 0.0
    %317 = vmatprep.subr.mxu0 0.0
    %318 = vmatpush2.msra.mxu0 0.0
    %319 = vmatprep.subr.mxu0 0.0
    %320 = vmatpush2.msra.mxu0 0.0
    %321 = vmatprep.subr.mxu0 0.0
    %322 = vmatpush2.msra.mxu0 0.0
    %323 = vmatprep.subr.mxu0 0.0
    %324 = vmatpush2.msra.mxu0 0.0
    %325 = vmatprep.subr.mxu0 0.0
    %326 = vmatpush2.msra.mxu0 0.0
    %327 = vmatprep.subr.mxu0 0.0
    %328 = vmatpush2.msra.mxu0 0.0
    %329 = vmatprep.subr.mxu0 0.0
    %330 = vmatpush2.msra.mxu0 0.0
    %331 = vmatprep.subr.mxu0 0.0
    %332 = vmatpush2.msra.mxu0 0.0
    %333 = vmatprep.subr.mxu0 0.0
    %334 = vmatpush2.msra.mxu0 0.0
    %335 = vmatprep.subr.mxu0 0.0
    %336 = vmatpush2.msra.mxu0 0.0
    %337 = vmatprep.subr.mxu0 0.0
    %338 = vmatpush2.msra.mxu0 0.0
    %339 = vmatprep.subr.mxu0 0.0
    %340 = vmatpush2.msra.mxu0 0.0
    %341 = vmatprep.subr.mxu0 0.0
    %342 = vmatpush2.msra.mxu0 0.0
    %343 = vmatprep.subr.mxu0 0.0
    %344 = vmatpush2.msra.mxu0 0.0
    %345 = vmatprep.subr.mxu0 0.0
    %346 = vmatpush2.msra.mxu0 0.0
    %347 = vmatprep.mubr.f32.mxu0 0.0
    %348 = vmatmul.mubr.f32.gmra.mxu0 %v278
    %v349 = vpop.f32.mrf.mxu0
    %v350 = vadd.f32 %v268, %v349
    %v351 = vpop.f32.mrf.mxu0
    %352 = vmatprep.mubr.f32.mxu0 0.0
    %353 = vmatmul.mubr.f32.gmra.mxu0 %v281
    %v354 = vpop.f32.mrf.mxu0
    %v355 = vadd.f32 %v273, %v354
    %v356 = vpop.f32.mrf.mxu0
    %357 = vdwg.mxu0
    %v358 = vld [vmem:[#allocation2] sm:$0x1]
    %v359 = vlaneseq
    %v360 = vshrl.u32 %v359, 7
    %v361 = vsub.s32 0, %v360
    %v362 = vrot.slane %v358, %v361
    %v363 = vadd.f32 %v350, %v362
    %v364 = vadd.f32 %v355, %v362
    %v365 = vsel %vm35, %v363, 0.0
    %v366 = vsel %vm35, %v364, 0.0
    %v367 = vmax.f32 %v365, 0.0
    %v368 = vmax.f32 %v366, 0.0
    %v369 = vadd.f32 %v367, %v368
    %v370 = vrot.slane %v369, 4
    %v371 = vadd.f32 %v369, %v370
    %v372 = vrot.slane %v371, 2
    %v373 = vadd.f32 %v371, %v372
    %v374 = vrot.slane %v373, 1
    %v375 = vadd.f32 %v373, %v374
    %v376 = vrcp.pop 16.0
    %v377 = vmul.f32 %v375, %v376
    %v378 = vsub.f32 %v367, %v377
    %v379 = vsub.f32 %v368, %v377
    %v380 = vmul.f32 %v378, %v378
    %v381 = vmul.f32 %v379, %v379
    %v382 = vadd.f32 %v380, %v381
    %v383 = vrot.slane %v382, 4
    %v384 = vadd.f32 %v382, %v383
    %v385 = vrot.slane %v384, 2
    %v386 = vadd.f32 %v384, %v385
    %v387 = vrot.slane %v386, 1
    %v388 = vadd.f32 %v386, %v387
    %v389 = vmul.f32 %v388, %v376
    %v390 = vadd.f32 %v389, 1e-05
    %v391 = vrsqrt.pop %v390
    %v392 = vmul.f32 %v378, %v391
    %v393 = vmul.f32 %v379, %v391
    %v394 = vld [vmem:[#allocation2 + $0x8] sm:$0x1]
    %v395 = vlaneseq
    %v396 = vshrl.u32 %v395, 7
    %v397 = vsub.s32 0, %v396
    %v398 = vrot.slane %v394, %v397
    %v399 = vmul.f32 %v392, %v398
    %v400 = vmul.f32 %v393, %v398
    %v401 = vld [vmem:[#allocation2 + $0x10] sm:$0x1]
    %v402 = vlaneseq
    %v403 = vshrl.u32 %v402, 7
    %v404 = vsub.s32 0, %v403
    %v405 = vrot.slane %v401, %v404
    %v406 = vadd.f32 %v399, %v405
    %v407 = vadd.f32 %v400, %v405
    %v408 = vpack.c.bf16 %v407, %v406
    %v409 = vld [vmem:[%s2 + $0x40] sm:$0xf]
    %v410 = vld [vmem:[%s2 + $0x44] sm:$0xf]
    %v411 = vld [vmem:[%s2 + $0x48] sm:$0xf]
    %v412 = vld [vmem:[%s2 + $0x4c] sm:$0xf]
    %v413 = vld [vmem:[%s2 + $0x50] sm:$0xf]
    %v414 = vld [vmem:[%s2 + $0x54] sm:$0xf]
    %v415 = vld [vmem:[%s2 + $0x58] sm:$0xf]
    %v416 = vld [vmem:[%s2 + $0x5c] sm:$0xf]
    %v417 = vld [vmem:[%s2 + $0x60] sm:$0xf]
    %v418 = vld [vmem:[%s2 + $0x64] sm:$0xf]
    %v419 = vld [vmem:[%s2 + $0x68] sm:$0xf]
    %v420 = vld [vmem:[%s2 + $0x6c] sm:$0xf]
    %v421 = vld [vmem:[%s2 + $0x70] sm:$0xf]
    %v422 = vld [vmem:[%s2 + $0x74] sm:$0xf]
    %v423 = vld [vmem:[%s2 + $0x78] sm:$0xf]
    %v424 = vld [vmem:[%s2 + $0x7c] sm:$0xf]
    %v441 = vunpack.c.l.b16 %v409
    %v442 = vunpack.c.l.b16 %v410
    %v443 = vunpack.c.l.b16 %v411
    %v444 = vunpack.c.l.b16 %v412
    %v445 = vunpack.c.l.b16 %v413
    %v446 = vunpack.c.l.b16 %v414
    %v447 = vunpack.c.l.b16 %v415
    %v448 = vunpack.c.l.b16 %v416
    %v449 = vunpack.c.l.b16 %v417
    %v450 = vunpack.c.l.b16 %v418
    %v451 = vunpack.c.l.b16 %v419
    %v452 = vunpack.c.l.b16 %v420
    %v453 = vunpack.c.l.b16 %v421
    %v454 = vunpack.c.l.b16 %v422
    %v455 = vunpack.c.l.b16 %v423
    %v456 = vunpack.c.l.b16 %v424
    %v457 = vpack.c.b16 %v442, %v441
    %v458 = vpack.c.b16 %v444, %v443
    %v459 = vpack.c.b16 %v446, %v445
    %v460 = vpack.c.b16 %v448, %v447
    %v461 = vpack.c.b16 %v450, %v449
    %v462 = vpack.c.b16 %v452, %v451
    %v463 = vpack.c.b16 %v454, %v453
    %v464 = vpack.c.b16 %v456, %v455
    %473 = vmatprep.subr.bf16.mxu0 0
    %474 = vmatpush1.bf16.msra.mxu0 %v464
    %475 = vmatprep.subr.bf16.mxu0 0
    %476 = vmatpush1.bf16.msra.mxu0 %v463
    %477 = vmatprep.subr.bf16.mxu0 0
    %478 = vmatpush1.bf16.msra.mxu0 %v462
    %479 = vmatprep.subr.bf16.mxu0 0
    %480 = vmatpush1.bf16.msra.mxu0 %v461
    %481 = vmatprep.subr.bf16.mxu0 0
    %482 = vmatpush1.bf16.msra.mxu0 %v460
    %483 = vmatprep.subr.bf16.mxu0 0
    %484 = vmatpush1.bf16.msra.mxu0 %v459
    %485 = vmatprep.subr.bf16.mxu0 0
    %486 = vmatpush1.bf16.msra.mxu0 %v458
    %487 = vmatprep.subr.bf16.mxu0 0
    %488 = vmatpush1.bf16.msra.mxu0 %v457
    %489 = vmatprep.subr.bf16.mxu0 0
    %490 = vmatpush2.bf16.msra.mxu0 0
    %491 = vmatprep.subr.bf16.mxu0 0
    %492 = vmatpush2.bf16.msra.mxu0 0
    %493 = vmatprep.subr.bf16.mxu0 0
    %494 = vmatpush2.bf16.msra.mxu0 0
    %495 = vmatprep.subr.bf16.mxu0 0
    %496 = vmatpush2.bf16.msra.mxu0 0
    %497 = vmatprep.subr.bf16.mxu0 0
    %498 = vmatpush2.bf16.msra.mxu0 0
    %499 = vmatprep.subr.bf16.mxu0 0
    %500 = vmatpush2.bf16.msra.mxu0 0
    %501 = vmatprep.subr.bf16.mxu0 0
    %502 = vmatpush2.bf16.msra.mxu0 0
    %503 = vmatprep.subr.bf16.mxu0 0
    %504 = vmatpush2.bf16.msra.mxu0 0
    %505 = vmatprep.mubr.bf16.mxu0 0
    %506 = vmatmul.mubr.bf16.gmra.mxu0 %v408
    %v507 = vpop.f32.mrf.mxu0
    %v508 = vadd.f32 0.0, %v507
    %v509 = vpop.f32.mrf.mxu0
    %v510 = vpop.f32.mrf.mxu0
    %v511 = vadd.f32 0.0, %v510
    %v512 = vpop.f32.mrf.mxu0
    %513 = vdwg.mxu0
    %514 = vmatprep.subr.mxu0 0.0
    %515 = vmatpush1.msra.mxu0 %v87
    %516 = vmatprep.subr.mxu0 0.0
    %517 = vmatpush1.msra.mxu0 %v86
    %518 = vmatprep.subr.mxu0 0.0
    %519 = vmatpush1.msra.mxu0 %v85
    %520 = vmatprep.subr.mxu0 0.0
    %521 = vmatpush1.msra.mxu0 %v84
    %522 = vmatprep.subr.mxu0 0.0
    %523 = vmatpush1.msra.mxu0 %v83
    %524 = vmatprep.subr.mxu0 0.0
    %525 = vmatpush1.msra.mxu0 %v82
    %526 = vmatprep.subr.mxu0 0.0
    %527 = vmatpush1.msra.mxu0 %v81
    %528 = vmatprep.subr.mxu0 0.0
    %529 = vmatpush1.msra.mxu0 %v80
    %530 = vmatprep.subr.mxu0 0.0
    %531 = vmatpush1.msra.mxu0 %v79
    %532 = vmatprep.subr.mxu0 0.0
    %533 = vmatpush1.msra.mxu0 %v78
    %534 = vmatprep.subr.mxu0 0.0
    %535 = vmatpush1.msra.mxu0 %v77
    %536 = vmatprep.subr.mxu0 0.0
    %537 = vmatpush1.msra.mxu0 %v76
    %538 = vmatprep.subr.mxu0 0.0
    %539 = vmatpush1.msra.mxu0 %v75
    %540 = vmatprep.subr.mxu0 0.0
    %541 = vmatpush1.msra.mxu0 %v74
    %542 = vmatprep.subr.mxu0 0.0
    %543 = vmatpush1.msra.mxu0 %v73
    %544 = vmatprep.subr.mxu0 0.0
    %545 = vmatpush1.msra.mxu0 %v72
    %546 = vmatprep.subr.mxu0 0.0
    %547 = vmatpush2.msra.mxu0 0.0
    %548 = vmatprep.subr.mxu0 0.0
    %549 = vmatpush2.msra.mxu0 0.0
    %550 = vmatprep.subr.mxu0 0.0
    %551 = vmatpush2.msra.mxu0 0.0
    %552 = vmatprep.subr.mxu0 0.0
    %553 = vmatpush2.msra.mxu0 0.0
    %554 = vmatprep.subr.mxu0 0.0
    %555 = vmatpush2.msra.mxu0 0.0
    %556 = vmatprep.subr.mxu0 0.0
    %557 = vmatpush2.msra.mxu0 0.0
    %558 = vmatprep.subr.mxu0 0.0
    %559 = vmatpush2.msra.mxu0 0.0
    %560 = vmatprep.subr.mxu0 0.0
    %561 = vmatpush2.msra.mxu0 0.0
    %562 = vmatprep.subr.mxu0 0.0
    %563 = vmatpush2.msra.mxu0 0.0
    %564 = vmatprep.subr.mxu0 0.0
    %565 = vmatpush2.msra.mxu0 0.0
    %566 = vmatprep.subr.mxu0 0.0
    %567 = vmatpush2.msra.mxu0 0.0
    %568 = vmatprep.subr.mxu0 0.0
    %569 = vmatpush2.msra.mxu0 0.0
    %570 = vmatprep.subr.mxu0 0.0
    %571 = vmatpush2.msra.mxu0 0.0
    %572 = vmatprep.subr.mxu0 0.0
    %573 = vmatpush2.msra.mxu0 0.0
    %574 = vmatprep.subr.mxu0 0.0
    %575 = vmatpush2.msra.mxu0 0.0
    %576 = vmatprep.subr.mxu0 0.0
    %577 = vmatpush2.msra.mxu0 0.0
    %578 = vmatprep.mubr.f32.mxu0 0.0
    %579 = vmatmul.mubr.f32.gmra.mxu0 %v508
    %v580 = vpop.f32.mrf.mxu0
    %v581 = vadd.f32 0.0, %v580
    %v582 = vpop.f32.mrf.mxu0
    %583 = vmatprep.mubr.f32.mxu0 0.0
    %584 = vmatmul.mubr.f32.gmra.mxu0 %v511
    %v585 = vpop.f32.mrf.mxu0
    %v586 = vadd.f32 0.0, %v585
    %v587 = vpop.f32.mrf.mxu0
    %588 = vdwg.mxu0
    %589 = vmatprep.subr.mxu0 0.0
    %590 = vmatpush1.msra.mxu0 0.0
    %591 = vmatprep.subr.mxu0 0.0
    %592 = vmatpush1.msra.mxu0 0.0
    %593 = vmatprep.subr.mxu0 0.0
    %594 = vmatpush1.msra.mxu0 0.0
    %595 = vmatprep.subr.mxu0 0.0
    %596 = vmatpush1.msra.mxu0 0.0
    %597 = vmatprep.subr.mxu0 0.0
    %598 = vmatpush1.msra.mxu0 0.0
    %599 = vmatprep.subr.mxu0 0.0
    %600 = vmatpush1.msra.mxu0 0.0
    %601 = vmatprep.subr.mxu0 0.0
    %602 = vmatpush1.msra.mxu0 0.0
    %603 = vmatprep.subr.mxu0 0.0
    %604 = vmatpush1.msra.mxu0 0.0
    %605 = vmatprep.subr.mxu0 0.0
    %606 = vmatpush1.msra.mxu0 0.0
    %607 = vmatprep.subr.mxu0 0.0
    %608 = vmatpush1.msra.mxu0 0.0
    %609 = vmatprep.subr.mxu0 0.0
    %610 = vmatpush1.msra.mxu0 0.0
    %611 = vmatprep.subr.mxu0 0.0
    %612 = vmatpush1.msra.mxu0 0.0
    %613 = vmatprep.subr.mxu0 0.0
    %614 = vmatpush1.msra.mxu0 0.0
    %615 = vmatprep.subr.mxu0 0.0
    %616 = vmatpush1.msra.mxu0 0.0
    %617 = vmatprep.subr.mxu0 0.0
    %618 = vmatpush1.msra.mxu0 %v511
    %619 = vmatprep.subr.mxu0 0.0
    %620 = vmatpush1.msra.mxu0 %v508
    %621 = vmatprep.subr.mxu0 0.0
    %622 = vmatpush2.msra.mxu0 0.0
    %623 = vmatprep.subr.mxu0 0.0
    %624 = vmatpush2.msra.mxu0 0.0
    %625 = vmatprep.subr.mxu0 0.0
    %626 = vmatpush2.msra.mxu0 0.0
    %627 = vmatprep.subr.mxu0 0.0
    %628 = vmatpush2.msra.mxu0 0.0
    %629 = vmatprep.subr.mxu0 0.0
    %630 = vmatpush2.msra.mxu0 0.0
    %631 = vmatprep.subr.mxu0 0.0
    %632 = vmatpush2.msra.mxu0 0.0
    %633 = vmatprep.subr.mxu0 0.0
    %634 = vmatpush2.msra.mxu0 0.0
    %635 = vmatprep.subr.mxu0 0.0
    %636 = vmatpush2.msra.mxu0 0.0
    %637 = vmatprep.subr.mxu0 0.0
    %638 = vmatpush2.msra.mxu0 0.0
    %639 = vmatprep.subr.mxu0 0.0
    %640 = vmatpush2.msra.mxu0 0.0
    %641 = vmatprep.subr.mxu0 0.0
    %642 = vmatpush2.msra.mxu0 0.0
    %643 = vmatprep.subr.mxu0 0.0
    %644 = vmatpush2.msra.mxu0 0.0
    %645 = vmatprep.subr.mxu0 0.0
    %646 = vmatpush2.msra.mxu0 0.0
    %647 = vmatprep.subr.mxu0 0.0
    %648 = vmatpush2.msra.mxu0 0.0
    %649 = vmatprep.subr.mxu0 0.0
    %650 = vmatpush2.msra.mxu0 0.0
    %651 = vmatprep.subr.mxu0 0.0
    %652 = vmatpush2.msra.mxu0 0.0
    %653 = vmatprep.mubr.f32.mxu0 0.0
    %654 = vmatmul.mubr.f32.gmra.mxu0 %v278
    %v655 = vpop.f32.mrf.mxu0
    %v656 = vadd.f32 %v581, %v655
    %v657 = vpop.f32.mrf.mxu0
    %658 = vmatprep.mubr.f32.mxu0 0.0
    %659 = vmatmul.mubr.f32.gmra.mxu0 %v281
    %v660 = vpop.f32.mrf.mxu0
    %v661 = vadd.f32 %v586, %v660
    %v662 = vpop.f32.mrf.mxu0
    %663 = vdwg.mxu0
    %v664 = vld [vmem:[#allocation2 + $0x18] sm:$0x1]
    %v665 = vlaneseq
    %v666 = vshrl.u32 %v665, 7
    %v667 = vsub.s32 0, %v666
    %v668 = vrot.slane %v664, %v667
    %v669 = vadd.f32 %v656, %v668
    %v670 = vadd.f32 %v661, %v668
    %v671 = vsel %vm35, %v669, 0.0
    %v672 = vsel %vm35, %v670, 0.0
    %v673 = vmax.f32 %v671, 0.0
    %v674 = vmax.f32 %v672, 0.0
    %v675 = vadd.f32 %v673, %v674
    %v676 = vrot.slane %v675, 4
    %v677 = vadd.f32 %v675, %v676
    %v678 = vrot.slane %v677, 2
    %v679 = vadd.f32 %v677, %v678
    %v680 = vrot.slane %v679, 1
    %v681 = vadd.f32 %v679, %v680
    %v682 = vmul.f32 %v681, %v376
    %v683 = vsub.f32 %v673, %v682
    %v684 = vsub.f32 %v674, %v682
    %v685 = vmul.f32 %v683, %v683
    %v686 = vmul.f32 %v684, %v684
    %v687 = vadd.f32 %v685, %v686
    %v688 = vrot.slane %v687, 4
    %v689 = vadd.f32 %v687, %v688
    %v690 = vrot.slane %v689, 2
    %v691 = vadd.f32 %v689, %v690
    %v692 = vrot.slane %v691, 1
    %v693 = vadd.f32 %v691, %v692
    %v694 = vmul.f32 %v693, %v376
    %v695 = vadd.f32 %v694, 1e-05
    %v696 = vrsqrt.pop %v695
    %v697 = vmul.f32 %v683, %v696
    %v698 = vmul.f32 %v684, %v696
    %v699 = vld [vmem:[#allocation2 + $0x20] sm:$0x1]
    %v700 = vlaneseq
    %v701 = vshrl.u32 %v700, 7
    %v702 = vsub.s32 0, %v701
    %v703 = vrot.slane %v699, %v702
    %v704 = vmul.f32 %v697, %v703
    %v705 = vmul.f32 %v698, %v703
    %v706 = vld [vmem:[#allocation2 + $0x28] sm:$0x1]
    %v707 = vlaneseq
    %v708 = vshrl.u32 %v707, 7
    %v709 = vsub.s32 0, %v708
    %v710 = vrot.slane %v706, %v709
    %v711 = vadd.f32 %v704, %v710
    %v712 = vadd.f32 %v705, %v710
    %v713 = vpack.c.bf16 %v712, %v711
    %v714 = vld [vmem:[%s2 + $0x80] sm:$0xf]
    %v715 = vld [vmem:[%s2 + $0x84] sm:$0xf]
    %v716 = vld [vmem:[%s2 + $0x88] sm:$0xf]
    %v717 = vld [vmem:[%s2 + $0x8c] sm:$0xf]
    %v718 = vld [vmem:[%s2 + $0x90] sm:$0xf]
    %v719 = vld [vmem:[%s2 + $0x94] sm:$0xf]
    %v720 = vld [vmem:[%s2 + $0x98] sm:$0xf]
    %v721 = vld [vmem:[%s2 + $0x9c] sm:$0xf]
    %v722 = vld [vmem:[%s2 + $0xa0] sm:$0xf]
    %v723 = vld [vmem:[%s2 + $0xa4] sm:$0xf]
    %v724 = vld [vmem:[%s2 + $0xa8] sm:$0xf]
    %v725 = vld [vmem:[%s2 + $0xac] sm:$0xf]
    %v726 = vld [vmem:[%s2 + $0xb0] sm:$0xf]
    %v727 = vld [vmem:[%s2 + $0xb4] sm:$0xf]
    %v728 = vld [vmem:[%s2 + $0xb8] sm:$0xf]
    %v729 = vld [vmem:[%s2 + $0xbc] sm:$0xf]
    %v746 = vunpack.c.l.b16 %v714
    %v747 = vunpack.c.l.b16 %v715
    %v748 = vunpack.c.l.b16 %v716
    %v749 = vunpack.c.l.b16 %v717
    %v750 = vunpack.c.l.b16 %v718
    %v751 = vunpack.c.l.b16 %v719
    %v752 = vunpack.c.l.b16 %v720
    %v753 = vunpack.c.l.b16 %v721
    %v754 = vunpack.c.l.b16 %v722
    %v755 = vunpack.c.l.b16 %v723
    %v756 = vunpack.c.l.b16 %v724
    %v757 = vunpack.c.l.b16 %v725
    %v758 = vunpack.c.l.b16 %v726
    %v759 = vunpack.c.l.b16 %v727
    %v760 = vunpack.c.l.b16 %v728
    %v761 = vunpack.c.l.b16 %v729
    %v762 = vpack.c.b16 %v747, %v746
    %v763 = vpack.c.b16 %v749, %v748
    %v764 = vpack.c.b16 %v751, %v750
    %v765 = vpack.c.b16 %v753, %v752
    %v766 = vpack.c.b16 %v755, %v754
    %v767 = vpack.c.b16 %v757, %v756
    %v768 = vpack.c.b16 %v759, %v758
    %v769 = vpack.c.b16 %v761, %v760
    %778 = vmatprep.subr.bf16.mxu0 0
    %779 = vmatpush1.bf16.msra.mxu0 %v769
    %780 = vmatprep.subr.bf16.mxu0 0
    %781 = vmatpush1.bf16.msra.mxu0 %v768
    %782 = vmatprep.subr.bf16.mxu0 0
    %783 = vmatpush1.bf16.msra.mxu0 %v767
    %784 = vmatprep.subr.bf16.mxu0 0
    %785 = vmatpush1.bf16.msra.mxu0 %v766
    %786 = vmatprep.subr.bf16.mxu0 0
    %787 = vmatpush1.bf16.msra.mxu0 %v765
    %788 = vmatprep.subr.bf16.mxu0 0
    %789 = vmatpush1.bf16.msra.mxu0 %v764
    %790 = vmatprep.subr.bf16.mxu0 0
    %791 = vmatpush1.bf16.msra.mxu0 %v763
    %792 = vmatprep.subr.bf16.mxu0 0
    %793 = vmatpush1.bf16.msra.mxu0 %v762
    %794 = vmatprep.subr.bf16.mxu0 0
    %795 = vmatpush2.bf16.msra.mxu0 0
    %796 = vmatprep.subr.bf16.mxu0 0
    %797 = vmatpush2.bf16.msra.mxu0 0
    %798 = vmatprep.subr.bf16.mxu0 0
    %799 = vmatpush2.bf16.msra.mxu0 0
    %800 = vmatprep.subr.bf16.mxu0 0
    %801 = vmatpush2.bf16.msra.mxu0 0
    %802 = vmatprep.subr.bf16.mxu0 0
    %803 = vmatpush2.bf16.msra.mxu0 0
    %804 = vmatprep.subr.bf16.mxu0 0
    %805 = vmatpush2.bf16.msra.mxu0 0
    %806 = vmatprep.subr.bf16.mxu0 0
    %807 = vmatpush2.bf16.msra.mxu0 0
    %808 = vmatprep.subr.bf16.mxu0 0
    %809 = vmatpush2.bf16.msra.mxu0 0
    %810 = vmatprep.mubr.bf16.mxu0 0
    %811 = vmatmul.mubr.bf16.gmra.mxu0 %v713
    %v812 = vpop.f32.mrf.mxu0
    %v813 = vadd.f32 0.0, %v812
    %v814 = vpop.f32.mrf.mxu0
    %v815 = vpop.f32.mrf.mxu0
    %v816 = vadd.f32 0.0, %v815
    %v817 = vpop.f32.mrf.mxu0
    %818 = vdwg.mxu0
    %819 = vmatprep.subr.mxu0 0.0
    %820 = vmatpush1.msra.mxu0 %v87
    %821 = vmatprep.subr.mxu0 0.0
    %822 = vmatpush1.msra.mxu0 %v86
    %823 = vmatprep.subr.mxu0 0.0
    %824 = vmatpush1.msra.mxu0 %v85
    %825 = vmatprep.subr.mxu0 0.0
    %826 = vmatpush1.msra.mxu0 %v84
    %827 = vmatprep.subr.mxu0 0.0
    %828 = vmatpush1.msra.mxu0 %v83
    %829 = vmatprep.subr.mxu0 0.0
    %830 = vmatpush1.msra.mxu0 %v82
    %831 = vmatprep.subr.mxu0 0.0
    %832 = vmatpush1.msra.mxu0 %v81
    %833 = vmatprep.subr.mxu0 0.0
    %834 = vmatpush1.msra.mxu0 %v80
    %835 = vmatprep.subr.mxu0 0.0
    %836 = vmatpush1.msra.mxu0 %v79
    %837 = vmatprep.subr.mxu0 0.0
    %838 = vmatpush1.msra.mxu0 %v78
    %839 = vmatprep.subr.mxu0 0.0
    %840 = vmatpush1.msra.mxu0 %v77
    %841 = vmatprep.subr.mxu0 0.0
    %842 = vmatpush1.msra.mxu0 %v76
    %843 = vmatprep.subr.mxu0 0.0
    %844 = vmatpush1.msra.mxu0 %v75
    %845 = vmatprep.subr.mxu0 0.0
    %846 = vmatpush1.msra.mxu0 %v74
    %847 = vmatprep.subr.mxu0 0.0
    %848 = vmatpush1.msra.mxu0 %v73
    %849 = vmatprep.subr.mxu0 0.0
    %850 = vmatpush1.msra.mxu0 %v72
    %851 = vmatprep.subr.mxu0 0.0
    %852 = vmatpush2.msra.mxu0 0.0
    %853 = vmatprep.subr.mxu0 0.0
    %854 = vmatpush2.msra.mxu0 0.0
    %855 = vmatprep.subr.mxu0 0.0
    %856 = vmatpush2.msra.mxu0 0.0
    %857 = vmatprep.subr.mxu0 0.0
    %858 = vmatpush2.msra.mxu0 0.0
    %859 = vmatprep.subr.mxu0 0.0
    %860 = vmatpush2.msra.mxu0 0.0
    %861 = vmatprep.subr.mxu0 0.0
    %862 = vmatpush2.msra.mxu0 0.0
    %863 = vmatprep.subr.mxu0 0.0
    %864 = vmatpush2.msra.mxu0 0.0
    %865 = vmatprep.subr.mxu0 0.0
    %866 = vmatpush2.msra.mxu0 0.0
    %867 = vmatprep.subr.mxu0 0.0
    %868 = vmatpush2.msra.mxu0 0.0
    %869 = vmatprep.subr.mxu0 0.0
    %870 = vmatpush2.msra.mxu0 0.0
    %871 = vmatprep.subr.mxu0 0.0
    %872 = vmatpush2.msra.mxu0 0.0
    %873 = vmatprep.subr.mxu0 0.0
    %874 = vmatpush2.msra.mxu0 0.0
    %875 = vmatprep.subr.mxu0 0.0
    %876 = vmatpush2.msra.mxu0 0.0
    %877 = vmatprep.subr.mxu0 0.0
    %878 = vmatpush2.msra.mxu0 0.0
    %879 = vmatprep.subr.mxu0 0.0
    %880 = vmatpush2.msra.mxu0 0.0
    %881 = vmatprep.subr.mxu0 0.0
    %882 = vmatpush2.msra.mxu0 0.0
    %883 = vmatprep.mubr.f32.mxu0 0.0
    %884 = vmatmul.mubr.f32.gmra.mxu0 %v813
    %v885 = vpop.f32.mrf.mxu0
    %v886 = vadd.f32 0.0, %v885
    %v887 = vpop.f32.mrf.mxu0
    %888 = vmatprep.mubr.f32.mxu0 0.0
    %889 = vmatmul.mubr.f32.gmra.mxu0 %v816
    %v890 = vpop.f32.mrf.mxu0
    %v891 = vadd.f32 0.0, %v890
    %v892 = vpop.f32.mrf.mxu0
    %893 = vdwg.mxu0
    %894 = vmatprep.subr.mxu0 0.0
    %895 = vmatpush1.msra.mxu0 0.0
    %896 = vmatprep.subr.mxu0 0.0
    %897 = vmatpush1.msra.mxu0 0.0
    %898 = vmatprep.subr.mxu0 0.0
    %899 = vmatpush1.msra.mxu0 0.0
    %900 = vmatprep.subr.mxu0 0.0
    %901 = vmatpush1.msra.mxu0 0.0
    %902 = vmatprep.subr.mxu0 0.0
    %903 = vmatpush1.msra.mxu0 0.0
    %904 = vmatprep.subr.mxu0 0.0
    %905 = vmatpush1.msra.mxu0 0.0
    %906 = vmatprep.subr.mxu0 0.0
    %907 = vmatpush1.msra.mxu0 0.0
    %908 = vmatprep.subr.mxu0 0.0
    %909 = vmatpush1.msra.mxu0 0.0
    %910 = vmatprep.subr.mxu0 0.0
    %911 = vmatpush1.msra.mxu0 0.0
    %912 = vmatprep.subr.mxu0 0.0
    %913 = vmatpush1.msra.mxu0 0.0
    %914 = vmatprep.subr.mxu0 0.0
    %915 = vmatpush1.msra.mxu0 0.0
    %916 = vmatprep.subr.mxu0 0.0
    %917 = vmatpush1.msra.mxu0 0.0
    %918 = vmatprep.subr.mxu0 0.0
    %919 = vmatpush1.msra.mxu0 0.0
    %920 = vmatprep.subr.mxu0 0.0
    %921 = vmatpush1.msra.mxu0 0.0
    %922 = vmatprep.subr.mxu0 0.0
    %923 = vmatpush1.msra.mxu0 %v816
    %924 = vmatprep.subr.mxu0 0.0
    %925 = vmatpush1.msra.mxu0 %v813
    %926 = vmatprep.subr.mxu0 0.0
    %927 = vmatpush2.msra.mxu0 0.0
    %928 = vmatprep.subr.mxu0 0.0
    %929 = vmatpush2.msra.mxu0 0.0
    %930 = vmatprep.subr.mxu0 0.0
    %931 = vmatpush2.msra.mxu0 0.0
    %932 = vmatprep.subr.mxu0 0.0
    %933 = vmatpush2.msra.mxu0 0.0
    %934 = vmatprep.subr.mxu0 0.0
    %935 = vmatpush2.msra.mxu0 0.0
    %936 = vmatprep.subr.mxu0 0.0
    %937 = vmatpush2.msra.mxu0 0.0
    %938 = vmatprep.subr.mxu0 0.0
    %939 = vmatpush2.msra.mxu0 0.0
    %940 = vmatprep.subr.mxu0 0.0
    %941 = vmatpush2.msra.mxu0 0.0
    %942 = vmatprep.subr.mxu0 0.0
    %943 = vmatpush2.msra.mxu0 0.0
    %944 = vmatprep.subr.mxu0 0.0
    %945 = vmatpush2.msra.mxu0 0.0
    %946 = vmatprep.subr.mxu0 0.0
    %947 = vmatpush2.msra.mxu0 0.0
    %948 = vmatprep.subr.mxu0 0.0
    %949 = vmatpush2.msra.mxu0 0.0
    %950 = vmatprep.subr.mxu0 0.0
    %951 = vmatpush2.msra.mxu0 0.0
    %952 = vmatprep.subr.mxu0 0.0
    %953 = vmatpush2.msra.mxu0 0.0
    %954 = vmatprep.subr.mxu0 0.0
    %955 = vmatpush2.msra.mxu0 0.0
    %956 = vmatprep.subr.mxu0 0.0
    %957 = vmatpush2.msra.mxu0 0.0
    %958 = vmatprep.mubr.f32.mxu0 0.0
    %959 = vmatmul.mubr.f32.gmra.mxu0 %v278
    %v960 = vpop.f32.mrf.mxu0
    %v961 = vadd.f32 %v886, %v960
    %v962 = vpop.f32.mrf.mxu0
    %963 = vmatprep.mubr.f32.mxu0 0.0
    %964 = vmatmul.mubr.f32.gmra.mxu0 %v281
    %v965 = vpop.f32.mrf.mxu0
    %v966 = vadd.f32 %v891, %v965
    %v967 = vpop.f32.mrf.mxu0
    %968 = vdwg.mxu0
    %v969 = vld [vmem:[#allocation2 + $0x30] sm:$0x1]
    %v970 = vlaneseq
    %v971 = vshrl.u32 %v970, 7
    %v972 = vsub.s32 0, %v971
    %v973 = vrot.slane %v969, %v972
    %v974 = vadd.f32 %v961, %v973
    %v975 = vadd.f32 %v966, %v973
    %v976 = vsel %vm35, %v974, 0.0
    %v977 = vsel %vm35, %v975, 0.0
    %v978 = vmax.f32 %v976, 0.0
    %v979 = vmax.f32 %v977, 0.0
    %v980 = vadd.f32 %v978, %v979
    %v981 = vrot.slane %v980, 4
    %v982 = vadd.f32 %v980, %v981
    %v983 = vrot.slane %v982, 2
    %v984 = vadd.f32 %v982, %v983
    %v985 = vrot.slane %v984, 1
    %v986 = vadd.f32 %v984, %v985
    %v987 = vmul.f32 %v986, %v376
    %v988 = vsub.f32 %v978, %v987
    %v989 = vsub.f32 %v979, %v987
    %v990 = vmul.f32 %v988, %v988
    %v991 = vmul.f32 %v989, %v989
    %v992 = vadd.f32 %v990, %v991
    %v993 = vrot.slane %v992, 4
    %v994 = vadd.f32 %v992, %v993
    %v995 = vrot.slane %v994, 2
    %v996 = vadd.f32 %v994, %v995
    %v997 = vrot.slane %v996, 1
    %v998 = vadd.f32 %v996, %v997
    %v999 = vmul.f32 %v998, %v376
    %v1000 = vadd.f32 %v999, 1e-05
    %v1001 = vrsqrt.pop %v1000
    %v1002 = vmul.f32 %v988, %v1001
    %v1003 = vmul.f32 %v989, %v1001
    %v1004 = vld [vmem:[#allocation2 + $0x38] sm:$0x1]
    %v1005 = vlaneseq
    %v1006 = vshrl.u32 %v1005, 7
    %v1007 = vsub.s32 0, %v1006
    %v1008 = vrot.slane %v1004, %v1007
    %v1009 = vmul.f32 %v1002, %v1008
    %v1010 = vmul.f32 %v1003, %v1008
    %v1011 = vld [vmem:[#allocation2 + $0x40] sm:$0x1]
    %v1012 = vlaneseq
    %v1013 = vshrl.u32 %v1012, 7
    %v1014 = vsub.s32 0, %v1013
    %v1015 = vrot.slane %v1011, %v1014
    %v1016 = vadd.f32 %v1009, %v1015
    %v1017 = vadd.f32 %v1010, %v1015
    %v1018 = vpack.c.bf16 %v1017, %v1016
    %v1019 = vld [vmem:[%s2 + $0xc0] sm:$0xf]
    %v1020 = vld [vmem:[%s2 + $0xc4] sm:$0xf]
    %v1021 = vld [vmem:[%s2 + $0xc8] sm:$0xf]
    %v1022 = vld [vmem:[%s2 + $0xcc] sm:$0xf]
    %v1023 = vld [vmem:[%s2 + $0xd0] sm:$0xf]
    %v1024 = vld [vmem:[%s2 + $0xd4] sm:$0xf]
    %v1025 = vld [vmem:[%s2 + $0xd8] sm:$0xf]
    %v1026 = vld [vmem:[%s2 + $0xdc] sm:$0xf]
    %v1027 = vld [vmem:[%s2 + $0xe0] sm:$0xf]
    %v1028 = vld [vmem:[%s2 + $0xe4] sm:$0xf]
    %v1029 = vld [vmem:[%s2 + $0xe8] sm:$0xf]
    %v1030 = vld [vmem:[%s2 + $0xec] sm:$0xf]
    %v1031 = vld [vmem:[%s2 + $0xf0] sm:$0xf]
    %v1032 = vld [vmem:[%s2 + $0xf4] sm:$0xf]
    %v1033 = vld [vmem:[%s2 + $0xf8] sm:$0xf]
    %v1034 = vld [vmem:[%s2 + $0xfc] sm:$0xf]
    %v1051 = vunpack.c.l.b16 %v1019
    %v1052 = vunpack.c.l.b16 %v1020
    %v1053 = vunpack.c.l.b16 %v1021
    %v1054 = vunpack.c.l.b16 %v1022
    %v1055 = vunpack.c.l.b16 %v1023
    %v1056 = vunpack.c.l.b16 %v1024
    %v1057 = vunpack.c.l.b16 %v1025
    %v1058 = vunpack.c.l.b16 %v1026
    %v1059 = vunpack.c.l.b16 %v1027
    %v1060 = vunpack.c.l.b16 %v1028
    %v1061 = vunpack.c.l.b16 %v1029
    %v1062 = vunpack.c.l.b16 %v1030
    %v1063 = vunpack.c.l.b16 %v1031
    %v1064 = vunpack.c.l.b16 %v1032
    %v1065 = vunpack.c.l.b16 %v1033
    %v1066 = vunpack.c.l.b16 %v1034
    %v1067 = vpack.c.b16 %v1052, %v1051
    %v1068 = vpack.c.b16 %v1054, %v1053
    %v1069 = vpack.c.b16 %v1056, %v1055
    %v1070 = vpack.c.b16 %v1058, %v1057
    %v1071 = vpack.c.b16 %v1060, %v1059
    %v1072 = vpack.c.b16 %v1062, %v1061
    %v1073 = vpack.c.b16 %v1064, %v1063
    %v1074 = vpack.c.b16 %v1066, %v1065
    %1083 = vmatprep.subr.bf16.mxu0 0
    %1084 = vmatpush1.bf16.msra.mxu0 %v1074
    %1085 = vmatprep.subr.bf16.mxu0 0
    %1086 = vmatpush1.bf16.msra.mxu0 %v1073
    %1087 = vmatprep.subr.bf16.mxu0 0
    %1088 = vmatpush1.bf16.msra.mxu0 %v1072
    %1089 = vmatprep.subr.bf16.mxu0 0
    %1090 = vmatpush1.bf16.msra.mxu0 %v1071
    %1091 = vmatprep.subr.bf16.mxu0 0
    %1092 = vmatpush1.bf16.msra.mxu0 %v1070
    %1093 = vmatprep.subr.bf16.mxu0 0
    %1094 = vmatpush1.bf16.msra.mxu0 %v1069
    %1095 = vmatprep.subr.bf16.mxu0 0
    %1096 = vmatpush1.bf16.msra.mxu0 %v1068
    %1097 = vmatprep.subr.bf16.mxu0 0
    %1098 = vmatpush1.bf16.msra.mxu0 %v1067
    %1099 = vmatprep.subr.bf16.mxu0 0
    %1100 = vmatpush2.bf16.msra.mxu0 0
    %1101 = vmatprep.subr.bf16.mxu0 0
    %1102 = vmatpush2.bf16.msra.mxu0 0
    %1103 = vmatprep.subr.bf16.mxu0 0
    %1104 = vmatpush2.bf16.msra.mxu0 0
    %1105 = vmatprep.subr.bf16.mxu0 0
    %1106 = vmatpush2.bf16.msra.mxu0 0
    %1107 = vmatprep.subr.bf16.mxu0 0
    %1108 = vmatpush2.bf16.msra.mxu0 0
    %1109 = vmatprep.subr.bf16.mxu0 0
    %1110 = vmatpush2.bf16.msra.mxu0 0
    %1111 = vmatprep.subr.bf16.mxu0 0
    %1112 = vmatpush2.bf16.msra.mxu0 0
    %1113 = vmatprep.subr.bf16.mxu0 0
    %1114 = vmatpush2.bf16.msra.mxu0 0
    %1115 = vmatprep.mubr.bf16.mxu0 0
    %1116 = vmatmul.mubr.bf16.gmra.mxu0 %v1018
    %v1117 = vpop.f32.mrf.mxu0
    %v1118 = vadd.f32 0.0, %v1117
    %v1119 = vpop.f32.mrf.mxu0
    %v1120 = vpop.f32.mrf.mxu0
    %v1121 = vadd.f32 0.0, %v1120
    %v1122 = vpop.f32.mrf.mxu0
    %1123 = vdwg.mxu0
    %1124 = vmatprep.subr.mxu0 0.0
    %1125 = vmatpush1.msra.mxu0 %v87
    %1126 = vmatprep.subr.mxu0 0.0
    %1127 = vmatpush1.msra.mxu0 %v86
    %1128 = vmatprep.subr.mxu0 0.0
    %1129 = vmatpush1.msra.mxu0 %v85
    %1130 = vmatprep.subr.mxu0 0.0
    %1131 = vmatpush1.msra.mxu0 %v84
    %1132 = vmatprep.subr.mxu0 0.0
    %1133 = vmatpush1.msra.mxu0 %v83
    %1134 = vmatprep.subr.mxu0 0.0
    %1135 = vmatpush1.msra.mxu0 %v82
    %1136 = vmatprep.subr.mxu0 0.0
    %1137 = vmatpush1.msra.mxu0 %v81
    %1138 = vmatprep.subr.mxu0 0.0
    %1139 = vmatpush1.msra.mxu0 %v80
    %1140 = vmatprep.subr.mxu0 0.0
    %1141 = vmatpush1.msra.mxu0 %v79
    %1142 = vmatprep.subr.mxu0 0.0
    %1143 = vmatpush1.msra.mxu0 %v78
    %1144 = vmatprep.subr.mxu0 0.0
    %1145 = vmatpush1.msra.mxu0 %v77
    %1146 = vmatprep.subr.mxu0 0.0
    %1147 = vmatpush1.msra.mxu0 %v76
    %1148 = vmatprep.subr.mxu0 0.0
    %1149 = vmatpush1.msra.mxu0 %v75
    %1150 = vmatprep.subr.mxu0 0.0
    %1151 = vmatpush1.msra.mxu0 %v74
    %1152 = vmatprep.subr.mxu0 0.0
    %1153 = vmatpush1.msra.mxu0 %v73
    %1154 = vmatprep.subr.mxu0 0.0
    %1155 = vmatpush1.msra.mxu0 %v72
    %1156 = vmatprep.subr.mxu0 0.0
    %1157 = vmatpush2.msra.mxu0 0.0
    %1158 = vmatprep.subr.mxu0 0.0
    %1159 = vmatpush2.msra.mxu0 0.0
    %1160 = vmatprep.subr.mxu0 0.0
    %1161 = vmatpush2.msra.mxu0 0.0
    %1162 = vmatprep.subr.mxu0 0.0
    %1163 = vmatpush2.msra.mxu0 0.0
    %1164 = vmatprep.subr.mxu0 0.0
    %1165 = vmatpush2.msra.mxu0 0.0
    %1166 = vmatprep.subr.mxu0 0.0
    %1167 = vmatpush2.msra.mxu0 0.0
    %1168 = vmatprep.subr.mxu0 0.0
    %1169 = vmatpush2.msra.mxu0 0.0
    %1170 = vmatprep.subr.mxu0 0.0
    %1171 = vmatpush2.msra.mxu0 0.0
    %1172 = vmatprep.subr.mxu0 0.0
    %1173 = vmatpush2.msra.mxu0 0.0
    %1174 = vmatprep.subr.mxu0 0.0
    %1175 = vmatpush2.msra.mxu0 0.0
    %1176 = vmatprep.subr.mxu0 0.0
    %1177 = vmatpush2.msra.mxu0 0.0
    %1178 = vmatprep.subr.mxu0 0.0
    %1179 = vmatpush2.msra.mxu0 0.0
    %1180 = vmatprep.subr.mxu0 0.0
    %1181 = vmatpush2.msra.mxu0 0.0
    %1182 = vmatprep.subr.mxu0 0.0
    %1183 = vmatpush2.msra.mxu0 0.0
    %1184 = vmatprep.subr.mxu0 0.0
    %1185 = vmatpush2.msra.mxu0 0.0
    %1186 = vmatprep.subr.mxu0 0.0
    %1187 = vmatpush2.msra.mxu0 0.0
    %1188 = vmatprep.mubr.f32.mxu0 0.0
    %1189 = vmatmul.mubr.f32.gmra.mxu0 %v1118
    %v1190 = vpop.f32.mrf.mxu0
    %v1191 = vadd.f32 0.0, %v1190
    %v1192 = vpop.f32.mrf.mxu0
    %1193 = vmatprep.mubr.f32.mxu0 0.0
    %1194 = vmatmul.mubr.f32.gmra.mxu0 %v1121
    %v1195 = vpop.f32.mrf.mxu0
    %v1196 = vadd.f32 0.0, %v1195
    %v1197 = vpop.f32.mrf.mxu0
    %1198 = vdwg.mxu0
    %1199 = vmatprep.subr.mxu0 0.0
    %1200 = vmatpush1.msra.mxu0 0.0
    %1201 = vmatprep.subr.mxu0 0.0
    %1202 = vmatpush1.msra.mxu0 0.0
    %1203 = vmatprep.subr.mxu0 0.0
    %1204 = vmatpush1.msra.mxu0 0.0
    %1205 = vmatprep.subr.mxu0 0.0
    %1206 = vmatpush1.msra.mxu0 0.0
    %1207 = vmatprep.subr.mxu0 0.0
    %1208 = vmatpush1.msra.mxu0 0.0
    %1209 = vmatprep.subr.mxu0 0.0
    %1210 = vmatpush1.msra.mxu0 0.0
    %1211 = vmatprep.subr.mxu0 0.0
    %1212 = vmatpush1.msra.mxu0 0.0
    %1213 = vmatprep.subr.mxu0 0.0
    %1214 = vmatpush1.msra.mxu0 0.0
    %1215 = vmatprep.subr.mxu0 0.0
    %1216 = vmatpush1.msra.mxu0 0.0
    %1217 = vmatprep.subr.mxu0 0.0
    %1218 = vmatpush1.msra.mxu0 0.0
    %1219 = vmatprep.subr.mxu0 0.0
    %1220 = vmatpush1.msra.mxu0 0.0
    %1221 = vmatprep.subr.mxu0 0.0
    %1222 = vmatpush1.msra.mxu0 0.0
    %1223 = vmatprep.subr.mxu0 0.0
    %1224 = vmatpush1.msra.mxu0 0.0
    %1225 = vmatprep.subr.mxu0 0.0
    %1226 = vmatpush1.msra.mxu0 0.0
    %1227 = vmatprep.subr.mxu0 0.0
    %1228 = vmatpush1.msra.mxu0 %v1121
    %1229 = vmatprep.subr.mxu0 0.0
    %1230 = vmatpush1.msra.mxu0 %v1118
    %1231 = vmatprep.subr.mxu0 0.0
    %1232 = vmatpush2.msra.mxu0 0.0
    %1233 = vmatprep.subr.mxu0 0.0
    %1234 = vmatpush2.msra.mxu0 0.0
    %1235 = vmatprep.subr.mxu0 0.0
    %1236 = vmatpush2.msra.mxu0 0.0
    %1237 = vmatprep.subr.mxu0 0.0
    %1238 = vmatpush2.msra.mxu0 0.0
    %1239 = vmatprep.subr.mxu0 0.0
    %1240 = vmatpush2.msra.mxu0 0.0
    %1241 = vmatprep.subr.mxu0 0.0
    %1242 = vmatpush2.msra.mxu0 0.0
    %1243 = vmatprep.subr.mxu0 0.0
    %1244 = vmatpush2.msra.mxu0 0.0
    %1245 = vmatprep.subr.mxu0 0.0
    %1246 = vmatpush2.msra.mxu0 0.0
    %1247 = vmatprep.subr.mxu0 0.0
    %1248 = vmatpush2.msra.mxu0 0.0
    %1249 = vmatprep.subr.mxu0 0.0
    %1250 = vmatpush2.msra.mxu0 0.0
    %1251 = vmatprep.subr.mxu0 0.0
    %1252 = vmatpush2.msra.mxu0 0.0
    %1253 = vmatprep.subr.mxu0 0.0
    %1254 = vmatpush2.msra.mxu0 0.0
    %1255 = vmatprep.subr.mxu0 0.0
    %1256 = vmatpush2.msra.mxu0 0.0
    %1257 = vmatprep.subr.mxu0 0.0
    %1258 = vmatpush2.msra.mxu0 0.0
    %1259 = vmatprep.subr.mxu0 0.0
    %1260 = vmatpush2.msra.mxu0 0.0
    %1261 = vmatprep.subr.mxu0 0.0
    %1262 = vmatpush2.msra.mxu0 0.0
    %1263 = vmatprep.mubr.f32.mxu0 0.0
    %1264 = vmatmul.mubr.f32.gmra.mxu0 %v278
    %v1265 = vpop.f32.mrf.mxu0
    %v1266 = vadd.f32 %v1191, %v1265
    %v1267 = vpop.f32.mrf.mxu0
    %1268 = vmatprep.mubr.f32.mxu0 0.0
    %1269 = vmatmul.mubr.f32.gmra.mxu0 %v281
    %v1270 = vpop.f32.mrf.mxu0
    %v1271 = vadd.f32 %v1196, %v1270
    %v1272 = vpop.f32.mrf.mxu0
    %1273 = vdwg.mxu0
    %v1274 = vld [vmem:[#allocation2 + $0x48] sm:$0x1]
    %v1275 = vlaneseq
    %v1276 = vshrl.u32 %v1275, 7
    %v1277 = vsub.s32 0, %v1276
    %v1278 = vrot.slane %v1274, %v1277
    %v1279 = vadd.f32 %v1266, %v1278
    %v1280 = vadd.f32 %v1271, %v1278
    %v1281 = vsel %vm35, %v1279, 0.0
    %v1282 = vsel %vm35, %v1280, 0.0
    %v1283 = vmax.f32 %v1281, 0.0
    %v1284 = vmax.f32 %v1282, 0.0
    %v1285 = vld [vmem:[#allocation2 + $0x50] sm:$0x1]
    %v1286 = vlaneseq
    %v1287 = vshrl.u32 %v1286, 7
    %v1288 = vsub.s32 0, %v1287
    %v1289 = vrot.slane %v1285, %v1288
    %v1290 = vmul.f32 %v1283, %v1289
    %v1291 = vmul.f32 %v1284, %v1289
    %1292 = vadd.xlane.f32.xlu0 %v1290
    %v1293 = vpop.xlane.xlu0 %1292
    %1294 = vadd.xlane.f32.xlu0 %v1291
    %v1295 = vpop.xlane.xlu0 %1294
    %v1296 = vtanh.pop %v1293
    %v1297 = vtanh.pop %v1295
    %v1298 = vsel %vm39, %v1293, 0.0
    %v1299 = vsel %vm40, %v1295, 0.0
    %v1300 = vsel %vm276, %v1298, 0.0
    %v1301 = vsel %vm276, %v1299, 0.0
    %v1302 = vadd.f32 %v1300, %v1301
    %v1303 = vrot.slane %v1302, 4
    %v1304 = vadd.f32 %v1302, %v1303
    %v1305 = vrot.slane %v1304, 2
    %v1306 = vadd.f32 %v1304, %v1305
    %v1307 = vrot.slane %v1306, 1
    %v1308 = vadd.f32 %v1306, %v1307
    %vm1309 = vcmp.gt.f32.partialorder %v1308, %v1293
    %vm1310 = vcmp.gt.f32.partialorder %v1308, %v1295
    %vm1311 = vcmp.eq.f32.partialorder %v1308, %v1293
    %vm1312 = vcmp.eq.f32.partialorder %v1308, %v1295
    %vm1313 = vcmp.lt.s32.totalorder %v34, %v37
    %vm1314 = vcmp.lt.s32.totalorder %v34, %v38
    %vm1315 = vmand %vm1311, %vm1313
    %vm1316 = vmand %vm1312, %vm1314
    %vm1317 = vmor %vm1309, %vm1315
    %vm1318 = vmor %vm1310, %vm1316
    %v1319 = vsel %vm1317, 1.0, 0.0
    %v1320 = vsel %vm1318, 1.0, 0.0
    %v1321 = vsel %vm276, %v1319, 0.0
    %1322 = vadd.xlane.f32.xlu0 %v1321
    %v1323 = vpop.xlane.xlu0 %1322
    %v1324 = vsel %vm276, %v1320, 0.0
    %1325 = vadd.xlane.f32.xlu0 %v1324
    %v1326 = vpop.xlane.xlu0 %1325
    %vm1327 = vcmp.lt.f32.partialorder %v1323, 13.0
    %vm1328 = vcmp.lt.f32.partialorder %v1326, 13.0
    %v1329 = vsel %vm1327, 1.0, 0.0
    %v1330 = vsel %vm1328, 1.0, 0.0
    %v1331 = vsel %vm39, %v1329, 0.0
    %v1332 = vsel %vm40, %v1330, 0.0
    %v1333 = vsel %vm276, %v1331, 0.0
    %v1334 = vsel %vm276, %v1332, 0.0
    %v1335 = vadd.f32 %v1333, %v1334
    %v1336 = vrot.slane %v1335, 4
    %v1337 = vadd.f32 %v1335, %v1336
    %v1338 = vrot.slane %v1337, 2
    %v1339 = vadd.f32 %v1337, %v1338
    %v1340 = vrot.slane %v1339, 1
    %v1341 = vadd.f32 %v1339, %v1340
    %v1342 = vmul.f32 %v1283, %v1296
    %v1343 = vmul.f32 %v1284, %v1297
    %v1344 = vmul.f32 %v1342, %v1329
    %v1345 = vmul.f32 %v1343, %v1330
    %vm1346 = vcmp.gt.f32.partialorder %v1329, 0.0
    %vm1347 = vcmp.gt.f32.partialorder %v1330, 0.0
    %v1348 = vsel %vm1346, 1, 0
    %v1349 = vsel %vm1347, 1, 0
    %vm1350 = vcmp.eq.s32.totalorder %v1348, 1
    %vm1351 = vcmp.eq.s32.totalorder %v1349, 1
    %v1352 = vsel %vm1350, %v1344, -1e+30
    %v1353 = vsel %vm1351, %v1345, -1e+30
    %v1354 = vmax.f32 %v1352, %v1353
    %v1355 = vrot.slane %v1354, 4
    %v1356 = vmax.f32 %v1354, %v1355
    %v1357 = vrot.slane %v1356, 2
    %v1358 = vmax.f32 %v1356, %v1357
    %v1359 = vrot.slane %v1358, 1
    %v1360 = vmax.f32 %v1358, %v1359
    %v1361 = vmul.f32 %v1344, %v1329
    %v1362 = vmul.f32 %v1345, %v1330
    %v1363 = vadd.f32 %v1361, %v1362
    %v1364 = vrot.slane %v1363, 4
    %v1365 = vadd.f32 %v1363, %v1364
    %v1366 = vrot.slane %v1365, 2
    %v1367 = vadd.f32 %v1365, %v1366
    %v1368 = vrot.slane %v1367, 1
    %v1369 = vadd.f32 %v1367, %v1368
    %v1370 = vmul.f32 %v1369, 0.07692308
    %v1371 = vpack.c.bf16 %v1345, %v1344
    %v1372 = vld [vmem:[%s2 + $0x100] sm:$0xf]
    %v1373 = vld [vmem:[%s2 + $0x104] sm:$0xf]
    %v1374 = vld [vmem:[%s2 + $0x108] sm:$0xf]
    %v1375 = vld [vmem:[%s2 + $0x10c] sm:$0xf]
    %v1376 = vld [vmem:[%s2 + $0x110] sm:$0xf]
    %v1377 = vld [vmem:[%s2 + $0x114] sm:$0xf]
    %v1378 = vld [vmem:[%s2 + $0x118] sm:$0xf]
    %v1379 = vld [vmem:[%s2 + $0x11c] sm:$0xf]
    %v1380 = vld [vmem:[%s2 + $0x120] sm:$0xf]
    %v1381 = vld [vmem:[%s2 + $0x124] sm:$0xf]
    %v1382 = vld [vmem:[%s2 + $0x128] sm:$0xf]
    %v1383 = vld [vmem:[%s2 + $0x12c] sm:$0xf]
    %v1384 = vld [vmem:[%s2 + $0x130] sm:$0xf]
    %v1385 = vld [vmem:[%s2 + $0x134] sm:$0xf]
    %v1386 = vld [vmem:[%s2 + $0x138] sm:$0xf]
    %v1387 = vld [vmem:[%s2 + $0x13c] sm:$0xf]
    %v1404 = vunpack.c.l.b16 %v1372
    %v1405 = vunpack.c.l.b16 %v1373
    %v1406 = vunpack.c.l.b16 %v1374
    %v1407 = vunpack.c.l.b16 %v1375
    %v1408 = vunpack.c.l.b16 %v1376
    %v1409 = vunpack.c.l.b16 %v1377
    %v1410 = vunpack.c.l.b16 %v1378
    %v1411 = vunpack.c.l.b16 %v1379
    %v1412 = vunpack.c.l.b16 %v1380
    %v1413 = vunpack.c.l.b16 %v1381
    %v1414 = vunpack.c.l.b16 %v1382
    %v1415 = vunpack.c.l.b16 %v1383
    %v1416 = vunpack.c.l.b16 %v1384
    %v1417 = vunpack.c.l.b16 %v1385
    %v1418 = vunpack.c.l.b16 %v1386
    %v1419 = vunpack.c.l.b16 %v1387
    %v1420 = vpack.c.b16 %v1405, %v1404
    %v1421 = vpack.c.b16 %v1407, %v1406
    %v1422 = vpack.c.b16 %v1409, %v1408
    %v1423 = vpack.c.b16 %v1411, %v1410
    %v1424 = vpack.c.b16 %v1413, %v1412
    %v1425 = vpack.c.b16 %v1415, %v1414
    %v1426 = vpack.c.b16 %v1417, %v1416
    %v1427 = vpack.c.b16 %v1419, %v1418
    %1436 = vmatprep.subr.bf16.mxu0 0
    %1437 = vmatpush1.bf16.msra.mxu0 %v1427
    %1438 = vmatprep.subr.bf16.mxu0 0
    %1439 = vmatpush1.bf16.msra.mxu0 %v1426
    %1440 = vmatprep.subr.bf16.mxu0 0
    %1441 = vmatpush1.bf16.msra.mxu0 %v1425
    %1442 = vmatprep.subr.bf16.mxu0 0
    %1443 = vmatpush1.bf16.msra.mxu0 %v1424
    %1444 = vmatprep.subr.bf16.mxu0 0
    %1445 = vmatpush1.bf16.msra.mxu0 %v1423
    %1446 = vmatprep.subr.bf16.mxu0 0
    %1447 = vmatpush1.bf16.msra.mxu0 %v1422
    %1448 = vmatprep.subr.bf16.mxu0 0
    %1449 = vmatpush1.bf16.msra.mxu0 %v1421
    %1450 = vmatprep.subr.bf16.mxu0 0
    %1451 = vmatpush1.bf16.msra.mxu0 %v1420
    %1452 = vmatprep.subr.bf16.mxu0 0
    %1453 = vmatpush2.bf16.msra.mxu0 0
    %1454 = vmatprep.subr.bf16.mxu0 0
    %1455 = vmatpush2.bf16.msra.mxu0 0
    %1456 = vmatprep.subr.bf16.mxu0 0
    %1457 = vmatpush2.bf16.msra.mxu0 0
    %1458 = vmatprep.subr.bf16.mxu0 0
    %1459 = vmatpush2.bf16.msra.mxu0 0
    %1460 = vmatprep.subr.bf16.mxu0 0
    %1461 = vmatpush2.bf16.msra.mxu0 0
    %1462 = vmatprep.subr.bf16.mxu0 0
    %1463 = vmatpush2.bf16.msra.mxu0 0
    %1464 = vmatprep.subr.bf16.mxu0 0
    %1465 = vmatpush2.bf16.msra.mxu0 0
    %1466 = vmatprep.subr.bf16.mxu0 0
    %1467 = vmatpush2.bf16.msra.mxu0 0
    %1468 = vmatprep.mubr.bf16.mxu0 0
    %1469 = vmatmul.mubr.bf16.gmra.mxu0 %v1371
    %v1470 = vpop.f32.mrf.mxu0
    %v1471 = vadd.f32 0.0, %v1470
    %v1472 = vpop.f32.mrf.mxu0
    %v1473 = vpop.f32.mrf.mxu0
    %v1474 = vadd.f32 0.0, %v1473
    %v1475 = vpop.f32.mrf.mxu0
    %1476 = vdwg.mxu0
    %1477 = vmatprep.subr.mxu0 0.0
    %1478 = vmatpush1.msra.mxu0 %v87
    %1479 = vmatprep.subr.mxu0 0.0
    %1480 = vmatpush1.msra.mxu0 %v86
    %1481 = vmatprep.subr.mxu0 0.0
    %1482 = vmatpush1.msra.mxu0 %v85
    %1483 = vmatprep.subr.mxu0 0.0
    %1484 = vmatpush1.msra.mxu0 %v84
    %1485 = vmatprep.subr.mxu0 0.0
    %1486 = vmatpush1.msra.mxu0 %v83
    %1487 = vmatprep.subr.mxu0 0.0
    %1488 = vmatpush1.msra.mxu0 %v82
    %1489 = vmatprep.subr.mxu0 0.0
    %1490 = vmatpush1.msra.mxu0 %v81
    %1491 = vmatprep.subr.mxu0 0.0
    %1492 = vmatpush1.msra.mxu0 %v80
    %1493 = vmatprep.subr.mxu0 0.0
    %1494 = vmatpush1.msra.mxu0 %v79
    %1495 = vmatprep.subr.mxu0 0.0
    %1496 = vmatpush1.msra.mxu0 %v78
    %1497 = vmatprep.subr.mxu0 0.0
    %1498 = vmatpush1.msra.mxu0 %v77
    %1499 = vmatprep.subr.mxu0 0.0
    %1500 = vmatpush1.msra.mxu0 %v76
    %1501 = vmatprep.subr.mxu0 0.0
    %1502 = vmatpush1.msra.mxu0 %v75
    %1503 = vmatprep.subr.mxu0 0.0
    %1504 = vmatpush1.msra.mxu0 %v74
    %1505 = vmatprep.subr.mxu0 0.0
    %1506 = vmatpush1.msra.mxu0 %v73
    %1507 = vmatprep.subr.mxu0 0.0
    %1508 = vmatpush1.msra.mxu0 %v72
    %1509 = vmatprep.subr.mxu0 0.0
    %1510 = vmatpush2.msra.mxu0 0.0
    %1511 = vmatprep.subr.mxu0 0.0
    %1512 = vmatpush2.msra.mxu0 0.0
    %1513 = vmatprep.subr.mxu0 0.0
    %1514 = vmatpush2.msra.mxu0 0.0
    %1515 = vmatprep.subr.mxu0 0.0
    %1516 = vmatpush2.msra.mxu0 0.0
    %1517 = vmatprep.subr.mxu0 0.0
    %1518 = vmatpush2.msra.mxu0 0.0
    %1519 = vmatprep.subr.mxu0 0.0
    %1520 = vmatpush2.msra.mxu0 0.0
    %1521 = vmatprep.subr.mxu0 0.0
    %1522 = vmatpush2.msra.mxu0 0.0
    %1523 = vmatprep.subr.mxu0 0.0
    %1524 = vmatpush2.msra.mxu0 0.0
    %1525 = vmatprep.subr.mxu0 0.0
    %1526 = vmatpush2.msra.mxu0 0.0
    %1527 = vmatprep.subr.mxu0 0.0
    %1528 = vmatpush2.msra.mxu0 0.0
    %1529 = vmatprep.subr.mxu0 0.0
    %1530 = vmatpush2.msra.mxu0 0.0
    %1531 = vmatprep.subr.mxu0 0.0
    %1532 = vmatpush2.msra.mxu0 0.0
    %1533 = vmatprep.subr.mxu0 0.0
    %1534 = vmatpush2.msra.mxu0 0.0
    %1535 = vmatprep.subr.mxu0 0.0
    %1536 = vmatpush2.msra.mxu0 0.0
    %1537 = vmatprep.subr.mxu0 0.0
    %1538 = vmatpush2.msra.mxu0 0.0
    %1539 = vmatprep.subr.mxu0 0.0
    %1540 = vmatpush2.msra.mxu0 0.0
    %1541 = vmatprep.mubr.f32.mxu0 0.0
    %1542 = vmatmul.mubr.f32.gmra.mxu0 %v1471
    %v1543 = vpop.f32.mrf.mxu0
    %v1544 = vadd.f32 0.0, %v1543
    %v1545 = vpop.f32.mrf.mxu0
    %1546 = vmatprep.mubr.f32.mxu0 0.0
    %1547 = vmatmul.mubr.f32.gmra.mxu0 %v1474
    %v1548 = vpop.f32.mrf.mxu0
    %v1549 = vadd.f32 0.0, %v1548
    %v1550 = vpop.f32.mrf.mxu0
    %1551 = vdwg.mxu0
    %v1553 = vsel %vm276, %v93, 0
    %v1556 = vsel %vm276, %v94, 0
    %1558 = vmatprep.subr.mxu0 0.0
    %1559 = vmatpush1.msra.mxu0 0.0
    %1560 = vmatprep.subr.mxu0 0.0
    %1561 = vmatpush1.msra.mxu0 0.0
    %1562 = vmatprep.subr.mxu0 0.0
    %1563 = vmatpush1.msra.mxu0 0.0
    %1564 = vmatprep.subr.mxu0 0.0
    %1565 = vmatpush1.msra.mxu0 0.0
    %1566 = vmatprep.subr.mxu0 0.0
    %1567 = vmatpush1.msra.mxu0 0.0
    %1568 = vmatprep.subr.mxu0 0.0
    %1569 = vmatpush1.msra.mxu0 0.0
    %1570 = vmatprep.subr.mxu0 0.0
    %1571 = vmatpush1.msra.mxu0 0.0
    %1572 = vmatprep.subr.mxu0 0.0
    %1573 = vmatpush1.msra.mxu0 0.0
    %1574 = vmatprep.subr.mxu0 0.0
    %1575 = vmatpush1.msra.mxu0 0.0
    %1576 = vmatprep.subr.mxu0 0.0
    %1577 = vmatpush1.msra.mxu0 0.0
    %1578 = vmatprep.subr.mxu0 0.0
    %1579 = vmatpush1.msra.mxu0 0.0
    %1580 = vmatprep.subr.mxu0 0.0
    %1581 = vmatpush1.msra.mxu0 0.0
    %1582 = vmatprep.subr.mxu0 0.0
    %1583 = vmatpush1.msra.mxu0 0.0
    %1584 = vmatprep.subr.mxu0 0.0
    %1585 = vmatpush1.msra.mxu0 0.0
    %1586 = vmatprep.subr.mxu0 0.0
    %1587 = vmatpush1.msra.mxu0 %v1474
    %1588 = vmatprep.subr.mxu0 0.0
    %1589 = vmatpush1.msra.mxu0 %v1471
    %1590 = vmatprep.subr.mxu0 0.0
    %1591 = vmatpush2.msra.mxu0 0.0
    %1592 = vmatprep.subr.mxu0 0.0
    %1593 = vmatpush2.msra.mxu0 0.0
    %1594 = vmatprep.subr.mxu0 0.0
    %1595 = vmatpush2.msra.mxu0 0.0
    %1596 = vmatprep.subr.mxu0 0.0
    %1597 = vmatpush2.msra.mxu0 0.0
    %1598 = vmatprep.subr.mxu0 0.0
    %1599 = vmatpush2.msra.mxu0 0.0
    %1600 = vmatprep.subr.mxu0 0.0
    %1601 = vmatpush2.msra.mxu0 0.0
    %1602 = vmatprep.subr.mxu0 0.0
    %1603 = vmatpush2.msra.mxu0 0.0
    %1604 = vmatprep.subr.mxu0 0.0
    %1605 = vmatpush2.msra.mxu0 0.0
    %1606 = vmatprep.subr.mxu0 0.0
    %1607 = vmatpush2.msra.mxu0 0.0
    %1608 = vmatprep.subr.mxu0 0.0
    %1609 = vmatpush2.msra.mxu0 0.0
    %1610 = vmatprep.subr.mxu0 0.0
    %1611 = vmatpush2.msra.mxu0 0.0
    %1612 = vmatprep.subr.mxu0 0.0
    %1613 = vmatpush2.msra.mxu0 0.0
    %1614 = vmatprep.subr.mxu0 0.0
    %1615 = vmatpush2.msra.mxu0 0.0
    %1616 = vmatprep.subr.mxu0 0.0
    %1617 = vmatpush2.msra.mxu0 0.0
    %1618 = vmatprep.subr.mxu0 0.0
    %1619 = vmatpush2.msra.mxu0 0.0
    %1620 = vmatprep.subr.mxu0 0.0
    %1621 = vmatpush2.msra.mxu0 0.0
    %1622 = vmatprep.mubr.f32.mxu0 0.0
    %1623 = vmatmul.mubr.f32.gmra.mxu0 %v1553
    %v1624 = vpop.f32.mrf.mxu0
    %v1625 = vadd.f32 %v1544, %v1624
    %v1626 = vpop.f32.mrf.mxu0
    %1627 = vmatprep.mubr.f32.mxu0 0.0
    %1628 = vmatmul.mubr.f32.gmra.mxu0 %v1556
    %v1629 = vpop.f32.mrf.mxu0
    %v1630 = vadd.f32 %v1549, %v1629
    %v1631 = vpop.f32.mrf.mxu0
    %1632 = vdwg.mxu0
    %v1633 = vld [vmem:[#allocation2 + $0x58] sm:$0x1]
    %v1634 = vlaneseq
    %v1635 = vshrl.u32 %v1634, 7
    %v1636 = vsub.s32 0, %v1635
    %v1637 = vrot.slane %v1633, %v1636
    %v1638 = vadd.f32 %v1625, %v1637
    %v1639 = vadd.f32 %v1630, %v1637
    %v1640 = vsel %vm35, %v1638, 0.0
    %v1641 = vsel %vm35, %v1639, 0.0
    %v1642 = vmax.f32 %v1640, 0.0
    %v1643 = vmax.f32 %v1641, 0.0
    %v1644 = vld [vmem:[#allocation2 + $0x60] sm:$0x1]
    %v1645 = vlaneseq
    %v1646 = vshrl.u32 %v1645, 7
    %v1647 = vsub.s32 0, %v1646
    %v1648 = vrot.slane %v1644, %v1647
    %v1649 = vmul.f32 %v1642, %v1648
    %v1650 = vmul.f32 %v1643, %v1648
    %1651 = vadd.xlane.f32.xlu0 %v1649
    %v1652 = vpop.xlane.xlu0 %1651
    %1653 = vadd.xlane.f32.xlu0 %v1650
    %v1654 = vpop.xlane.xlu0 %1653
    %v1655 = vtanh.pop %v1652
    %v1656 = vtanh.pop %v1654
    %v1657 = vsel %vm39, %v1652, 0.0
    %v1658 = vsel %vm40, %v1654, 0.0
    %v1659 = vsel %vm276, %v1657, 0.0
    %v1660 = vsel %vm276, %v1658, 0.0
    %v1661 = vadd.f32 %v1659, %v1660
    %v1662 = vrot.slane %v1661, 4
    %v1663 = vadd.f32 %v1661, %v1662
    %v1664 = vrot.slane %v1663, 2
    %v1665 = vadd.f32 %v1663, %v1664
    %v1666 = vrot.slane %v1665, 1
    %v1667 = vadd.f32 %v1665, %v1666
    %vm1668 = vcmp.gt.f32.partialorder %v1667, %v1652
    %vm1669 = vcmp.gt.f32.partialorder %v1667, %v1654
    %vm1670 = vcmp.eq.f32.partialorder %v1667, %v1652
    %vm1671 = vcmp.eq.f32.partialorder %v1667, %v1654
    %vm1672 = vmand %vm1670, %vm1313
    %vm1673 = vmand %vm1671, %vm1314
    %vm1674 = vmor %vm1668, %vm1672
    %vm1675 = vmor %vm1669, %vm1673
    %v1676 = vsel %vm1674, 1.0, 0.0
    %v1677 = vsel %vm1675, 1.0, 0.0
    %v1678 = vmul.f32 %v1341, %v1676
    %v1679 = vmul.f32 %v1341, %v1677
    %v1680 = vsel %vm276, %v1678, 0.0
    %1681 = vadd.xlane.f32.xlu0 %v1680
    %v1682 = vpop.xlane.xlu0 %1681
    %v1683 = vsel %vm276, %v1679, 0.0
    %1684 = vadd.xlane.f32.xlu0 %v1683
    %v1685 = vpop.xlane.xlu0 %1684
    %vm1686 = vcmp.lt.f32.partialorder %v1682, 11.0
    %vm1687 = vcmp.lt.f32.partialorder %v1685, 11.0
    %v1688 = vsel %vm1686, 1.0, 0.0
    %v1689 = vsel %vm1687, 1.0, 0.0
    %v1690 = vmul.f32 %v1329, %v1688
    %v1691 = vmul.f32 %v1330, %v1689
    %v1692 = vsel %vm39, %v1690, 0.0
    %v1693 = vsel %vm40, %v1691, 0.0
    %v1694 = vsel %vm276, %v1692, 0.0
    %v1695 = vsel %vm276, %v1693, 0.0
    %v1696 = vadd.f32 %v1694, %v1695
    %v1697 = vrot.slane %v1696, 4
    %v1698 = vadd.f32 %v1696, %v1697
    %v1699 = vrot.slane %v1698, 2
    %v1700 = vadd.f32 %v1698, %v1699
    %v1701 = vrot.slane %v1700, 1
    %v1702 = vadd.f32 %v1700, %v1701
    %v1703 = vmul.f32 %v1642, %v1655
    %v1704 = vmul.f32 %v1643, %v1656
    %v1705 = vmul.f32 %v1703, %v1690
    %v1706 = vmul.f32 %v1704, %v1691
    %vm1707 = vcmp.gt.f32.partialorder %v1690, 0.0
    %vm1708 = vcmp.gt.f32.partialorder %v1691, 0.0
    %v1709 = vsel %vm1707, 1, 0
    %v1710 = vsel %vm1708, 1, 0
    %vm1711 = vcmp.eq.s32.totalorder %v1709, 1
    %vm1712 = vcmp.eq.s32.totalorder %v1710, 1
    %v1713 = vsel %vm1711, %v1705, -1e+30
    %v1714 = vsel %vm1712, %v1706, -1e+30
    %v1715 = vmax.f32 %v1713, %v1714
    %v1716 = vrot.slane %v1715, 4
    %v1717 = vmax.f32 %v1715, %v1716
    %v1718 = vrot.slane %v1717, 2
    %v1719 = vmax.f32 %v1717, %v1718
    %v1720 = vrot.slane %v1719, 1
    %v1721 = vmax.f32 %v1719, %v1720
    %v1722 = vmul.f32 %v1705, %v1690
    %v1723 = vmul.f32 %v1706, %v1691
    %v1724 = vadd.f32 %v1722, %v1723
    %v1725 = vrot.slane %v1724, 4
    %v1726 = vadd.f32 %v1724, %v1725
    %v1727 = vrot.slane %v1726, 2
    %v1728 = vadd.f32 %v1726, %v1727
    %v1729 = vrot.slane %v1728, 1
    %v1730 = vadd.f32 %v1728, %v1729
    %v1731 = vmul.f32 %v1730, 0.09090909
    %v1732 = vpack.c.bf16 %v1706, %v1705
    %v1733 = vld [vmem:[%s2 + $0x140] sm:$0xf]
    %v1734 = vld [vmem:[%s2 + $0x144] sm:$0xf]
    %v1735 = vld [vmem:[%s2 + $0x148] sm:$0xf]
    %v1736 = vld [vmem:[%s2 + $0x14c] sm:$0xf]
    %v1737 = vld [vmem:[%s2 + $0x150] sm:$0xf]
    %v1738 = vld [vmem:[%s2 + $0x154] sm:$0xf]
    %v1739 = vld [vmem:[%s2 + $0x158] sm:$0xf]
    %v1740 = vld [vmem:[%s2 + $0x15c] sm:$0xf]
    %v1741 = vld [vmem:[%s2 + $0x160] sm:$0xf]
    %v1742 = vld [vmem:[%s2 + $0x164] sm:$0xf]
    %v1743 = vld [vmem:[%s2 + $0x168] sm:$0xf]
    %v1744 = vld [vmem:[%s2 + $0x16c] sm:$0xf]
    %v1745 = vld [vmem:[%s2 + $0x170] sm:$0xf]
    %v1746 = vld [vmem:[%s2 + $0x174] sm:$0xf]
    %v1747 = vld [vmem:[%s2 + $0x178] sm:$0xf]
    %v1748 = vld [vmem:[%s2 + $0x17c] sm:$0xf]
    %v1765 = vunpack.c.l.b16 %v1733
    %v1766 = vunpack.c.l.b16 %v1734
    %v1767 = vunpack.c.l.b16 %v1735
    %v1768 = vunpack.c.l.b16 %v1736
    %v1769 = vunpack.c.l.b16 %v1737
    %v1770 = vunpack.c.l.b16 %v1738
    %v1771 = vunpack.c.l.b16 %v1739
    %v1772 = vunpack.c.l.b16 %v1740
    %v1773 = vunpack.c.l.b16 %v1741
    %v1774 = vunpack.c.l.b16 %v1742
    %v1775 = vunpack.c.l.b16 %v1743
    %v1776 = vunpack.c.l.b16 %v1744
    %v1777 = vunpack.c.l.b16 %v1745
    %v1778 = vunpack.c.l.b16 %v1746
    %v1779 = vunpack.c.l.b16 %v1747
    %v1780 = vunpack.c.l.b16 %v1748
    %v1781 = vpack.c.b16 %v1766, %v1765
    %v1782 = vpack.c.b16 %v1768, %v1767
    %v1783 = vpack.c.b16 %v1770, %v1769
    %v1784 = vpack.c.b16 %v1772, %v1771
    %v1785 = vpack.c.b16 %v1774, %v1773
    %v1786 = vpack.c.b16 %v1776, %v1775
    %v1787 = vpack.c.b16 %v1778, %v1777
    %v1788 = vpack.c.b16 %v1780, %v1779
    %1797 = vmatprep.subr.bf16.mxu0 0
    %1798 = vmatpush1.bf16.msra.mxu0 %v1788
    %1799 = vmatprep.subr.bf16.mxu0 0
    %1800 = vmatpush1.bf16.msra.mxu0 %v1787
    %1801 = vmatprep.subr.bf16.mxu0 0
    %1802 = vmatpush1.bf16.msra.mxu0 %v1786
    %1803 = vmatprep.subr.bf16.mxu0 0
    %1804 = vmatpush1.bf16.msra.mxu0 %v1785
    %1805 = vmatprep.subr.bf16.mxu0 0
    %1806 = vmatpush1.bf16.msra.mxu0 %v1784
    %1807 = vmatprep.subr.bf16.mxu0 0
    %1808 = vmatpush1.bf16.msra.mxu0 %v1783
    %1809 = vmatprep.subr.bf16.mxu0 0
    %1810 = vmatpush1.bf16.msra.mxu0 %v1782
    %1811 = vmatprep.subr.bf16.mxu0 0
    %1812 = vmatpush1.bf16.msra.mxu0 %v1781
    %1813 = vmatprep.subr.bf16.mxu0 0
    %1814 = vmatpush2.bf16.msra.mxu0 0
    %1815 = vmatprep.subr.bf16.mxu0 0
    %1816 = vmatpush2.bf16.msra.mxu0 0
    %1817 = vmatprep.subr.bf16.mxu0 0
    %1818 = vmatpush2.bf16.msra.mxu0 0
    %1819 = vmatprep.subr.bf16.mxu0 0
    %1820 = vmatpush2.bf16.msra.mxu0 0
    %1821 = vmatprep.subr.bf16.mxu0 0
    %1822 = vmatpush2.bf16.msra.mxu0 0
    %1823 = vmatprep.subr.bf16.mxu0 0
    %1824 = vmatpush2.bf16.msra.mxu0 0
    %1825 = vmatprep.subr.bf16.mxu0 0
    %1826 = vmatpush2.bf16.msra.mxu0 0
    %1827 = vmatprep.subr.bf16.mxu0 0
    %1828 = vmatpush2.bf16.msra.mxu0 0
    %1829 = vmatprep.mubr.bf16.mxu0 0
    %1830 = vmatmul.mubr.bf16.gmra.mxu0 %v1732
    %v1831 = vpop.f32.mrf.mxu0
    %v1832 = vadd.f32 0.0, %v1831
    %v1833 = vpop.f32.mrf.mxu0
    %v1834 = vpop.f32.mrf.mxu0
    %v1835 = vadd.f32 0.0, %v1834
    %v1836 = vpop.f32.mrf.mxu0
    %1837 = vdwg.mxu0
    %1838 = vmatprep.subr.mxu0 0.0
    %1839 = vmatpush1.msra.mxu0 %v87
    %1840 = vmatprep.subr.mxu0 0.0
    %1841 = vmatpush1.msra.mxu0 %v86
    %1842 = vmatprep.subr.mxu0 0.0
    %1843 = vmatpush1.msra.mxu0 %v85
    %1844 = vmatprep.subr.mxu0 0.0
    %1845 = vmatpush1.msra.mxu0 %v84
    %1846 = vmatprep.subr.mxu0 0.0
    %1847 = vmatpush1.msra.mxu0 %v83
    %1848 = vmatprep.subr.mxu0 0.0
    %1849 = vmatpush1.msra.mxu0 %v82
    %1850 = vmatprep.subr.mxu0 0.0
    %1851 = vmatpush1.msra.mxu0 %v81
    %1852 = vmatprep.subr.mxu0 0.0
    %1853 = vmatpush1.msra.mxu0 %v80
    %1854 = vmatprep.subr.mxu0 0.0
    %1855 = vmatpush1.msra.mxu0 %v79
    %1856 = vmatprep.subr.mxu0 0.0
    %1857 = vmatpush1.msra.mxu0 %v78
    %1858 = vmatprep.subr.mxu0 0.0
    %1859 = vmatpush1.msra.mxu0 %v77
    %1860 = vmatprep.subr.mxu0 0.0
    %1861 = vmatpush1.msra.mxu0 %v76
    %1862 = vmatprep.subr.mxu0 0.0
    %1863 = vmatpush1.msra.mxu0 %v75
    %1864 = vmatprep.subr.mxu0 0.0
    %1865 = vmatpush1.msra.mxu0 %v74
    %1866 = vmatprep.subr.mxu0 0.0
    %1867 = vmatpush1.msra.mxu0 %v73
    %1868 = vmatprep.subr.mxu0 0.0
    %1869 = vmatpush1.msra.mxu0 %v72
    %1870 = vmatprep.subr.mxu0 0.0
    %1871 = vmatpush2.msra.mxu0 0.0
    %1872 = vmatprep.subr.mxu0 0.0
    %1873 = vmatpush2.msra.mxu0 0.0
    %1874 = vmatprep.subr.mxu0 0.0
    %1875 = vmatpush2.msra.mxu0 0.0
    %1876 = vmatprep.subr.mxu0 0.0
    %1877 = vmatpush2.msra.mxu0 0.0
    %1878 = vmatprep.subr.mxu0 0.0
    %1879 = vmatpush2.msra.mxu0 0.0
    %1880 = vmatprep.subr.mxu0 0.0
    %1881 = vmatpush2.msra.mxu0 0.0
    %1882 = vmatprep.subr.mxu0 0.0
    %1883 = vmatpush2.msra.mxu0 0.0
    %1884 = vmatprep.subr.mxu0 0.0
    %1885 = vmatpush2.msra.mxu0 0.0
    %1886 = vmatprep.subr.mxu0 0.0
    %1887 = vmatpush2.msra.mxu0 0.0
    %1888 = vmatprep.subr.mxu0 0.0
    %1889 = vmatpush2.msra.mxu0 0.0
    %1890 = vmatprep.subr.mxu0 0.0
    %1891 = vmatpush2.msra.mxu0 0.0
    %1892 = vmatprep.subr.mxu0 0.0
    %1893 = vmatpush2.msra.mxu0 0.0
    %1894 = vmatprep.subr.mxu0 0.0
    %1895 = vmatpush2.msra.mxu0 0.0
    %1896 = vmatprep.subr.mxu0 0.0
    %1897 = vmatpush2.msra.mxu0 0.0
    %1898 = vmatprep.subr.mxu0 0.0
    %1899 = vmatpush2.msra.mxu0 0.0
    %1900 = vmatprep.subr.mxu0 0.0
    %1901 = vmatpush2.msra.mxu0 0.0
    %1902 = vmatprep.mubr.f32.mxu0 0.0
    %1903 = vmatmul.mubr.f32.gmra.mxu0 %v1832
    %v1904 = vpop.f32.mrf.mxu0
    %v1905 = vadd.f32 0.0, %v1904
    %v1906 = vpop.f32.mrf.mxu0
    %1907 = vmatprep.mubr.f32.mxu0 0.0
    %1908 = vmatmul.mubr.f32.gmra.mxu0 %v1835
    %v1909 = vpop.f32.mrf.mxu0
    %v1910 = vadd.f32 0.0, %v1909
    %v1911 = vpop.f32.mrf.mxu0
    %1912 = vdwg.mxu0
    %1913 = vmatprep.subr.mxu0 0.0
    %1914 = vmatpush1.msra.mxu0 0.0
    %1915 = vmatprep.subr.mxu0 0.0
    %1916 = vmatpush1.msra.mxu0 0.0
    %1917 = vmatprep.subr.mxu0 0.0
    %1918 = vmatpush1.msra.mxu0 0.0
    %1919 = vmatprep.subr.mxu0 0.0
    %1920 = vmatpush1.msra.mxu0 0.0
    %1921 = vmatprep.subr.mxu0 0.0
    %1922 = vmatpush1.msra.mxu0 0.0
    %1923 = vmatprep.subr.mxu0 0.0
    %1924 = vmatpush1.msra.mxu0 0.0
    %1925 = vmatprep.subr.mxu0 0.0
    %1926 = vmatpush1.msra.mxu0 0.0
    %1927 = vmatprep.subr.mxu0 0.0
    %1928 = vmatpush1.msra.mxu0 0.0
    %1929 = vmatprep.subr.mxu0 0.0
    %1930 = vmatpush1.msra.mxu0 0.0
    %1931 = vmatprep.subr.mxu0 0.0
    %1932 = vmatpush1.msra.mxu0 0.0
    %1933 = vmatprep.subr.mxu0 0.0
    %1934 = vmatpush1.msra.mxu0 0.0
    %1935 = vmatprep.subr.mxu0 0.0
    %1936 = vmatpush1.msra.mxu0 0.0
    %1937 = vmatprep.subr.mxu0 0.0
    %1938 = vmatpush1.msra.mxu0 0.0
    %1939 = vmatprep.subr.mxu0 0.0
    %1940 = vmatpush1.msra.mxu0 0.0
    %1941 = vmatprep.subr.mxu0 0.0
    %1942 = vmatpush1.msra.mxu0 %v1835
    %1943 = vmatprep.subr.mxu0 0.0
    %1944 = vmatpush1.msra.mxu0 %v1832
    %1945 = vmatprep.subr.mxu0 0.0
    %1946 = vmatpush2.msra.mxu0 0.0
    %1947 = vmatprep.subr.mxu0 0.0
    %1948 = vmatpush2.msra.mxu0 0.0
    %1949 = vmatprep.subr.mxu0 0.0
    %1950 = vmatpush2.msra.mxu0 0.0
    %1951 = vmatprep.subr.mxu0 0.0
    %1952 = vmatpush2.msra.mxu0 0.0
    %1953 = vmatprep.subr.mxu0 0.0
    %1954 = vmatpush2.msra.mxu0 0.0
    %1955 = vmatprep.subr.mxu0 0.0
    %1956 = vmatpush2.msra.mxu0 0.0
    %1957 = vmatprep.subr.mxu0 0.0
    %1958 = vmatpush2.msra.mxu0 0.0
    %1959 = vmatprep.subr.mxu0 0.0
    %1960 = vmatpush2.msra.mxu0 0.0
    %1961 = vmatprep.subr.mxu0 0.0
    %1962 = vmatpush2.msra.mxu0 0.0
    %1963 = vmatprep.subr.mxu0 0.0
    %1964 = vmatpush2.msra.mxu0 0.0
    %1965 = vmatprep.subr.mxu0 0.0
    %1966 = vmatpush2.msra.mxu0 0.0
    %1967 = vmatprep.subr.mxu0 0.0
    %1968 = vmatpush2.msra.mxu0 0.0
    %1969 = vmatprep.subr.mxu0 0.0
    %1970 = vmatpush2.msra.mxu0 0.0
    %1971 = vmatprep.subr.mxu0 0.0
    %1972 = vmatpush2.msra.mxu0 0.0
    %1973 = vmatprep.subr.mxu0 0.0
    %1974 = vmatpush2.msra.mxu0 0.0
    %1975 = vmatprep.subr.mxu0 0.0
    %1976 = vmatpush2.msra.mxu0 0.0
    %1977 = vmatprep.mubr.f32.mxu0 0.0
    %1978 = vmatmul.mubr.f32.gmra.mxu0 %v1553
    %v1979 = vpop.f32.mrf.mxu0
    %v1980 = vadd.f32 %v1905, %v1979
    %v1981 = vpop.f32.mrf.mxu0
    %1982 = vmatprep.mubr.f32.mxu0 0.0
    %1983 = vmatmul.mubr.f32.gmra.mxu0 %v1556
    %v1984 = vpop.f32.mrf.mxu0
    %v1985 = vadd.f32 %v1910, %v1984
    %v1986 = vpop.f32.mrf.mxu0
    %1987 = vdwg.mxu0
    %v1988 = vld [vmem:[#allocation2 + $0x68] sm:$0x1]
    %v1989 = vlaneseq
    %v1990 = vshrl.u32 %v1989, 7
    %v1991 = vsub.s32 0, %v1990
    %v1992 = vrot.slane %v1988, %v1991
    %v1993 = vadd.f32 %v1980, %v1992
    %v1994 = vadd.f32 %v1985, %v1992
    %v1995 = vsel %vm35, %v1993, 0.0
    %v1996 = vsel %vm35, %v1994, 0.0
    %v1997 = vmax.f32 %v1995, 0.0
    %v1998 = vmax.f32 %v1996, 0.0
    %v1999 = vld [vmem:[#allocation2 + $0x70] sm:$0x1]
    %v2000 = vlaneseq
    %v2001 = vshrl.u32 %v2000, 7
    %v2002 = vsub.s32 0, %v2001
    %v2003 = vrot.slane %v1999, %v2002
    %v2004 = vmul.f32 %v1997, %v2003
    %v2005 = vmul.f32 %v1998, %v2003
    %2006 = vadd.xlane.f32.xlu0 %v2004
    %v2007 = vpop.xlane.xlu0 %2006
    %2008 = vadd.xlane.f32.xlu0 %v2005
    %v2009 = vpop.xlane.xlu0 %2008
    %v2010 = vtanh.pop %v2007
    %v2011 = vtanh.pop %v2009
    %v2012 = vsel %vm39, %v2007, 0.0
    %v2013 = vsel %vm40, %v2009, 0.0
    %v2014 = vsel %vm276, %v2012, 0.0
    %v2015 = vsel %vm276, %v2013, 0.0
    %v2016 = vadd.f32 %v2014, %v2015
    %v2017 = vrot.slane %v2016, 4
    %v2018 = vadd.f32 %v2016, %v2017
    %v2019 = vrot.slane %v2018, 2
    %v2020 = vadd.f32 %v2018, %v2019
    %v2021 = vrot.slane %v2020, 1
    %v2022 = vadd.f32 %v2020, %v2021
    %vm2023 = vcmp.gt.f32.partialorder %v2022, %v2007
    %vm2024 = vcmp.gt.f32.partialorder %v2022, %v2009
    %vm2025 = vcmp.eq.f32.partialorder %v2022, %v2007
    %vm2026 = vcmp.eq.f32.partialorder %v2022, %v2009
    %vm2027 = vmand %vm2025, %vm1313
    %vm2028 = vmand %vm2026, %vm1314
    %vm2029 = vmor %vm2023, %vm2027
    %vm2030 = vmor %vm2024, %vm2028
    %v2031 = vsel %vm2029, 1.0, 0.0
    %v2032 = vsel %vm2030, 1.0, 0.0
    %v2033 = vmul.f32 %v1702, %v2031
    %v2034 = vmul.f32 %v1702, %v2032
    %v2035 = vsel %vm276, %v2033, 0.0
    %2036 = vadd.xlane.f32.xlu0 %v2035
    %v2037 = vpop.xlane.xlu0 %2036
    %v2038 = vsel %vm276, %v2034, 0.0
    %2039 = vadd.xlane.f32.xlu0 %v2038
    %v2040 = vpop.xlane.xlu0 %2039
    %vm2041 = vcmp.lt.f32.partialorder %v2037, 9.0
    %vm2042 = vcmp.lt.f32.partialorder %v2040, 9.0
    %v2043 = vsel %vm2041, 1.0, 0.0
    %v2044 = vsel %vm2042, 1.0, 0.0
    %v2045 = vmul.f32 %v1690, %v2043
    %v2046 = vmul.f32 %v1691, %v2044
    %v2047 = vmul.f32 %v1997, %v2010
    %v2048 = vmul.f32 %v1998, %v2011
    %v2049 = vmul.f32 %v2047, %v2045
    %v2050 = vmul.f32 %v2048, %v2046
    %vm2051 = vcmp.gt.f32.partialorder %v2045, 0.0
    %vm2052 = vcmp.gt.f32.partialorder %v2046, 0.0
    %v2053 = vsel %vm2051, 1, 0
    %v2054 = vsel %vm2052, 1, 0
    %vm2055 = vcmp.eq.s32.totalorder %v2053, 1
    %vm2056 = vcmp.eq.s32.totalorder %v2054, 1
    %v2057 = vsel %vm2055, %v2049, -1e+30
    %v2058 = vsel %vm2056, %v2050, -1e+30
    %v2059 = vmax.f32 %v2057, %v2058
    %v2060 = vrot.slane %v2059, 4
    %v2061 = vmax.f32 %v2059, %v2060
    %v2062 = vrot.slane %v2061, 2
    %v2063 = vmax.f32 %v2061, %v2062
    %v2064 = vrot.slane %v2063, 1
    %v2065 = vmax.f32 %v2063, %v2064
    %v2066 = vmul.f32 %v2049, %v2045
    %v2067 = vmul.f32 %v2050, %v2046
    %v2068 = vadd.f32 %v2066, %v2067
    %v2069 = vrot.slane %v2068, 4
    %v2070 = vadd.f32 %v2068, %v2069
    %v2071 = vrot.slane %v2070, 2
    %v2072 = vadd.f32 %v2070, %v2071
    %v2073 = vrot.slane %v2072, 1
    %v2074 = vadd.f32 %v2072, %v2073
    %v2075 = vmul.f32 %v2074, 0.11111111
    %v2076 = vadd.f32 %v1360, %v1721
    %v2077 = vadd.f32 %v2076, %v2065
    %v2078 = vadd.f32 %v1370, %v1731
    %v2079 = vadd.f32 %v2078, %v2075
    %v2080 = vpack.c.bf16 %v2077, %v2077
    %v2081 = vld [vmem:[%s2 + $0x180] sm:$0xf]
    %v2082 = vld [vmem:[%s2 + $0x184] sm:$0xf]
    %v2083 = vld [vmem:[%s2 + $0x188] sm:$0xf]
    %v2084 = vld [vmem:[%s2 + $0x18c] sm:$0xf]
    %v2085 = vld [vmem:[%s2 + $0x190] sm:$0xf]
    %v2086 = vld [vmem:[%s2 + $0x194] sm:$0xf]
    %v2087 = vld [vmem:[%s2 + $0x198] sm:$0xf]
    %v2088 = vld [vmem:[%s2 + $0x19c] sm:$0xf]
    %v2089 = vld [vmem:[%s2 + $0x1a0] sm:$0xf]
    %v2090 = vld [vmem:[%s2 + $0x1a4] sm:$0xf]
    %v2091 = vld [vmem:[%s2 + $0x1a8] sm:$0xf]
    %v2092 = vld [vmem:[%s2 + $0x1ac] sm:$0xf]
    %v2093 = vld [vmem:[%s2 + $0x1b0] sm:$0xf]
    %v2094 = vld [vmem:[%s2 + $0x1b4] sm:$0xf]
    %v2095 = vld [vmem:[%s2 + $0x1b8] sm:$0xf]
    %v2096 = vld [vmem:[%s2 + $0x1bc] sm:$0xf]
    %v2097 = vpack.c.bf16 %v2079, %v2079
    %v2098 = vld [vmem:[%s2 + $0x1c0] sm:$0xf]
    %v2099 = vld [vmem:[%s2 + $0x1c4] sm:$0xf]
    %v2100 = vld [vmem:[%s2 + $0x1c8] sm:$0xf]
    %v2101 = vld [vmem:[%s2 + $0x1cc] sm:$0xf]
    %v2102 = vld [vmem:[%s2 + $0x1d0] sm:$0xf]
    %v2103 = vld [vmem:[%s2 + $0x1d4] sm:$0xf]
    %v2104 = vld [vmem:[%s2 + $0x1d8] sm:$0xf]
    %v2105 = vld [vmem:[%s2 + $0x1dc] sm:$0xf]
    %v2106 = vld [vmem:[%s2 + $0x1e0] sm:$0xf]
    %v2107 = vld [vmem:[%s2 + $0x1e4] sm:$0xf]
    %v2108 = vld [vmem:[%s2 + $0x1e8] sm:$0xf]
    %v2109 = vld [vmem:[%s2 + $0x1ec] sm:$0xf]
    %v2110 = vld [vmem:[%s2 + $0x1f0] sm:$0xf]
    %v2111 = vld [vmem:[%s2 + $0x1f4] sm:$0xf]
    %v2112 = vld [vmem:[%s2 + $0x1f8] sm:$0xf]
    %v2113 = vld [vmem:[%s2 + $0x1fc] sm:$0xf]
    %v2130 = vunpack.c.l.b16 %v2098
    %v2131 = vunpack.c.l.b16 %v2099
    %v2132 = vunpack.c.l.b16 %v2100
    %v2133 = vunpack.c.l.b16 %v2101
    %v2134 = vunpack.c.l.b16 %v2102
    %v2135 = vunpack.c.l.b16 %v2103
    %v2136 = vunpack.c.l.b16 %v2104
    %v2137 = vunpack.c.l.b16 %v2105
    %v2138 = vunpack.c.l.b16 %v2106
    %v2139 = vunpack.c.l.b16 %v2107
    %v2140 = vunpack.c.l.b16 %v2108
    %v2141 = vunpack.c.l.b16 %v2109
    %v2142 = vunpack.c.l.b16 %v2110
    %v2143 = vunpack.c.l.b16 %v2111
    %v2144 = vunpack.c.l.b16 %v2112
    %v2145 = vunpack.c.l.b16 %v2113
    %v2146 = vpack.c.b16 %v2131, %v2130
    %v2147 = vpack.c.b16 %v2133, %v2132
    %v2148 = vpack.c.b16 %v2135, %v2134
    %v2149 = vpack.c.b16 %v2137, %v2136
    %v2150 = vpack.c.b16 %v2139, %v2138
    %v2151 = vpack.c.b16 %v2141, %v2140
    %v2152 = vpack.c.b16 %v2143, %v2142
    %v2153 = vpack.c.b16 %v2145, %v2144
    %2162 = vmatprep.subr.bf16.mxu0 0
    %2163 = vmatpush1.bf16.msra.mxu0 %v2153
    %2164 = vmatprep.subr.bf16.mxu0 0
    %2165 = vmatpush1.bf16.msra.mxu0 %v2152
    %2166 = vmatprep.subr.bf16.mxu0 0
    %2167 = vmatpush1.bf16.msra.mxu0 %v2151
    %2168 = vmatprep.subr.bf16.mxu0 0
    %2169 = vmatpush1.bf16.msra.mxu0 %v2150
    %2170 = vmatprep.subr.bf16.mxu0 0
    %2171 = vmatpush1.bf16.msra.mxu0 %v2149
    %2172 = vmatprep.subr.bf16.mxu0 0
    %2173 = vmatpush1.bf16.msra.mxu0 %v2148
    %2174 = vmatprep.subr.bf16.mxu0 0
    %2175 = vmatpush1.bf16.msra.mxu0 %v2147
    %2176 = vmatprep.subr.bf16.mxu0 0
    %2177 = vmatpush1.bf16.msra.mxu0 %v2146
    %2178 = vmatprep.subr.bf16.mxu0 0
    %2179 = vmatpush2.bf16.msra.mxu0 0
    %2180 = vmatprep.subr.bf16.mxu0 0
    %2181 = vmatpush2.bf16.msra.mxu0 0
    %2182 = vmatprep.subr.bf16.mxu0 0
    %2183 = vmatpush2.bf16.msra.mxu0 0
    %2184 = vmatprep.subr.bf16.mxu0 0
    %2185 = vmatpush2.bf16.msra.mxu0 0
    %2186 = vmatprep.subr.bf16.mxu0 0
    %2187 = vmatpush2.bf16.msra.mxu0 0
    %2188 = vmatprep.subr.bf16.mxu0 0
    %2189 = vmatpush2.bf16.msra.mxu0 0
    %2190 = vmatprep.subr.bf16.mxu0 0
    %2191 = vmatpush2.bf16.msra.mxu0 0
    %2192 = vmatprep.subr.bf16.mxu0 0
    %2193 = vmatpush2.bf16.msra.mxu0 0
    %2194 = vmatprep.mubr.bf16.mxu0 0
    %2195 = vmatmul.mubr.bf16.gmra.mxu0 %v2097
    %v2196 = vpop.f32.mrf.mxu0
    %v2197 = vadd.f32 0.0, %v2196
    %v2198 = vpop.f32.mrf.mxu0
    %v2199 = vpop.f32.mrf.mxu0
    %v2200 = vpop.f32.mrf.mxu0
    %2201 = vdwg.mxu0
    %v2218 = vunpack.c.l.b16 %v2081
    %v2219 = vunpack.c.l.b16 %v2082
    %v2220 = vunpack.c.l.b16 %v2083
    %v2221 = vunpack.c.l.b16 %v2084
    %v2222 = vunpack.c.l.b16 %v2085
    %v2223 = vunpack.c.l.b16 %v2086
    %v2224 = vunpack.c.l.b16 %v2087
    %v2225 = vunpack.c.l.b16 %v2088
    %v2226 = vunpack.c.l.b16 %v2089
    %v2227 = vunpack.c.l.b16 %v2090
    %v2228 = vunpack.c.l.b16 %v2091
    %v2229 = vunpack.c.l.b16 %v2092
    %v2230 = vunpack.c.l.b16 %v2093
    %v2231 = vunpack.c.l.b16 %v2094
    %v2232 = vunpack.c.l.b16 %v2095
    %v2233 = vunpack.c.l.b16 %v2096
    %v2234 = vpack.c.b16 %v2219, %v2218
    %v2235 = vpack.c.b16 %v2221, %v2220
    %v2236 = vpack.c.b16 %v2223, %v2222
    %v2237 = vpack.c.b16 %v2225, %v2224
    %v2238 = vpack.c.b16 %v2227, %v2226
    %v2239 = vpack.c.b16 %v2229, %v2228
    %v2240 = vpack.c.b16 %v2231, %v2230
    %v2241 = vpack.c.b16 %v2233, %v2232
    %2250 = vmatprep.subr.bf16.mxu0 0
    %2251 = vmatpush1.bf16.msra.mxu0 %v2241
    %2252 = vmatprep.subr.bf16.mxu0 0
    %2253 = vmatpush1.bf16.msra.mxu0 %v2240
    %2254 = vmatprep.subr.bf16.mxu0 0
    %2255 = vmatpush1.bf16.msra.mxu0 %v2239
    %2256 = vmatprep.subr.bf16.mxu0 0
    %2257 = vmatpush1.bf16.msra.mxu0 %v2238
    %2258 = vmatprep.subr.bf16.mxu0 0
    %2259 = vmatpush1.bf16.msra.mxu0 %v2237
    %2260 = vmatprep.subr.bf16.mxu0 0
    %2261 = vmatpush1.bf16.msra.mxu0 %v2236
    %2262 = vmatprep.subr.bf16.mxu0 0
    %2263 = vmatpush1.bf16.msra.mxu0 %v2235
    %2264 = vmatprep.subr.bf16.mxu0 0
    %2265 = vmatpush1.bf16.msra.mxu0 %v2234
    %2266 = vmatprep.subr.bf16.mxu0 0
    %2267 = vmatpush2.bf16.msra.mxu0 0
    %2268 = vmatprep.subr.bf16.mxu0 0
    %2269 = vmatpush2.bf16.msra.mxu0 0
    %2270 = vmatprep.subr.bf16.mxu0 0
    %2271 = vmatpush2.bf16.msra.mxu0 0
    %2272 = vmatprep.subr.bf16.mxu0 0
    %2273 = vmatpush2.bf16.msra.mxu0 0
    %2274 = vmatprep.subr.bf16.mxu0 0
    %2275 = vmatpush2.bf16.msra.mxu0 0
    %2276 = vmatprep.subr.bf16.mxu0 0
    %2277 = vmatpush2.bf16.msra.mxu0 0
    %2278 = vmatprep.subr.bf16.mxu0 0
    %2279 = vmatpush2.bf16.msra.mxu0 0
    %2280 = vmatprep.subr.bf16.mxu0 0
    %2281 = vmatpush2.bf16.msra.mxu0 0
    %2282 = vmatprep.mubr.bf16.mxu0 0
    %2283 = vmatmul.mubr.bf16.gmra.mxu0 %v2080
    %v2284 = vpop.f32.mrf.mxu0
    %v2285 = vadd.f32 %v2197, %v2284
    %v2286 = vpop.f32.mrf.mxu0
    %v2287 = vpop.f32.mrf.mxu0
    %v2288 = vpop.f32.mrf.mxu0
    %2289 = vdwg.mxu0
    %v2290 = vld [vmem:[#allocation2 + $0x78] sm:$0x1]
    %v2291 = vadd.f32 %v2285, %v2290
    %v2292 = vmax.f32 %v2291, 0.0
    %v2293 = vpack.c.bf16 %v2292, %v2292
    %v2294 = vld [vmem:[%s2 + $0x200] sm:$0xf]
    %v2295 = vld [vmem:[%s2 + $0x204] sm:$0xf]
    %v2296 = vld [vmem:[%s2 + $0x208] sm:$0xf]
    %v2297 = vld [vmem:[%s2 + $0x20c] sm:$0xf]
    %v2298 = vld [vmem:[%s2 + $0x210] sm:$0xf]
    %v2299 = vld [vmem:[%s2 + $0x214] sm:$0xf]
    %v2300 = vld [vmem:[%s2 + $0x218] sm:$0xf]
    %v2301 = vld [vmem:[%s2 + $0x21c] sm:$0xf]
    %v2302 = vld [vmem:[%s2 + $0x220] sm:$0xf]
    %v2303 = vld [vmem:[%s2 + $0x224] sm:$0xf]
    %v2304 = vld [vmem:[%s2 + $0x228] sm:$0xf]
    %v2305 = vld [vmem:[%s2 + $0x22c] sm:$0xf]
    %v2306 = vld [vmem:[%s2 + $0x230] sm:$0xf]
    %v2307 = vld [vmem:[%s2 + $0x234] sm:$0xf]
    %v2308 = vld [vmem:[%s2 + $0x238] sm:$0xf]
    %v2309 = vld [vmem:[%s2 + $0x23c] sm:$0xf]
    %v2310 = vld [vmem:[#allocation2 + $0x80] sm:$0x1]
    %v2327 = vunpack.c.l.b16 %v2294
    %v2328 = vunpack.c.l.b16 %v2295
    %v2329 = vunpack.c.l.b16 %v2296
    %v2330 = vunpack.c.l.b16 %v2297
    %v2331 = vunpack.c.l.b16 %v2298
    %v2332 = vunpack.c.l.b16 %v2299
    %v2333 = vunpack.c.l.b16 %v2300
    %v2334 = vunpack.c.l.b16 %v2301
    %v2335 = vunpack.c.l.b16 %v2302
    %v2336 = vunpack.c.l.b16 %v2303
    %v2337 = vunpack.c.l.b16 %v2304
    %v2338 = vunpack.c.l.b16 %v2305
    %v2339 = vunpack.c.l.b16 %v2306
    %v2340 = vunpack.c.l.b16 %v2307
    %v2341 = vunpack.c.l.b16 %v2308
    %v2342 = vunpack.c.l.b16 %v2309
    %v2343 = vpack.c.b16 %v2328, %v2327
    %v2344 = vpack.c.b16 %v2330, %v2329
    %v2345 = vpack.c.b16 %v2332, %v2331
    %v2346 = vpack.c.b16 %v2334, %v2333
    %v2347 = vpack.c.b16 %v2336, %v2335
    %v2348 = vpack.c.b16 %v2338, %v2337
    %v2349 = vpack.c.b16 %v2340, %v2339
    %v2350 = vpack.c.b16 %v2342, %v2341
    %2359 = vmatprep.subr.bf16.mxu0 0
    %2360 = vmatpush1.bf16.msra.mxu0 %v2350
    %2361 = vmatprep.subr.bf16.mxu0 0
    %2362 = vmatpush1.bf16.msra.mxu0 %v2349
    %2363 = vmatprep.subr.bf16.mxu0 0
    %2364 = vmatpush1.bf16.msra.mxu0 %v2348
    %2365 = vmatprep.subr.bf16.mxu0 0
    %2366 = vmatpush1.bf16.msra.mxu0 %v2347
    %2367 = vmatprep.subr.bf16.mxu0 0
    %2368 = vmatpush1.bf16.msra.mxu0 %v2346
    %2369 = vmatprep.subr.bf16.mxu0 0
    %2370 = vmatpush1.bf16.msra.mxu0 %v2345
    %2371 = vmatprep.subr.bf16.mxu0 0
    %2372 = vmatpush1.bf16.msra.mxu0 %v2344
    %2373 = vmatprep.subr.bf16.mxu0 0
    %2374 = vmatpush1.bf16.msra.mxu0 %v2343
    %2375 = vmatprep.subr.bf16.mxu0 0
    %2376 = vmatpush2.bf16.msra.mxu0 0
    %2377 = vmatprep.subr.bf16.mxu0 0
    %2378 = vmatpush2.bf16.msra.mxu0 0
    %2379 = vmatprep.subr.bf16.mxu0 0
    %2380 = vmatpush2.bf16.msra.mxu0 0
    %2381 = vmatprep.subr.bf16.mxu0 0
    %2382 = vmatpush2.bf16.msra.mxu0 0
    %2383 = vmatprep.subr.bf16.mxu0 0
    %2384 = vmatpush2.bf16.msra.mxu0 0
    %2385 = vmatprep.subr.bf16.mxu0 0
    %2386 = vmatpush2.bf16.msra.mxu0 0
    %2387 = vmatprep.subr.bf16.mxu0 0
    %2388 = vmatpush2.bf16.msra.mxu0 0
    %2389 = vmatprep.subr.bf16.mxu0 0
    %2390 = vmatpush2.bf16.msra.mxu0 0
    %2391 = vmatprep.mubr.bf16.mxu0 0
    %2392 = vmatmul.mubr.bf16.gmra.mxu0 %v2293
    %v2393 = vpop.f32.mrf.mxu0
    %v2394 = vadd.f32 %v2310, %v2393
    %v2395 = vpop.f32.mrf.mxu0
    %v2396 = vpop.f32.mrf.mxu0
    %v2397 = vpop.f32.mrf.mxu0
    %2398 = vdwg.mxu0
    %v2399 = vmax.f32 %v2394, 0.0
    %v2400 = vpack.c.bf16 %v2399, %v2399
    %v2401 = vld [vmem:[%s2 + $0x240] sm:$0xf]
    %v2402 = vld [vmem:[%s2 + $0x244] sm:$0xf]
    %v2403 = vld [vmem:[%s2 + $0x248] sm:$0xf]
    %v2404 = vld [vmem:[%s2 + $0x24c] sm:$0xf]
    %v2405 = vld [vmem:[%s2 + $0x250] sm:$0xf]
    %v2406 = vld [vmem:[%s2 + $0x254] sm:$0xf]
    %v2407 = vld [vmem:[%s2 + $0x258] sm:$0xf]
    %v2408 = vld [vmem:[%s2 + $0x25c] sm:$0xf]
    %v2409 = vld [vmem:[%s2 + $0x260] sm:$0xf]
    %v2410 = vld [vmem:[%s2 + $0x264] sm:$0xf]
    %v2411 = vld [vmem:[%s2 + $0x268] sm:$0xf]
    %v2412 = vld [vmem:[%s2 + $0x26c] sm:$0xf]
    %v2413 = vld [vmem:[%s2 + $0x270] sm:$0xf]
    %v2414 = vld [vmem:[%s2 + $0x274] sm:$0xf]
    %v2415 = vld [vmem:[%s2 + $0x278] sm:$0xf]
    %v2416 = vld [vmem:[%s2 + $0x27c] sm:$0xf]
    %v2417 = vld [vmem:[#allocation2 + $0x88] sm:$0x1]
    %v2434 = vunpack.c.l.b16 %v2401
    %v2435 = vunpack.c.l.b16 %v2402
    %v2436 = vunpack.c.l.b16 %v2403
    %v2437 = vunpack.c.l.b16 %v2404
    %v2438 = vunpack.c.l.b16 %v2405
    %v2439 = vunpack.c.l.b16 %v2406
    %v2440 = vunpack.c.l.b16 %v2407
    %v2441 = vunpack.c.l.b16 %v2408
    %v2442 = vunpack.c.l.b16 %v2409
    %v2443 = vunpack.c.l.b16 %v2410
    %v2444 = vunpack.c.l.b16 %v2411
    %v2445 = vunpack.c.l.b16 %v2412
    %v2446 = vunpack.c.l.b16 %v2413
    %v2447 = vunpack.c.l.b16 %v2414
    %v2448 = vunpack.c.l.b16 %v2415
    %v2449 = vunpack.c.l.b16 %v2416
    %v2450 = vpack.c.b16 %v2435, %v2434
    %v2451 = vpack.c.b16 %v2437, %v2436
    %v2452 = vpack.c.b16 %v2439, %v2438
    %v2453 = vpack.c.b16 %v2441, %v2440
    %v2454 = vpack.c.b16 %v2443, %v2442
    %v2455 = vpack.c.b16 %v2445, %v2444
    %v2456 = vpack.c.b16 %v2447, %v2446
    %v2457 = vpack.c.b16 %v2449, %v2448
    %2466 = vmatprep.subr.bf16.mxu0 0
    %2467 = vmatpush1.bf16.msra.mxu0 %v2457
    %2468 = vmatprep.subr.bf16.mxu0 0
    %2469 = vmatpush1.bf16.msra.mxu0 %v2456
    %2470 = vmatprep.subr.bf16.mxu0 0
    %2471 = vmatpush1.bf16.msra.mxu0 %v2455
    %2472 = vmatprep.subr.bf16.mxu0 0
    %2473 = vmatpush1.bf16.msra.mxu0 %v2454
    %2474 = vmatprep.subr.bf16.mxu0 0
    %2475 = vmatpush1.bf16.msra.mxu0 %v2453
    %2476 = vmatprep.subr.bf16.mxu0 0
    %2477 = vmatpush1.bf16.msra.mxu0 %v2452
    %2478 = vmatprep.subr.bf16.mxu0 0
    %2479 = vmatpush1.bf16.msra.mxu0 %v2451
    %2480 = vmatprep.subr.bf16.mxu0 0
    %2481 = vmatpush1.bf16.msra.mxu0 %v2450
    %2482 = vmatprep.subr.bf16.mxu0 0
    %2483 = vmatpush2.bf16.msra.mxu0 0
    %2484 = vmatprep.subr.bf16.mxu0 0
    %2485 = vmatpush2.bf16.msra.mxu0 0
    %2486 = vmatprep.subr.bf16.mxu0 0
    %2487 = vmatpush2.bf16.msra.mxu0 0
    %2488 = vmatprep.subr.bf16.mxu0 0
    %2489 = vmatpush2.bf16.msra.mxu0 0
    %2490 = vmatprep.subr.bf16.mxu0 0
    %2491 = vmatpush2.bf16.msra.mxu0 0
    %2492 = vmatprep.subr.bf16.mxu0 0
    %2493 = vmatpush2.bf16.msra.mxu0 0
    %2494 = vmatprep.subr.bf16.mxu0 0
    %2495 = vmatpush2.bf16.msra.mxu0 0
    %2496 = vmatprep.subr.bf16.mxu0 0
    %2497 = vmatpush2.bf16.msra.mxu0 0
    %2498 = vmatprep.mubr.bf16.mxu0 0
    %2499 = vmatmul.mubr.bf16.gmra.mxu0 %v2400
    %v2500 = vpop.f32.mrf.mxu0
    %v2501 = vadd.f32 %v2417, %v2500
    %v2502 = vpop.f32.mrf.mxu0
    %v2503 = vpop.f32.mrf.mxu0
    %v2504 = vpop.f32.mrf.mxu0
    %2505 = vdwg.mxu0
    %v2506 = vmax.f32 %v2501, 0.0
    %v2507 = vpack.c.bf16 %v2506, %v2506
    %v2508 = vld [vmem:[%s2 + $0x280] sm:$0xf]
    %v2509 = vld [vmem:[%s2 + $0x284] sm:$0xf]
    %v2510 = vld [vmem:[%s2 + $0x288] sm:$0xf]
    %v2511 = vld [vmem:[%s2 + $0x28c] sm:$0xf]
    %v2512 = vld [vmem:[%s2 + $0x290] sm:$0xf]
    %v2513 = vld [vmem:[%s2 + $0x294] sm:$0xf]
    %v2514 = vld [vmem:[%s2 + $0x298] sm:$0xf]
    %v2515 = vld [vmem:[%s2 + $0x29c] sm:$0xf]
    %v2516 = vld [vmem:[%s2 + $0x2a0] sm:$0xf]
    %v2517 = vld [vmem:[%s2 + $0x2a4] sm:$0xf]
    %v2518 = vld [vmem:[%s2 + $0x2a8] sm:$0xf]
    %v2519 = vld [vmem:[%s2 + $0x2ac] sm:$0xf]
    %v2520 = vld [vmem:[%s2 + $0x2b0] sm:$0xf]
    %v2521 = vld [vmem:[%s2 + $0x2b4] sm:$0xf]
    %v2522 = vld [vmem:[%s2 + $0x2b8] sm:$0xf]
    %v2523 = vld [vmem:[%s2 + $0x2bc] sm:$0xf]
    %v2524 = vld [vmem:[#allocation2 + $0x90] sm:$0x1]
    %v2541 = vunpack.c.l.b16 %v2508
    %v2542 = vunpack.c.l.b16 %v2509
    %v2543 = vunpack.c.l.b16 %v2510
    %v2544 = vunpack.c.l.b16 %v2511
    %v2545 = vunpack.c.l.b16 %v2512
    %v2546 = vunpack.c.l.b16 %v2513
    %v2547 = vunpack.c.l.b16 %v2514
    %v2548 = vunpack.c.l.b16 %v2515
    %v2549 = vunpack.c.l.b16 %v2516
    %v2550 = vunpack.c.l.b16 %v2517
    %v2551 = vunpack.c.l.b16 %v2518
    %v2552 = vunpack.c.l.b16 %v2519
    %v2553 = vunpack.c.l.b16 %v2520
    %v2554 = vunpack.c.l.b16 %v2521
    %v2555 = vunpack.c.l.b16 %v2522
    %v2556 = vunpack.c.l.b16 %v2523
    %v2557 = vpack.c.b16 %v2542, %v2541
    %v2558 = vpack.c.b16 %v2544, %v2543
    %v2559 = vpack.c.b16 %v2546, %v2545
    %v2560 = vpack.c.b16 %v2548, %v2547
    %v2561 = vpack.c.b16 %v2550, %v2549
    %v2562 = vpack.c.b16 %v2552, %v2551
    %v2563 = vpack.c.b16 %v2554, %v2553
    %v2564 = vpack.c.b16 %v2556, %v2555
    %2573 = vmatprep.subr.bf16.mxu0 0
    %2574 = vmatpush1.bf16.msra.mxu0 %v2564
    %2575 = vmatprep.subr.bf16.mxu0 0
    %2576 = vmatpush1.bf16.msra.mxu0 %v2563
    %2577 = vmatprep.subr.bf16.mxu0 0
    %2578 = vmatpush1.bf16.msra.mxu0 %v2562
    %2579 = vmatprep.subr.bf16.mxu0 0
    %2580 = vmatpush1.bf16.msra.mxu0 %v2561
    %2581 = vmatprep.subr.bf16.mxu0 0
    %2582 = vmatpush1.bf16.msra.mxu0 %v2560
    %2583 = vmatprep.subr.bf16.mxu0 0
    %2584 = vmatpush1.bf16.msra.mxu0 %v2559
    %2585 = vmatprep.subr.bf16.mxu0 0
    %2586 = vmatpush1.bf16.msra.mxu0 %v2558
    %2587 = vmatprep.subr.bf16.mxu0 0
    %2588 = vmatpush1.bf16.msra.mxu0 %v2557
    %2589 = vmatprep.subr.bf16.mxu0 0
    %2590 = vmatpush2.bf16.msra.mxu0 0
    %2591 = vmatprep.subr.bf16.mxu0 0
    %2592 = vmatpush2.bf16.msra.mxu0 0
    %2593 = vmatprep.subr.bf16.mxu0 0
    %2594 = vmatpush2.bf16.msra.mxu0 0
    %2595 = vmatprep.subr.bf16.mxu0 0
    %2596 = vmatpush2.bf16.msra.mxu0 0
    %2597 = vmatprep.subr.bf16.mxu0 0
    %2598 = vmatpush2.bf16.msra.mxu0 0
    %2599 = vmatprep.subr.bf16.mxu0 0
    %2600 = vmatpush2.bf16.msra.mxu0 0
    %2601 = vmatprep.subr.bf16.mxu0 0
    %2602 = vmatpush2.bf16.msra.mxu0 0
    %2603 = vmatprep.subr.bf16.mxu0 0
    %2604 = vmatpush2.bf16.msra.mxu0 0
    %2605 = vmatprep.mubr.bf16.mxu0 0
    %2606 = vmatmul.mubr.bf16.gmra.mxu0 %v2507
    %v2607 = vpop.f32.mrf.mxu0
    %v2608 = vadd.f32 %v2524, %v2607
    %v2609 = vpop.f32.mrf.mxu0
    %v2610 = vpop.f32.mrf.mxu0
    %v2611 = vpop.f32.mrf.mxu0
    %2612 = vdwg.mxu0
    %vm2613 = vcmask 1040384
    %v2614 = vsel %vm2613, %v2608, -inf
    %2615 = vmax.xlane.f32.xlu0 %v2614
    %v2616 = vpop.xlane.xlu0 %2615
    %v2617 = vsub.f32 %v2608, %v2616
    %v2618 = vmul.f32 %v2617, 1.442695
    %v2619 = vpow.pop %v2618
    %v2620 = vsel %vm2613, %v2619, 0.0
    %2621 = vadd.xlane.f32.xlu0 %v2620
    %v2622 = vpop.xlane.xlu0 %2621
    %v2623 = vlog2.pop %v2622
    %v2624 = vmul.f32 %v2623, 0.6931472
    %v2625 = vsub.f32 %v2617, %v2624
    %2626 = vst [vmem:[#allocation5] sm:$0x1] %v2625
    // Predicated region
    $region22: #{net_forward.1} parent=1 // pred_check
      _
    $region23: #{net_forward.1} parent=1 // pred_check_branch
      %2628 = sbr.rel (0) target = $region25
    $region24: #{net_forward.1} parent=1 // pred_region
      %s2630 = ssub.s32 16, 16
      %2631 = vsyncadd [#allocation4], %s2630
      %s2633 = sshll.u32 [#allocation5], 4
      %s2634 = int_to_ptr.vmem [resolvable:$true] %s2633
      %2636 = dma.vmem_to_hbm [thread:$0]  %s2634, 16, %s4, [#allocation4]
    $region25: #{net_forward.1} parent=1 // pred_fallthru
      _
    // Predicated region
    $region26: #{net_forward.1} parent=1 // pred_check
      _
    $region27: #{net_forward.1} parent=1 // pred_check_branch
      %2638 = sbr.rel (0) target = $region29
    $region28: #{net_forward.1} parent=1 // pred_region
      %2639 = dma.done [#allocation4], 16
    $region29: #{net_forward.1} parent=1 // pred_fallthru
      _
    %2640 = vsyncpa [#allocation3], 1
    %2641 = vsyncpa [#allocation4], 1

</llo_original>
